<compile_context>
chip_gen: v7x
topology: tpu7x:2x2x1
jax: 0.10.0
libtpu: 0.0.40
codegen_flags: <defaults>
</compile_context>

<pallas_src>
import functools

import jax
import jax.numpy as jnp
from jax import lax
from jax.experimental import pallas as pl
from jax.experimental.pallas import tpu as pltpu

K1, C_IN, C1 = 9, 3, 64                 # layer 1: 9x9 conv, 3 -> 64
C2 = 32                                 # layer 2: 1x1 conv, 64 -> 32
K3, C_OUT = 5, 3                        # layer 3: 5x5 conv, 32 -> 3
P1, P3 = K1 // 2, K3 // 2               # paddings: 4, 2
K1COL = K1 * K1 * C_IN                  # 243
K1PAD = ((K1COL + 127) // 128) * 128    # 256 (zero-padded contraction dim)
K3COL = K3 * C2                         # 160


def _fused_srcnn_kernel(xcol_ref, w1_ref, b1_ref, w2_ref, b2_ref,
                        w3_ref, b3_ref, o_ref, p2_ref, *, H, W):
    """One image per grid step.

    xcol_ref: (1, H*W, K1PAD)   bf16  full layer-1 im2col (zero-padded K)
    w1_ref:   (K1PAD, C1)       bf16
    w2_ref:   (C1, C2)          bf16
    w3_ref:   (K3, K3*C2, 3)    bf16  kw folded into contraction dim
    b*_ref:   (1, C*)           f32
    o_ref:    (1, C_OUT, H*W)   f32   lane-dense output slab
    p2_ref:   (H+4, W, K3*C2)   bf16  VMEM scratch: H-padded, kw-folded act-2
    """
    HW = H * W

    # ---- layer 1: single GEMM (HW, 256) @ (256, 64) + bias + ReLU -----------
    a1 = jnp.dot(xcol_ref[0], w1_ref[...], preferred_element_type=jnp.float32)
    a1 = jnp.maximum(a1 + b1_ref[...], 0.0)                      # (HW, 64) f32

    # ---- layer 2: 1x1 conv == GEMM (HW, 64) @ (64, 32) + bias + ReLU --------
    a2 = jnp.dot(a1.astype(jnp.bfloat16), w2_ref[...],
                 preferred_element_type=jnp.float32)
    a2 = jnp.maximum(a2 + b2_ref[...], 0.0)                      # (HW, 32) f32
    a2 = a2.reshape(H, W, C2)

    # ---- build kw-folded layer-2 columns in the scratch ---------------------
    # p2_ref[P3 + h, w, kw*C2 + c] = zero-padded-in-W a2[h, w + kw - P3, c]
    w_idx = lax.broadcasted_iota(jnp.int32, (H, W, C2), 1)       # hoisted iota
    for kw in range(K3):
        s = kw - P3                                  # W-shift in [-2, 2]
        if s == 0:
            shifted = a2
        else:
            rolled = pltpu.roll(a2, (-s) % W, axis=1)            # XLU rotate
            valid = (w_idx >= -s) & (w_idx < W - s)
            shifted = jnp.where(valid, rolled, 0.0)
        p2_ref[P3:P3 + H, :, kw * C2:(kw + 1) * C2] = shifted.astype(jnp.bfloat16)

    # Border-only zeroing (top/bottom P3 rows). Not gated on program_id: the
    # batch axis is 'parallel', so each core has its own scratch instance.
    zrow = jnp.zeros((P3, W, K3COL), jnp.bfloat16)
    p2_ref[0:P3] = zrow
    p2_ref[P3 + H:P3 + H + P3] = zrow

    # ---- layer 3: 5 GEMMs (HW, 160) @ (160, 3) over kh -----------------------
    # Leading-dim slices of the scratch are tile-aligned (sublane dim is W).
    def patch(kh):
        return p2_ref[kh:kh + H].reshape(HW, K3COL)

    acc3 = jnp.dot(patch(0), w3_ref[0], preferred_element_type=jnp.float32)
    for kh in range(1, K3):
        acc3 = acc3 + jnp.dot(patch(kh), w3_ref[kh],
                              preferred_element_type=jnp.float32)

    # ---- bias + ReLU + clamp, lane-dense (C_OUT, HW) store --------------------
    res = jnp.maximum(acc3 + b3_ref[...], 0.0)
    res = jnp.clip(res, 1e-12, 1.0 - 1e-12)
    o_ref[0] = jnp.transpose(res).astype(o_ref.dtype)            # (3, HW)


def model_forward(x_nchw, params):
    """Replicates Model.forward. x_nchw: (B, 3, H, W) -> (B, 3, H, W)."""
    (w1, b1), (w2, b2), (w3, b3) = params                        # HWIO weights
    B, _, H, W = x_nchw.shape
    HW = H * W

    # Full layer-1 im2col in the wrapper (fine at small sizes; for large images
    # use kw-only folding / in-kernel shifts + H-tiling with halos instead).
    x = jnp.transpose(x_nchw, (0, 2, 3, 1))                      # NHWC
    xp = jnp.pad(x, ((0, 0), (P1, P1), (P1, P1), (0, 0)))
    cols = [xp[:, kh:kh + H, kw:kw + W, :]
            for kh in range(K1) for kw in range(K1)]
    xcol = jnp.concatenate(cols, axis=-1).reshape(B, HW, K1COL)
    xcol = jnp.pad(xcol, ((0, 0), (0, 0), (0, K1PAD - K1COL)))
    xcol = xcol.astype(jnp.bfloat16)                             # (B, HW, 256)

    w1col = jnp.pad(w1.reshape(K1COL, C1),
                    ((0, K1PAD - K1COL), (0, 0))).astype(jnp.bfloat16)
    w2r = w2.reshape(C1, C2).astype(jnp.bfloat16)
    w3col = w3.reshape(K3, K3COL, C_OUT).astype(jnp.bfloat16)

    kernel = functools.partial(_fused_srcnn_kernel, H=H, W=W)
    out_flat = pl.pallas_call(
        kernel,
        out_shape=jax.ShapeDtypeStruct((B, C_OUT, HW), x_nchw.dtype),
        grid_spec=pltpu.PrefetchScalarGridSpec(
            num_scalar_prefetch=0,
            grid=(B,),
            in_specs=[
                pl.BlockSpec((1, HW, K1PAD), lambda b: (b, 0, 0)),
                pl.BlockSpec((K1PAD, C1), lambda b: (0, 0)),
                pl.BlockSpec((1, C1), lambda b: (0, 0)),
                pl.BlockSpec((C1, C2), lambda b: (0, 0)),
                pl.BlockSpec((1, C2), lambda b: (0, 0)),
                pl.BlockSpec((K3, K3COL, C_OUT), lambda b: (0, 0, 0)),
                pl.BlockSpec((1, C_OUT), lambda b: (0, 0)),
            ],
            out_specs=pl.BlockSpec((1, C_OUT, HW), lambda b: (b, 0, 0)),
            scratch_shapes=[
                pltpu.VMEM((H + 2 * P3, W, K3COL), jnp.bfloat16),
            ],
        ),
        compiler_params=pltpu.CompilerParams(
            dimension_semantics=("parallel",)),
    )(xcol, w1col, b1.reshape(1, C1), w2r, b2.reshape(1, C2),
      w3col, b3.reshape(1, C_OUT))

    return out_flat.reshape(B, C_OUT, H, W)                      # already NCHW


def _init_conv(wkey, bkey, KH, KW, Cin, Cout):
    # PyTorch default Conv2d init: U(-1/sqrt(fan_in), 1/sqrt(fan_in)), HWIO.
    bound = 1.0 / (Cin * KH * KW) ** 0.5
    w = jax.random.uniform(wkey, (KH, KW, Cin, Cout), jnp.float32,
                           minval=-bound, maxval=bound)
    b = jax.random.uniform(bkey, (Cout,), jnp.float32,
                           minval=-bound, maxval=bound)
    return w, b


if __name__ == "__main__":
    key = jax.random.PRNGKey(0)
    keys = jax.random.split(key, 7)

    params = (
        _init_conv(keys[1], keys[2], K1, K1, C_IN, C1),
        _init_conv(keys[3], keys[4], 1, 1, C1, C2),
        _init_conv(keys[5], keys[6], K3, K3, C2, C_OUT),
    )
    x = jax.random.uniform(keys[0], (2, 3, 16, 16), jnp.float32)

    fwd = jax.jit(model_forward)
    out = jax.block_until_ready(fwd(x, params))

    assert out.shape == (2, 3, 16, 16)
    assert bool(jnp.all(out >= 1e-12)) and bool(jnp.all(out <= 1.0))
    print("KERNEL_OK")
</pallas_src>

<mosaic_0001>
module attributes {stable_mosaic.version = 11 : i64} {
  func.func @_fused_srcnn_kernel(%arg0: i32, %arg1: memref<1x256x256xbf16, #tpu.memory_space<vmem>>, %arg2: memref<256x64xbf16, #tpu.memory_space<vmem>>, %arg3: memref<1x64xf32, #tpu.memory_space<vmem>>, %arg4: memref<64x32xbf16, #tpu.memory_space<vmem>>, %arg5: memref<1x32xf32, #tpu.memory_space<vmem>>, %arg6: memref<5x160x3xbf16, #tpu.memory_space<vmem>>, %arg7: memref<1x3xf32, #tpu.memory_space<vmem>>, %arg8: memref<1x3x256xf32, #tpu.memory_space<vmem>>, %arg9: memref<20x16x160xbf16, #tpu.memory_space<vmem>>) attributes {dimension_semantics = [#tpu.dimension_semantics<parallel>], iteration_bounds = array<i64: 2>, scalar_prefetch = 0 : i64, scratch_operands = 1 : i64, tpu.core_type = #tpu.core_type<tc>, window_params = [{transform_indices = @transform_0, window_bounds = array<i64: 1, 256, 256>}, {pipeline_mode = #tpu.pipeline_mode<synchronous>, transform_indices = @transform_1, window_bounds = array<i64: 256, 64>}, {pipeline_mode = #tpu.pipeline_mode<synchronous>, transform_indices = @transform_2, window_bounds = array<i64: 1, 64>}, {pipeline_mode = #tpu.pipeline_mode<synchronous>, transform_indices = @transform_3, window_bounds = array<i64: 64, 32>}, {pipeline_mode = #tpu.pipeline_mode<synchronous>, transform_indices = @transform_4, window_bounds = array<i64: 1, 32>}, {pipeline_mode = #tpu.pipeline_mode<synchronous>, transform_indices = @transform_5, window_bounds = array<i64: 5, 160, 3>}, {pipeline_mode = #tpu.pipeline_mode<synchronous>, transform_indices = @transform_6, window_bounds = array<i64: 1, 3>}, {transform_indices = @transform_7, window_bounds = array<i64: 1, 3, 256>}]} {
    %c0 = arith.constant 0 : index
    %c0_0 = arith.constant 0 : index
    %c0_1 = arith.constant 0 : index
    %0 = vector.load %arg1[%c0, %c0_0, %c0_1] : memref<1x256x256xbf16, #tpu.memory_space<vmem>>, vector<1x256x256xbf16>
    %1 = vector.shape_cast %0 : vector<1x256x256xbf16> to vector<256x256xbf16>
    %c0_2 = arith.constant 0 : index
    %c0_3 = arith.constant 0 : index
    %2 = vector.load %arg2[%c0_2, %c0_3] : memref<256x64xbf16, #tpu.memory_space<vmem>>, vector<256x64xbf16>
    %cst = arith.constant dense<0.000000e+00> : vector<256x64xf32>
    %3 = tpu.matmul %1, %2, %cst {dimension_numbers = #tpu.dot_dimension_numbers<[1], [0], [0], [1], [0, 0, 1, 1], [], []>} : vector<256x256xbf16>, vector<256x64xbf16>, vector<256x64xf32> -> vector<256x64xf32>
    %c0_4 = arith.constant 0 : index
    %c0_5 = arith.constant 0 : index
    %4 = vector.load %arg3[%c0_4, %c0_5] : memref<1x64xf32, #tpu.memory_space<vmem>>, vector<1x64xf32>
    %5 = vector.broadcast %4 : vector<1x64xf32> to vector<256x64xf32>
    %6 = arith.addf %3, %5 : vector<256x64xf32>
    %cst_6 = arith.constant 0.000000e+00 : f32
    %7 = vector.broadcast %cst_6 : f32 to vector<256x64xf32>
    %8 = arith.maximumf %6, %7 : vector<256x64xf32>
    %9 = arith.truncf %8 : vector<256x64xf32> to vector<256x64xbf16>
    %c0_7 = arith.constant 0 : index
    %c0_8 = arith.constant 0 : index
    %10 = vector.load %arg4[%c0_7, %c0_8] : memref<64x32xbf16, #tpu.memory_space<vmem>>, vector<64x32xbf16>
    %cst_9 = arith.constant dense<0.000000e+00> : vector<256x32xf32>
    %11 = tpu.matmul %9, %10, %cst_9 {dimension_numbers = #tpu.dot_dimension_numbers<[1], [0], [0], [1], [0, 0, 1, 1], [], []>} : vector<256x64xbf16>, vector<64x32xbf16>, vector<256x32xf32> -> vector<256x32xf32>
    %c0_10 = arith.constant 0 : index
    %c0_11 = arith.constant 0 : index
    %12 = vector.load %arg5[%c0_10, %c0_11] : memref<1x32xf32, #tpu.memory_space<vmem>>, vector<1x32xf32>
    %13 = vector.broadcast %12 : vector<1x32xf32> to vector<256x32xf32>
    %14 = arith.addf %11, %13 : vector<256x32xf32>
    %cst_12 = arith.constant 0.000000e+00 : f32
    %15 = vector.broadcast %cst_12 : f32 to vector<256x32xf32>
    %16 = arith.maximumf %14, %15 : vector<256x32xf32>
    %17 = vector.shape_cast %16 : vector<256x32xf32> to vector<16x16x32xf32>
    %18 = tpu.iota {dimensions = array<i32: 1>} : vector<16x16x32xi32>
    %c2_i32 = arith.constant 2 : i32
    %19 = tpu.dynamic_rotate %17 by %c2_i32 dim 1 : vector<16x16x32xf32>, i32 -> vector<16x16x32xf32>
    %c2_i32_13 = arith.constant 2 : i32
    %20 = vector.broadcast %c2_i32_13 : i32 to vector<16x16x32xi32>
    %21 = arith.cmpi sge, %18, %20 : vector<16x16x32xi32>
    %c18_i32 = arith.constant 18 : i32
    %22 = vector.broadcast %c18_i32 : i32 to vector<16x16x32xi32>
    %23 = arith.cmpi slt, %18, %22 : vector<16x16x32xi32>
    %24 = arith.andi %21, %23 : vector<16x16x32xi1>
    %cst_14 = arith.constant 0.000000e+00 : f32
    %25 = vector.broadcast %cst_14 : f32 to vector<16x16x32xf32>
    %26 = arith.select %24, %19, %25 : vector<16x16x32xi1>, vector<16x16x32xf32>
    %27 = arith.truncf %26 : vector<16x16x32xf32> to vector<16x16x32xbf16>
    %c2 = arith.constant 2 : index
    %c0_15 = arith.constant 0 : index
    %c0_16 = arith.constant 0 : index
    %28 = vector.load %arg9[%c2, %c0_15, %c0_16] : memref<20x16x160xbf16, #tpu.memory_space<vmem>>, vector<16x16x32xbf16>
    tpu.vector_store %arg9[%c2, %c0_15, %c0_16], %27 {strides = array<i32>} : memref<20x16x160xbf16, #tpu.memory_space<vmem>>, vector<16x16x32xbf16>,
    %c1_i32 = arith.constant 1 : i32
    %29 = tpu.dynamic_rotate %17 by %c1_i32 dim 1 : vector<16x16x32xf32>, i32 -> vector<16x16x32xf32>
    %c1_i32_17 = arith.constant 1 : i32
    %30 = vector.broadcast %c1_i32_17 : i32 to vector<16x16x32xi32>
    %31 = arith.cmpi sge, %18, %30 : vector<16x16x32xi32>
    %c17_i32 = arith.constant 17 : i32
    %32 = vector.broadcast %c17_i32 : i32 to vector<16x16x32xi32>
    %33 = arith.cmpi slt, %18, %32 : vector<16x16x32xi32>
    %34 = arith.andi %31, %33 : vector<16x16x32xi1>
    %cst_18 = arith.constant 0.000000e+00 : f32
    %35 = vector.broadcast %cst_18 : f32 to vector<16x16x32xf32>
    %36 = arith.select %34, %29, %35 : vector<16x16x32xi1>, vector<16x16x32xf32>
    %37 = arith.truncf %36 : vector<16x16x32xf32> to vector<16x16x32xbf16>
    %c2_19 = arith.constant 2 : index
    %c0_20 = arith.constant 0 : index
    %c32 = arith.constant 32 : index
    %38 = vector.load %arg9[%c2_19, %c0_20, %c32] : memref<20x16x160xbf16, #tpu.memory_space<vmem>>, vector<16x16x32xbf16>
    tpu.vector_store %arg9[%c2_19, %c0_20, %c32], %37 {strides = array<i32>} : memref<20x16x160xbf16, #tpu.memory_space<vmem>>, vector<16x16x32xbf16>,
    %39 = arith.truncf %17 : vector<16x16x32xf32> to vector<16x16x32xbf16>
    %c2_21 = arith.constant 2 : index
    %c0_22 = arith.constant 0 : index
    %c64 = arith.constant 64 : index
    %40 = vector.load %arg9[%c2_21, %c0_22, %c64] : memref<20x16x160xbf16, #tpu.memory_space<vmem>>, vector<16x16x32xbf16>
    tpu.vector_store %arg9[%c2_21, %c0_22, %c64], %39 {strides = array<i32>} : memref<20x16x160xbf16, #tpu.memory_space<vmem>>, vector<16x16x32xbf16>,
    %c15_i32 = arith.constant 15 : i32
    %41 = tpu.dynamic_rotate %17 by %c15_i32 dim 1 : vector<16x16x32xf32>, i32 -> vector<16x16x32xf32>
    %c-1_i32 = arith.constant -1 : i32
    %42 = vector.broadcast %c-1_i32 : i32 to vector<16x16x32xi32>
    %43 = arith.cmpi sge, %18, %42 : vector<16x16x32xi32>
    %c15_i32_23 = arith.constant 15 : i32
    %44 = vector.broadcast %c15_i32_23 : i32 to vector<16x16x32xi32>
    %45 = arith.cmpi slt, %18, %44 : vector<16x16x32xi32>
    %46 = arith.andi %43, %45 : vector<16x16x32xi1>
    %cst_24 = arith.constant 0.000000e+00 : f32
    %47 = vector.broadcast %cst_24 : f32 to vector<16x16x32xf32>
    %48 = arith.select %46, %41, %47 : vector<16x16x32xi1>, vector<16x16x32xf32>
    %49 = arith.truncf %48 : vector<16x16x32xf32> to vector<16x16x32xbf16>
    %c2_25 = arith.constant 2 : index
    %c0_26 = arith.constant 0 : index
    %c96 = arith.constant 96 : index
    %50 = vector.load %arg9[%c2_25, %c0_26, %c96] : memref<20x16x160xbf16, #tpu.memory_space<vmem>>, vector<16x16x32xbf16>
    tpu.vector_store %arg9[%c2_25, %c0_26, %c96], %49 {strides = array<i32>} : memref<20x16x160xbf16, #tpu.memory_space<vmem>>, vector<16x16x32xbf16>,
    %c14_i32 = arith.constant 14 : i32
    %51 = tpu.dynamic_rotate %17 by %c14_i32 dim 1 : vector<16x16x32xf32>, i32 -> vector<16x16x32xf32>
    %c-2_i32 = arith.constant -2 : i32
    %52 = vector.broadcast %c-2_i32 : i32 to vector<16x16x32xi32>
    %53 = arith.cmpi sge, %18, %52 : vector<16x16x32xi32>
    %c14_i32_27 = arith.constant 14 : i32
    %54 = vector.broadcast %c14_i32_27 : i32 to vector<16x16x32xi32>
    %55 = arith.cmpi slt, %18, %54 : vector<16x16x32xi32>
    %56 = arith.andi %53, %55 : vector<16x16x32xi1>
    %cst_28 = arith.constant 0.000000e+00 : f32
    %57 = vector.broadcast %cst_28 : f32 to vector<16x16x32xf32>
    %58 = arith.select %56, %51, %57 : vector<16x16x32xi1>, vector<16x16x32xf32>
    %59 = arith.truncf %58 : vector<16x16x32xf32> to vector<16x16x32xbf16>
    %c2_29 = arith.constant 2 : index
    %c0_30 = arith.constant 0 : index
    %c128 = arith.constant 128 : index
    %60 = vector.load %arg9[%c2_29, %c0_30, %c128] : memref<20x16x160xbf16, #tpu.memory_space<vmem>>, vector<16x16x32xbf16>
    tpu.vector_store %arg9[%c2_29, %c0_30, %c128], %59 {strides = array<i32>} : memref<20x16x160xbf16, #tpu.memory_space<vmem>>, vector<16x16x32xbf16>,
    %cst_31 = arith.constant 0.000000e+00 : bf16
    %61 = vector.broadcast %cst_31 : bf16 to vector<2x16x160xbf16>
    %c0_32 = arith.constant 0 : index
    %c0_33 = arith.constant 0 : index
    %c0_34 = arith.constant 0 : index
    %62 = vector.load %arg9[%c0_32, %c0_33, %c0_34] : memref<20x16x160xbf16, #tpu.memory_space<vmem>>, vector<2x16x160xbf16>
    tpu.vector_store %arg9[%c0_32, %c0_33, %c0_34], %61 {strides = array<i32>} : memref<20x16x160xbf16, #tpu.memory_space<vmem>>, vector<2x16x160xbf16>,
    %c18 = arith.constant 18 : index
    %c0_35 = arith.constant 0 : index
    %c0_36 = arith.constant 0 : index
    %63 = vector.load %arg9[%c18, %c0_35, %c0_36] : memref<20x16x160xbf16, #tpu.memory_space<vmem>>, vector<2x16x160xbf16>
    tpu.vector_store %arg9[%c18, %c0_35, %c0_36], %61 {strides = array<i32>} : memref<20x16x160xbf16, #tpu.memory_space<vmem>>, vector<2x16x160xbf16>,
    %c0_37 = arith.constant 0 : index
    %c0_38 = arith.constant 0 : index
    %c0_39 = arith.constant 0 : index
    %64 = vector.load %arg9[%c0_37, %c0_38, %c0_39] : memref<20x16x160xbf16, #tpu.memory_space<vmem>>, vector<16x16x160xbf16>
    %65 = vector.shape_cast %64 : vector<16x16x160xbf16> to vector<256x160xbf16>
    %c0_40 = arith.constant 0 : index
    %c0_41 = arith.constant 0 : index
    %c0_42 = arith.constant 0 : index
    %66 = vector.load %arg6[%c0_40, %c0_41, %c0_42] : memref<5x160x3xbf16, #tpu.memory_space<vmem>>, vector<1x160x3xbf16>
    %67 = vector.shape_cast %66 : vector<1x160x3xbf16> to vector<160x3xbf16>
    %cst_43 = arith.constant dense<0.000000e+00> : vector<256x3xf32>
    %68 = tpu.matmul %65, %67, %cst_43 {dimension_numbers = #tpu.dot_dimension_numbers<[1], [0], [0], [1], [0, 0, 1, 1], [], []>} : vector<256x160xbf16>, vector<160x3xbf16>, vector<256x3xf32> -> vector<256x3xf32>
    %c1 = arith.constant 1 : index
    %c0_44 = arith.constant 0 : index
    %c0_45 = arith.constant 0 : index
    %69 = vector.load %arg9[%c1, %c0_44, %c0_45] : memref<20x16x160xbf16, #tpu.memory_space<vmem>>, vector<16x16x160xbf16>
    %70 = vector.shape_cast %69 : vector<16x16x160xbf16> to vector<256x160xbf16>
    %c1_46 = arith.constant 1 : index
    %c0_47 = arith.constant 0 : index
    %c0_48 = arith.constant 0 : index
    %71 = vector.load %arg6[%c1_46, %c0_47, %c0_48] : memref<5x160x3xbf16, #tpu.memory_space<vmem>>, vector<1x160x3xbf16>
    %72 = vector.shape_cast %71 : vector<1x160x3xbf16> to vector<160x3xbf16>
    %cst_49 = arith.constant dense<0.000000e+00> : vector<256x3xf32>
    %73 = tpu.matmul %70, %72, %cst_49 {dimension_numbers = #tpu.dot_dimension_numbers<[1], [0], [0], [1], [0, 0, 1, 1], [], []>} : vector<256x160xbf16>, vector<160x3xbf16>, vector<256x3xf32> -> vector<256x3xf32>
    %74 = arith.addf %68, %73 : vector<256x3xf32>
    %c2_50 = arith.constant 2 : index
    %c0_51 = arith.constant 0 : index
    %c0_52 = arith.constant 0 : index
    %75 = vector.load %arg9[%c2_50, %c0_51, %c0_52] : memref<20x16x160xbf16, #tpu.memory_space<vmem>>, vector<16x16x160xbf16>
    %76 = vector.shape_cast %75 : vector<16x16x160xbf16> to vector<256x160xbf16>
    %c2_53 = arith.constant 2 : index
    %c0_54 = arith.constant 0 : index
    %c0_55 = arith.constant 0 : index
    %77 = vector.load %arg6[%c2_53, %c0_54, %c0_55] : memref<5x160x3xbf16, #tpu.memory_space<vmem>>, vector<1x160x3xbf16>
    %78 = vector.shape_cast %77 : vector<1x160x3xbf16> to vector<160x3xbf16>
    %cst_56 = arith.constant dense<0.000000e+00> : vector<256x3xf32>
    %79 = tpu.matmul %76, %78, %cst_56 {dimension_numbers = #tpu.dot_dimension_numbers<[1], [0], [0], [1], [0, 0, 1, 1], [], []>} : vector<256x160xbf16>, vector<160x3xbf16>, vector<256x3xf32> -> vector<256x3xf32>
    %80 = arith.addf %74, %79 : vector<256x3xf32>
    %c3 = arith.constant 3 : index
    %c0_57 = arith.constant 0 : index
    %c0_58 = arith.constant 0 : index
    %81 = vector.load %arg9[%c3, %c0_57, %c0_58] : memref<20x16x160xbf16, #tpu.memory_space<vmem>>, vector<16x16x160xbf16>
    %82 = vector.shape_cast %81 : vector<16x16x160xbf16> to vector<256x160xbf16>
    %c3_59 = arith.constant 3 : index
    %c0_60 = arith.constant 0 : index
    %c0_61 = arith.constant 0 : index
    %83 = vector.load %arg6[%c3_59, %c0_60, %c0_61] : memref<5x160x3xbf16, #tpu.memory_space<vmem>>, vector<1x160x3xbf16>
    %84 = vector.shape_cast %83 : vector<1x160x3xbf16> to vector<160x3xbf16>
    %cst_62 = arith.constant dense<0.000000e+00> : vector<256x3xf32>
    %85 = tpu.matmul %82, %84, %cst_62 {dimension_numbers = #tpu.dot_dimension_numbers<[1], [0], [0], [1], [0, 0, 1, 1], [], []>} : vector<256x160xbf16>, vector<160x3xbf16>, vector<256x3xf32> -> vector<256x3xf32>
    %86 = arith.addf %80, %85 : vector<256x3xf32>
    %c4 = arith.constant 4 : index
    %c0_63 = arith.constant 0 : index
    %c0_64 = arith.constant 0 : index
    %87 = vector.load %arg9[%c4, %c0_63, %c0_64] : memref<20x16x160xbf16, #tpu.memory_space<vmem>>, vector<16x16x160xbf16>
    %88 = vector.shape_cast %87 : vector<16x16x160xbf16> to vector<256x160xbf16>
    %c4_65 = arith.constant 4 : index
    %c0_66 = arith.constant 0 : index
    %c0_67 = arith.constant 0 : index
    %89 = vector.load %arg6[%c4_65, %c0_66, %c0_67] : memref<5x160x3xbf16, #tpu.memory_space<vmem>>, vector<1x160x3xbf16>
    %90 = vector.shape_cast %89 : vector<1x160x3xbf16> to vector<160x3xbf16>
    %cst_68 = arith.constant dense<0.000000e+00> : vector<256x3xf32>
    %91 = tpu.matmul %88, %90, %cst_68 {dimension_numbers = #tpu.dot_dimension_numbers<[1], [0], [0], [1], [0, 0, 1, 1], [], []>} : vector<256x160xbf16>, vector<160x3xbf16>, vector<256x3xf32> -> vector<256x3xf32>
    %92 = arith.addf %86, %91 : vector<256x3xf32>
    %c0_69 = arith.constant 0 : index
    %c0_70 = arith.constant 0 : index
    %93 = vector.load %arg7[%c0_69, %c0_70] : memref<1x3xf32, #tpu.memory_space<vmem>>, vector<1x3xf32>
    %94 = vector.broadcast %93 : vector<1x3xf32> to vector<256x3xf32>
    %95 = arith.addf %92, %94 : vector<256x3xf32>
    %cst_71 = arith.constant 0.000000e+00 : f32
    %96 = vector.broadcast %cst_71 : f32 to vector<256x3xf32>
    %97 = arith.maximumf %95, %96 : vector<256x3xf32>
    %cst_72 = arith.constant 9.99999996E-13 : f32
    %cst_73 = arith.constant 1.000000e+00 : f32
    %98 = vector.broadcast %cst_72 : f32 to vector<256x3xf32>
    %99 = arith.maximumf %98, %97 : vector<256x3xf32>
    %100 = vector.broadcast %cst_73 : f32 to vector<256x3xf32>
    %101 = arith.minimumf %100, %99 : vector<256x3xf32>
    %102 = tpu.transpose %101, [1, 0] : vector<256x3xf32> -> vector<3x256xf32>
    %c0_74 = arith.constant 0 : index
    %c0_75 = arith.constant 0 : index
    %c0_76 = arith.constant 0 : index
    %103 = vector.load %arg8[%c0_74, %c0_75, %c0_76] : memref<1x3x256xf32, #tpu.memory_space<vmem>>, vector<1x3x256xf32>
    %104 = vector.shape_cast %103 : vector<1x3x256xf32> to vector<3x256xf32>
    %105 = vector.shape_cast %102 : vector<3x256xf32> to vector<1x3x256xf32>
    tpu.vector_store %arg8[%c0_74, %c0_75, %c0_76], %105 {strides = array<i32>} : memref<1x3x256xf32, #tpu.memory_space<vmem>>, vector<1x3x256xf32>,
    return
  }
  func.func @transform_0(%arg0: i32) -> (i32, i32, i32) {
    %c0_i32 = arith.constant 0 : i32
    %c0_i32_0 = arith.constant 0 : i32
    %c0_i32_1 = arith.constant 0 : i32
    return %arg0, %c0_i32, %c0_i32_0 : i32, i32, i32
  }
  func.func @transform_1(%arg0: i32) -> (i32, i32) {
    %c0_i32 = arith.constant 0 : i32
    %c0_i32_0 = arith.constant 0 : i32
    %c0_i32_1 = arith.constant 0 : i32
    return %c0_i32, %c0_i32_0 : i32, i32
  }
  func.func @transform_2(%arg0: i32) -> (i32, i32) {
    %c0_i32 = arith.constant 0 : i32
    %c0_i32_0 = arith.constant 0 : i32
    %c0_i32_1 = arith.constant 0 : i32
    return %c0_i32, %c0_i32_0 : i32, i32
  }
  func.func @transform_3(%arg0: i32) -> (i32, i32) {
    %c0_i32 = arith.constant 0 : i32
    %c0_i32_0 = arith.constant 0 : i32
    %c0_i32_1 = arith.constant 0 : i32
    return %c0_i32, %c0_i32_0 : i32, i32
  }
  func.func @transform_4(%arg0: i32) -> (i32, i32) {
    %c0_i32 = arith.constant 0 : i32
    %c0_i32_0 = arith.constant 0 : i32
    %c0_i32_1 = arith.constant 0 : i32
    return %c0_i32, %c0_i32_0 : i32, i32
  }
  func.func @transform_5(%arg0: i32) -> (i32, i32, i32) {
    %c0_i32 = arith.constant 0 : i32
    %c0_i32_0 = arith.constant 0 : i32
    %c0_i32_1 = arith.constant 0 : i32
    %c0_i32_2 = arith.constant 0 : i32
    return %c0_i32, %c0_i32_0, %c0_i32_1 : i32, i32, i32
  }
  func.func @transform_6(%arg0: i32) -> (i32, i32) {
    %c0_i32 = arith.constant 0 : i32
    %c0_i32_0 = arith.constant 0 : i32
    %c0_i32_1 = arith.constant 0 : i32
    return %c0_i32, %c0_i32_0 : i32, i32
  }
  func.func @transform_7(%arg0: i32) -> (i32, i32, i32) {
    %c0_i32 = arith.constant 0 : i32
    %c0_i32_0 = arith.constant 0 : i32
    %c0_i32_1 = arith.constant 0 : i32
    return %arg0, %c0_i32, %c0_i32_0 : i32, i32, i32
  }
}

</mosaic_0001>

<llo_original>
// kernel: model_forward.1
$region0: #{model_forward.1}
  #allocation0 [shape = 'u32[]', space=smem, size = 0x4, offset = 0x4, fixed_abs, tag = 'smem constant byte address 0x4 - core index']
  #allocation1 [shape = 'u32[144,128]{1,0:T(1,128)}', space=vmem, size = 0x12000, scoped, tag = 'internal scratch']
  #allocation2 [shape = 'bf16[20,16,160]{2,1,0:T(16,128)(2,1)}', space=vmem, size = 0x28000, scoped, tag = 'scratch operand']
  %s0 = inlined_call_operand.vmem [shape: bf16[2,256,256], index: 0, kind: input, shape index: {}]
  %s1 = inlined_call_operand.vmem [shape: bf16[256,64], index: 1, kind: input, shape index: {}]
  %s2 = inlined_call_operand.vmem [shape: f32[1,64], index: 2, kind: input, shape index: {}]
  %s3 = inlined_call_operand.vmem [shape: bf16[64,32], index: 3, kind: input, shape index: {}]
  %s4 = inlined_call_operand.vmem [shape: f32[1,32], index: 4, kind: input, shape index: {}]
  %s5 = inlined_call_operand.vmem [shape: bf16[5,160,3], index: 5, kind: input, shape index: {}]
  %s6 = inlined_call_operand.vmem [shape: f32[1,3], index: 6, kind: input, shape index: {}]
  %s7 = inlined_call_operand.vmem [shape: f32[2,3,256], index: 7, kind: output, shape index: {}]
  %s8 = sld [smem:[#allocation0]]
  $region61: #{model_forward.1} parent=0
    _
  %s10 = ssub.s32 1, %s8
  %s11 = scalar_select 0, %s10, %s8
  loop: start=0, step=1, limit=4
  $region2: #{model_forward.1} parent=0 // loop_pre_header
    _
  $region3: #{model_forward.1} parent=0 // loop_header
    %s13 = sphi 0, %s17
    %p14 = scmp.ge.s32.totalorder %s13, 4
    %s23 = sphi 0, %s25
    %s26 = sphi 0, %s23
    %s27 = sphi 0, %s26
    %s43 = sphi 0, %s27
    %s47 = sphi 0, %s47
    %s49 = sphi 0, %s47
    %s50 = sphi 0, %s49
    %s64 = sphi 0, %s50
    %s68 = sphi 0, %s68
    %s70 = sphi 0, %s68
    %s71 = sphi 0, %s70
    %s85 = sphi 0, %s71
    %s89 = sphi 0, %s89
    %s91 = sphi 0, %s89
    %s92 = sphi 0, %s91
    %s106 = sphi 0, %s92
    %s110 = sphi 0, %s110
    %s112 = sphi 0, %s110
    %s113 = sphi 0, %s112
    %s127 = sphi 0, %s113
    %s131 = sphi 0, %s131
    %s133 = sphi 0, %s131
    %s134 = sphi 0, %s133
    %s148 = sphi 0, %s134
    %s152 = sphi 0, %s152
    %s154 = sphi 0, %s152
    %s155 = sphi 0, %s154
    %s169 = sphi 0, %s155
    %s175 = sphi 0, %s177
    %s178 = sphi 0, %s175
    %s179 = sphi 0, %s178
    %s195 = sphi 0, %s179
  $region4: #{model_forward.1} parent=0 // loop_header_branch
    %16 = sbr.rel (%p14) target = $region8
  $region5: #{model_forward.1} parent=0 // loop_body
    %s18 = ssub.s32 %s13, 1
    %s19 = ssub.s32 %s13, 2
    %s20 = sadd.s32 %s13, 1
    %s21 = ssub.s32 %s13, %s20
    %p22 = scmp.eq.s32.totalorder %s21, 0
    %s24 = sadd.s32 %s23, 1
    %s25 = scalar_select %p22, %s23, %s24
    %p28 = pneg %p22
    %p29 = scmp.eq.s32.totalorder %s13, 1
    %p30 = por %p28, %p29
    %p31 = scmp.ne.s32.totalorder %s23, %s26
    %p32 = scmp.eq.s32.totalorder %s13, 0
    %p33 = por %p31, %p32
    %p34 = scmp.ne.s32.totalorder %s23, %s26
    %p35 = scmp.eq.s32.totalorder %s18, 1
    %p36 = por %p34, %p35
    %p37 = scmp.ne.s32.totalorder %s26, %s27
    %p38 = scmp.eq.s32.totalorder %s18, 0
    %p39 = por %p37, %p38
    %p40 = scmp.ne.s32.totalorder %s26, %s27
    %p41 = scmp.eq.s32.totalorder %s19, 1
    %p42 = por %p40, %p41
    %p44 = scmp.ne.s32.totalorder %s27, %s43
    %p45 = scmp.eq.s32.totalorder %s19, 0
    %p46 = por %p44, %p45
    %s48 = sadd.s32 %s47, 1
    %p51 = scmp.eq.s32.totalorder %s13, 1
    %p52 = scmp.ne.s32.totalorder %s47, %s49
    %p53 = scmp.eq.s32.totalorder %s13, 0
    %p54 = por %p52, %p53
    %p55 = scmp.ne.s32.totalorder %s47, %s49
    %p56 = scmp.eq.s32.totalorder %s18, 1
    %p57 = por %p55, %p56
    %p58 = scmp.ne.s32.totalorder %s49, %s50
    %p59 = scmp.eq.s32.totalorder %s18, 0
    %p60 = por %p58, %p59
    %p61 = scmp.ne.s32.totalorder %s49, %s50
    %p62 = scmp.eq.s32.totalorder %s19, 1
    %p63 = por %p61, %p62
    %p65 = scmp.ne.s32.totalorder %s50, %s64
    %p66 = scmp.eq.s32.totalorder %s19, 0
    %p67 = por %p65, %p66
    %s69 = sadd.s32 %s68, 1
    %p72 = scmp.eq.s32.totalorder %s13, 1
    %p73 = scmp.ne.s32.totalorder %s68, %s70
    %p74 = scmp.eq.s32.totalorder %s13, 0
    %p75 = por %p73, %p74
    %p76 = scmp.ne.s32.totalorder %s68, %s70
    %p77 = scmp.eq.s32.totalorder %s18, 1
    %p78 = por %p76, %p77
    %p79 = scmp.ne.s32.totalorder %s70, %s71
    %p80 = scmp.eq.s32.totalorder %s18, 0
    %p81 = por %p79, %p80
    %p82 = scmp.ne.s32.totalorder %s70, %s71
    %p83 = scmp.eq.s32.totalorder %s19, 1
    %p84 = por %p82, %p83
    %p86 = scmp.ne.s32.totalorder %s71, %s85
    %p87 = scmp.eq.s32.totalorder %s19, 0
    %p88 = por %p86, %p87
    %s90 = sadd.s32 %s89, 1
    %p93 = scmp.eq.s32.totalorder %s13, 1
    %p94 = scmp.ne.s32.totalorder %s89, %s91
    %p95 = scmp.eq.s32.totalorder %s13, 0
    %p96 = por %p94, %p95
    %p97 = scmp.ne.s32.totalorder %s89, %s91
    %p98 = scmp.eq.s32.totalorder %s18, 1
    %p99 = por %p97, %p98
    %p100 = scmp.ne.s32.totalorder %s91, %s92
    %p101 = scmp.eq.s32.totalorder %s18, 0
    %p102 = por %p100, %p101
    %p103 = scmp.ne.s32.totalorder %s91, %s92
    %p104 = scmp.eq.s32.totalorder %s19, 1
    %p105 = por %p103, %p104
    %p107 = scmp.ne.s32.totalorder %s92, %s106
    %p108 = scmp.eq.s32.totalorder %s19, 0
    %p109 = por %p107, %p108
    %s111 = sadd.s32 %s110, 1
    %p114 = scmp.eq.s32.totalorder %s13, 1
    %p115 = scmp.ne.s32.totalorder %s110, %s112
    %p116 = scmp.eq.s32.totalorder %s13, 0
    %p117 = por %p115, %p116
    %p118 = scmp.ne.s32.totalorder %s110, %s112
    %p119 = scmp.eq.s32.totalorder %s18, 1
    %p120 = por %p118, %p119
    %p121 = scmp.ne.s32.totalorder %s112, %s113
    %p122 = scmp.eq.s32.totalorder %s18, 0
    %p123 = por %p121, %p122
    %p124 = scmp.ne.s32.totalorder %s112, %s113
    %p125 = scmp.eq.s32.totalorder %s19, 1
    %p126 = por %p124, %p125
    %p128 = scmp.ne.s32.totalorder %s113, %s127
    %p129 = scmp.eq.s32.totalorder %s19, 0
    %p130 = por %p128, %p129
    %s132 = sadd.s32 %s131, 1
    %p135 = scmp.eq.s32.totalorder %s13, 1
    %p136 = scmp.ne.s32.totalorder %s131, %s133
    %p137 = scmp.eq.s32.totalorder %s13, 0
    %p138 = por %p136, %p137
    %p139 = scmp.ne.s32.totalorder %s131, %s133
    %p140 = scmp.eq.s32.totalorder %s18, 1
    %p141 = por %p139, %p140
    %p142 = scmp.ne.s32.totalorder %s133, %s134
    %p143 = scmp.eq.s32.totalorder %s18, 0
    %p144 = por %p142, %p143
    %p145 = scmp.ne.s32.totalorder %s133, %s134
    %p146 = scmp.eq.s32.totalorder %s19, 1
    %p147 = por %p145, %p146
    %p149 = scmp.ne.s32.totalorder %s134, %s148
    %p150 = scmp.eq.s32.totalorder %s19, 0
    %p151 = por %p149, %p150
    %s153 = sadd.s32 %s152, 1
    %p156 = scmp.eq.s32.totalorder %s13, 1
    %p157 = scmp.ne.s32.totalorder %s152, %s154
    %p158 = scmp.eq.s32.totalorder %s13, 0
    %p159 = por %p157, %p158
    %p160 = scmp.ne.s32.totalorder %s152, %s154
    %p161 = scmp.eq.s32.totalorder %s18, 1
    %p162 = por %p160, %p161
    %p163 = scmp.ne.s32.totalorder %s154, %s155
    %p164 = scmp.eq.s32.totalorder %s18, 0
    %p165 = por %p163, %p164
    %p166 = scmp.ne.s32.totalorder %s154, %s155
    %p167 = scmp.eq.s32.totalorder %s19, 1
    %p168 = por %p166, %p167
    %p170 = scmp.ne.s32.totalorder %s155, %s169
    %p171 = scmp.eq.s32.totalorder %s19, 0
    %p172 = por %p170, %p171
    %s173 = ssub.s32 %s13, %s20
    %p174 = scmp.eq.s32.totalorder %s173, 0
    %s176 = sadd.s32 %s175, 1
    %s177 = scalar_select %p174, %s175, %s176
    %p180 = pneg %p174
    %p181 = scmp.eq.s32.totalorder %s13, 1
    %p182 = por %p180, %p181
    %p183 = scmp.ne.s32.totalorder %s175, %s178
    %p184 = scmp.eq.s32.totalorder %s13, 0
    %p185 = por %p183, %p184
    %p186 = scmp.ne.s32.totalorder %s175, %s178
    %p187 = scmp.eq.s32.totalorder %s18, 1
    %p188 = por %p186, %p187
    %p189 = scmp.ne.s32.totalorder %s178, %s179
    %p190 = scmp.eq.s32.totalorder %s18, 0
    %p191 = por %p189, %p190
    %p192 = scmp.ne.s32.totalorder %s178, %s179
    %p193 = scmp.eq.s32.totalorder %s19, 1
    %p194 = por %p192, %p193
    %p196 = scmp.ne.s32.totalorder %s179, %s195
    %p197 = scmp.eq.s32.totalorder %s19, 0
    %p198 = por %p196, %p197
    %p199 = scmp.le.s32.totalorder 1, %s13
    %p200 = scmp.lt.s32.totalorder %s13, 3
    %p201 = pnand %p199, %p200
    %p202 = pneg %p201
    // Predicated region
    $region9: #{model_forward.1} parent=5 // pred_check
      _
    $region10: #{model_forward.1} parent=5 // pred_check_branch
      %204 = sbr.rel (%p201) target = $region12
    $region11: #{model_forward.1} parent=5 // pred_region
      %s205 = ssub.s32 %s13, 1
      // Predicated region
      $region13: #{model_forward.1} parent=11 // pred_check
        %p206 = pneg %p60
      $region14: #{model_forward.1} parent=11 // pred_check_branch
        %208 = sbr.rel (%p206) target = $region16
      $region15: #{model_forward.1} parent=11 // pred_region
        _
      $region16: #{model_forward.1} parent=11 // pred_fallthru
        _
      // Predicated region
      $region17: #{model_forward.1} parent=11 // pred_check
        %p209 = pneg %p81
      $region18: #{model_forward.1} parent=11 // pred_check_branch
        %211 = sbr.rel (%p209) target = $region20
      $region19: #{model_forward.1} parent=11 // pred_region
        _
      $region20: #{model_forward.1} parent=11 // pred_fallthru
        _
      // Predicated region
      $region21: #{model_forward.1} parent=11 // pred_check
        %p212 = pneg %p102
      $region22: #{model_forward.1} parent=11 // pred_check_branch
        %214 = sbr.rel (%p212) target = $region24
      $region23: #{model_forward.1} parent=11 // pred_region
        _
      $region24: #{model_forward.1} parent=11 // pred_fallthru
        _
      // Predicated region
      $region25: #{model_forward.1} parent=11 // pred_check
        %p215 = pneg %p123
      $region26: #{model_forward.1} parent=11 // pred_check_branch
        %217 = sbr.rel (%p215) target = $region28
      $region27: #{model_forward.1} parent=11 // pred_region
        _
      $region28: #{model_forward.1} parent=11 // pred_fallthru
        _
      // Predicated region
      $region29: #{model_forward.1} parent=11 // pred_check
        %p218 = pneg %p144
      $region30: #{model_forward.1} parent=11 // pred_check_branch
        %220 = sbr.rel (%p218) target = $region32
      $region31: #{model_forward.1} parent=11 // pred_region
        _
      $region32: #{model_forward.1} parent=11 // pred_fallthru
        _
      // Predicated region
      $region33: #{model_forward.1} parent=11 // pred_check
        %p221 = pneg %p165
      $region34: #{model_forward.1} parent=11 // pred_check_branch
        %223 = sbr.rel (%p221) target = $region36
      $region35: #{model_forward.1} parent=11 // pred_region
        _
      $region36: #{model_forward.1} parent=11 // pred_fallthru
        _
    $region12: #{model_forward.1} parent=5 // pred_fallthru
      _
    %p224 = scmp.lt.s32.totalorder %s13, 2
    // Predicated region
    $region37: #{model_forward.1} parent=5 // pred_check
      %p225 = pneg %p224
    $region38: #{model_forward.1} parent=5 // pred_check_branch
      %227 = sbr.rel (%p225) target = $region40
    $region39: #{model_forward.1} parent=5 // pred_region
      // Predicated region
      $region41: #{model_forward.1} parent=39 // pred_check
        %p228 = pneg %p33
      $region42: #{model_forward.1} parent=39 // pred_check_branch
        %230 = sbr.rel (%p228) target = $region44
      $region43: #{model_forward.1} parent=39 // pred_region
        %p231 = scmp.lt.s32.totalorder %s13, 1
        %s232 = scalar_select %p231, %s13, 1
        %s233 = smul.addr %s232, 64
        %s234 = smul.addr %s233, 4
        %s235 = scalar_lea.vmem %s0, %s234
      $region44: #{model_forward.1} parent=39 // pred_fallthru
        _
    $region40: #{model_forward.1} parent=5 // pred_fallthru
      _
    %p236 = scmp.le.s32.totalorder 1, %s13
    %p237 = scmp.lt.s32.totalorder %s13, 3
    %p238 = pnand %p236, %p237
    %p239 = pneg %p238
    // Predicated region
    $region45: #{model_forward.1} parent=5 // pred_check
      _
    $region46: #{model_forward.1} parent=5 // pred_check_branch
      %241 = sbr.rel (%p238) target = $region48
    $region47: #{model_forward.1} parent=5 // pred_region
      %s242 = ssub.s32 %s13, 1
      %p243 = scmp.lt.s32.totalorder %s18, 1
      %s244 = scalar_select %p243, %s18, 1
      %s245 = smul.addr %s244, 64
      %s246 = smul.addr %s245, 4
      %s247 = scalar_lea.vmem %s0, %s246
      %p248 = pneg %p39
      %p249 = pneg %p36
      %p250 = pneg %p60
      %p251 = pneg %p57
      %p252 = pneg %p81
      %p253 = pneg %p78
      %p254 = pneg %p102
      %p255 = pneg %p99
      %p256 = pneg %p123
      %p257 = pneg %p120
      %p258 = pneg %p144
      %p259 = pneg %p141
      %p260 = pneg %p165
      %p261 = pneg %p162
      %p262 = pneg %p191
      %p263 = pneg %p188
      %p264 = scmp.lt.s32.totalorder %s18, 1
      %s265 = scalar_select %p264, %s18, 1
      %s266 = smul.addr %s265, 2
      %s267 = smul.addr %s266, 4
      %s268 = scalar_lea.vmem %s7, %s267
      %p269 = scmp.lt.s32.totalorder %s18, 1
      %s270 = scalar_select %p269, %s18, 1
      %s271 = smul.addr %s270, 64
      %s272 = smul.addr %s271, 4
      %s273 = scalar_lea.vmem %s0, %s272
      %p274 = scmp.lt.s32.totalorder %s18, 1
      %s275 = scalar_select %p274, %s18, 1
      %s276 = smul.addr %s275, 2
      %s277 = smul.addr %s276, 4
      %s278 = scalar_lea.vmem %s7, %s277
      %v280 = vld [vmem:[%s273] sm:$0xff]
      %v281 = vld [vmem:[%s273 + $0x8] sm:$0xff]
      %v282 = vld [vmem:[%s273 + $0x10] sm:$0xff]
      %v283 = vld [vmem:[%s273 + $0x18] sm:$0xff]
      %v284 = vld [vmem:[%s273 + $0x20] sm:$0xff]
      %v285 = vld [vmem:[%s273 + $0x28] sm:$0xff]
      %v286 = vld [vmem:[%s273 + $0x30] sm:$0xff]
      %v287 = vld [vmem:[%s273 + $0x38] sm:$0xff]
      %v288 = vld [vmem:[%s273 + $0x40] sm:$0xff]
      %v289 = vld [vmem:[%s273 + $0x48] sm:$0xff]
      %v290 = vld [vmem:[%s273 + $0x50] sm:$0xff]
      %v291 = vld [vmem:[%s273 + $0x58] sm:$0xff]
      %v292 = vld [vmem:[%s273 + $0x60] sm:$0xff]
      %v293 = vld [vmem:[%s273 + $0x68] sm:$0xff]
      %v294 = vld [vmem:[%s273 + $0x70] sm:$0xff]
      %v295 = vld [vmem:[%s273 + $0x78] sm:$0xff]
      %v296 = vld [vmem:[%s273 + $0x80] sm:$0xff]
      %v297 = vld [vmem:[%s273 + $0x88] sm:$0xff]
      %v298 = vld [vmem:[%s273 + $0x90] sm:$0xff]
      %v299 = vld [vmem:[%s273 + $0x98] sm:$0xff]
      %v300 = vld [vmem:[%s273 + $0xa0] sm:$0xff]
      %v301 = vld [vmem:[%s273 + $0xa8] sm:$0xff]
      %v302 = vld [vmem:[%s273 + $0xb0] sm:$0xff]
      %v303 = vld [vmem:[%s273 + $0xb8] sm:$0xff]
      %v304 = vld [vmem:[%s273 + $0xc0] sm:$0xff]
      %v305 = vld [vmem:[%s273 + $0xc8] sm:$0xff]
      %v306 = vld [vmem:[%s273 + $0xd0] sm:$0xff]
      %v307 = vld [vmem:[%s273 + $0xd8] sm:$0xff]
      %v308 = vld [vmem:[%s273 + $0xe0] sm:$0xff]
      %v309 = vld [vmem:[%s273 + $0xe8] sm:$0xff]
      %v310 = vld [vmem:[%s273 + $0xf0] sm:$0xff]
      %v311 = vld [vmem:[%s273 + $0xf8] sm:$0xff]
      %v312 = vld [vmem:[%s1] sm:$0xf]
      %v313 = vld [vmem:[%s1 + $0x4] sm:$0xf]
      %v314 = vld [vmem:[%s1 + $0x8] sm:$0xf]
      %v315 = vld [vmem:[%s1 + $0xc] sm:$0xf]
      %v316 = vld [vmem:[%s1 + $0x10] sm:$0xf]
      %v317 = vld [vmem:[%s1 + $0x14] sm:$0xf]
      %v318 = vld [vmem:[%s1 + $0x18] sm:$0xf]
      %v319 = vld [vmem:[%s1 + $0x1c] sm:$0xf]
      %v320 = vld [vmem:[%s1 + $0x20] sm:$0xf]
      %v321 = vld [vmem:[%s1 + $0x24] sm:$0xf]
      %v322 = vld [vmem:[%s1 + $0x28] sm:$0xf]
      %v323 = vld [vmem:[%s1 + $0x2c] sm:$0xf]
      %v324 = vld [vmem:[%s1 + $0x30] sm:$0xf]
      %v325 = vld [vmem:[%s1 + $0x34] sm:$0xf]
      %v326 = vld [vmem:[%s1 + $0x38] sm:$0xf]
      %v327 = vld [vmem:[%s1 + $0x3c] sm:$0xf]
      %v328 = vld [vmem:[%s1 + $0x40] sm:$0xf]
      %v329 = vld [vmem:[%s1 + $0x44] sm:$0xf]
      %v330 = vld [vmem:[%s1 + $0x48] sm:$0xf]
      %v331 = vld [vmem:[%s1 + $0x4c] sm:$0xf]
      %v332 = vld [vmem:[%s1 + $0x50] sm:$0xf]
      %v333 = vld [vmem:[%s1 + $0x54] sm:$0xf]
      %v334 = vld [vmem:[%s1 + $0x58] sm:$0xf]
      %v335 = vld [vmem:[%s1 + $0x5c] sm:$0xf]
      %v336 = vld [vmem:[%s1 + $0x60] sm:$0xf]
      %v337 = vld [vmem:[%s1 + $0x64] sm:$0xf]
      %v338 = vld [vmem:[%s1 + $0x68] sm:$0xf]
      %v339 = vld [vmem:[%s1 + $0x6c] sm:$0xf]
      %v340 = vld [vmem:[%s1 + $0x70] sm:$0xf]
      %v341 = vld [vmem:[%s1 + $0x74] sm:$0xf]
      %v342 = vld [vmem:[%s1 + $0x78] sm:$0xf]
      %v343 = vld [vmem:[%s1 + $0x7c] sm:$0xf]
      %v344 = vld [vmem:[%s2] sm:$0x1]
      %v346 = vlaneseq
      %v347 = vshrl.u32 %v346, 7
      %v348 = vsub.s32 0, %v347
      %v349 = vrot.slane %v344, %v348
      %v383 = vunpack.c.l.b16 %v280
      %v384 = vunpack.c.h.b16 %v280
      %v385 = vunpack.c.l.b16 %v281
      %v386 = vunpack.c.h.b16 %v281
      %v387 = vunpack.c.l.b16 %v282
      %v388 = vunpack.c.h.b16 %v282
      %v389 = vunpack.c.l.b16 %v283
      %v390 = vunpack.c.h.b16 %v283
      %v391 = vunpack.c.l.b16 %v284
      %v392 = vunpack.c.h.b16 %v284
      %v393 = vunpack.c.l.b16 %v285
      %v394 = vunpack.c.h.b16 %v285
      %v395 = vunpack.c.l.b16 %v286
      %v396 = vunpack.c.h.b16 %v286
      %v397 = vunpack.c.l.b16 %v287
      %v398 = vunpack.c.h.b16 %v287
      %v399 = vunpack.c.l.b16 %v288
      %v400 = vunpack.c.h.b16 %v288
      %v401 = vunpack.c.l.b16 %v289
      %v402 = vunpack.c.h.b16 %v289
      %v403 = vunpack.c.l.b16 %v290
      %v404 = vunpack.c.h.b16 %v290
      %v405 = vunpack.c.l.b16 %v291
      %v406 = vunpack.c.h.b16 %v291
      %v407 = vunpack.c.l.b16 %v292
      %v408 = vunpack.c.h.b16 %v292
      %v409 = vunpack.c.l.b16 %v293
      %v410 = vunpack.c.h.b16 %v293
      %v411 = vunpack.c.l.b16 %v294
      %v412 = vunpack.c.h.b16 %v294
      %v413 = vunpack.c.l.b16 %v295
      %v414 = vunpack.c.h.b16 %v295
      %v415 = vunpack.c.l.b16 %v296
      %v416 = vunpack.c.h.b16 %v296
      %v417 = vunpack.c.l.b16 %v297
      %v418 = vunpack.c.h.b16 %v297
      %v419 = vunpack.c.l.b16 %v298
      %v420 = vunpack.c.h.b16 %v298
      %v421 = vunpack.c.l.b16 %v299
      %v422 = vunpack.c.h.b16 %v299
      %v423 = vunpack.c.l.b16 %v300
      %v424 = vunpack.c.h.b16 %v300
      %v425 = vunpack.c.l.b16 %v301
      %v426 = vunpack.c.h.b16 %v301
      %v427 = vunpack.c.l.b16 %v302
      %v428 = vunpack.c.h.b16 %v302
      %v429 = vunpack.c.l.b16 %v303
      %v430 = vunpack.c.h.b16 %v303
      %v431 = vunpack.c.l.b16 %v304
      %v432 = vunpack.c.h.b16 %v304
      %v433 = vunpack.c.l.b16 %v305
      %v434 = vunpack.c.h.b16 %v305
      %v435 = vunpack.c.l.b16 %v306
      %v436 = vunpack.c.h.b16 %v306
      %v437 = vunpack.c.l.b16 %v307
      %v438 = vunpack.c.h.b16 %v307
      %v439 = vunpack.c.l.b16 %v308
      %v440 = vunpack.c.h.b16 %v308
      %v441 = vunpack.c.l.b16 %v309
      %v442 = vunpack.c.h.b16 %v309
      %v443 = vunpack.c.l.b16 %v310
      %v444 = vunpack.c.h.b16 %v310
      %v445 = vunpack.c.l.b16 %v311
      %v446 = vunpack.c.h.b16 %v311
      %v447 = vpack.c.b16 %v385, %v383
      %v448 = vpack.c.b16 %v386, %v384
      %v449 = vpack.c.b16 %v389, %v387
      %v450 = vpack.c.b16 %v390, %v388
      %v451 = vpack.c.b16 %v393, %v391
      %v452 = vpack.c.b16 %v394, %v392
      %v453 = vpack.c.b16 %v397, %v395
      %v454 = vpack.c.b16 %v398, %v396
      %v455 = vpack.c.b16 %v401, %v399
      %v456 = vpack.c.b16 %v402, %v400
      %v457 = vpack.c.b16 %v405, %v403
      %v458 = vpack.c.b16 %v406, %v404
      %v459 = vpack.c.b16 %v409, %v407
      %v460 = vpack.c.b16 %v410, %v408
      %v461 = vpack.c.b16 %v413, %v411
      %v462 = vpack.c.b16 %v414, %v412
      %v463 = vpack.c.b16 %v417, %v415
      %v464 = vpack.c.b16 %v418, %v416
      %v465 = vpack.c.b16 %v421, %v419
      %v466 = vpack.c.b16 %v422, %v420
      %v467 = vpack.c.b16 %v425, %v423
      %v468 = vpack.c.b16 %v426, %v424
      %v469 = vpack.c.b16 %v429, %v427
      %v470 = vpack.c.b16 %v430, %v428
      %v471 = vpack.c.b16 %v433, %v431
      %v472 = vpack.c.b16 %v434, %v432
      %v473 = vpack.c.b16 %v437, %v435
      %v474 = vpack.c.b16 %v438, %v436
      %v475 = vpack.c.b16 %v441, %v439
      %v476 = vpack.c.b16 %v442, %v440
      %v477 = vpack.c.b16 %v445, %v443
      %v478 = vpack.c.b16 %v446, %v444
      %v543 = vunpack.c.l.b16 %v312
      %v544 = vunpack.c.l.b16 %v313
      %v545 = vunpack.c.l.b16 %v314
      %v546 = vunpack.c.l.b16 %v315
      %v547 = vunpack.c.l.b16 %v316
      %v548 = vunpack.c.l.b16 %v317
      %v549 = vunpack.c.l.b16 %v318
      %v550 = vunpack.c.l.b16 %v319
      %v551 = vunpack.c.l.b16 %v320
      %v552 = vunpack.c.l.b16 %v321
      %v553 = vunpack.c.l.b16 %v322
      %v554 = vunpack.c.l.b16 %v323
      %v555 = vunpack.c.l.b16 %v324
      %v556 = vunpack.c.l.b16 %v325
      %v557 = vunpack.c.l.b16 %v326
      %v558 = vunpack.c.l.b16 %v327
      %v559 = vunpack.c.l.b16 %v328
      %v560 = vunpack.c.l.b16 %v329
      %v561 = vunpack.c.l.b16 %v330
      %v562 = vunpack.c.l.b16 %v331
      %v563 = vunpack.c.l.b16 %v332
      %v564 = vunpack.c.l.b16 %v333
      %v565 = vunpack.c.l.b16 %v334
      %v566 = vunpack.c.l.b16 %v335
      %v567 = vunpack.c.l.b16 %v336
      %v568 = vunpack.c.l.b16 %v337
      %v569 = vunpack.c.l.b16 %v338
      %v570 = vunpack.c.l.b16 %v339
      %v571 = vunpack.c.l.b16 %v340
      %v572 = vunpack.c.l.b16 %v341
      %v573 = vunpack.c.l.b16 %v342
      %v574 = vunpack.c.l.b16 %v343
      %v575 = vpack.c.b16 %v544, %v543
      %v576 = vpack.c.b16 %v546, %v545
      %v577 = vpack.c.b16 %v548, %v547
      %v578 = vpack.c.b16 %v550, %v549
      %v579 = vpack.c.b16 %v552, %v551
      %v580 = vpack.c.b16 %v554, %v553
      %v581 = vpack.c.b16 %v556, %v555
      %v582 = vpack.c.b16 %v558, %v557
      %v583 = vpack.c.b16 %v560, %v559
      %v584 = vpack.c.b16 %v562, %v561
      %v585 = vpack.c.b16 %v564, %v563
      %v586 = vpack.c.b16 %v566, %v565
      %v587 = vpack.c.b16 %v568, %v567
      %v588 = vpack.c.b16 %v570, %v569
      %v589 = vpack.c.b16 %v572, %v571
      %v590 = vpack.c.b16 %v574, %v573
      %607 = vmatprep.subr.bf16.mxu0 0
      %608 = vmatpush1.bf16.msra.mxu0 %v575
      %609 = vmatprep.subr.bf16.mxu0 0
      %610 = vmatpush1.bf16.msra.mxu0 %v576
      %611 = vmatprep.subr.bf16.mxu0 0
      %612 = vmatpush1.bf16.msra.mxu0 %v577
      %613 = vmatprep.subr.bf16.mxu0 0
      %614 = vmatpush1.bf16.msra.mxu0 %v578
      %615 = vmatprep.subr.bf16.mxu0 0
      %616 = vmatpush1.bf16.msra.mxu0 %v579
      %617 = vmatprep.subr.bf16.mxu0 0
      %618 = vmatpush1.bf16.msra.mxu0 %v580
      %619 = vmatprep.subr.bf16.mxu0 0
      %620 = vmatpush1.bf16.msra.mxu0 %v581
      %621 = vmatprep.subr.bf16.mxu0 0
      %622 = vmatpush1.bf16.msra.mxu0 %v582
      %623 = vmatprep.subr.bf16.mxu0 0
      %624 = vmatpush1.bf16.msra.mxu0 %v583
      %625 = vmatprep.subr.bf16.mxu0 0
      %626 = vmatpush1.bf16.msra.mxu0 %v584
      %627 = vmatprep.subr.bf16.mxu0 0
      %628 = vmatpush1.bf16.msra.mxu0 %v585
      %629 = vmatprep.subr.bf16.mxu0 0
      %630 = vmatpush1.bf16.msra.mxu0 %v586
      %631 = vmatprep.subr.bf16.mxu0 0
      %632 = vmatpush1.bf16.msra.mxu0 %v587
      %633 = vmatprep.subr.bf16.mxu0 0
      %634 = vmatpush1.bf16.msra.mxu0 %v588
      %635 = vmatprep.subr.bf16.mxu0 0
      %636 = vmatpush1.bf16.msra.mxu0 %v589
      %637 = vmatprep.subr.bf16.mxu0 0
      %638 = vmatpush1.bf16.msra.mxu0 %v590
      %639 = vmatprep.mubr.bf16.mxu0 %v448
      %640 = vmatmul.mubr.bf16.gmra.mrb[0].mxu0 %v447
      %v641 = vpop.f32.mrb[0].mxu0
      %v642 = vadd.f32 %v349, %v641
      %v643 = vpop.f32.mrb[0].mxu0
      %v644 = vpop.f32.mrb[0].mxu0
      %v645 = vadd.f32 %v349, %v644
      %v646 = vpop.f32.mrb[0].mxu0
      %647 = vmatprep.mubr.bf16.mxu0 %v450
      %648 = vmatmul.mubr.bf16.gmra.mrb[0].mxu0 %v449
      %v649 = vpop.f32.mrb[0].mxu0
      %v650 = vadd.f32 %v349, %v649
      %v651 = vpop.f32.mrb[0].mxu0
      %v652 = vpop.f32.mrb[0].mxu0
      %v653 = vadd.f32 %v349, %v652
      %v654 = vpop.f32.mrb[0].mxu0
      %655 = vmatprep.mubr.bf16.mxu0 %v452
      %656 = vmatmul.mubr.bf16.gmra.mrb[0].mxu0 %v451
      %v657 = vpop.f32.mrb[0].mxu0
      %v658 = vadd.f32 %v349, %v657
      %v659 = vpop.f32.mrb[0].mxu0
      %v660 = vpop.f32.mrb[0].mxu0
      %v661 = vadd.f32 %v349, %v660
      %v662 = vpop.f32.mrb[0].mxu0
      %663 = vmatprep.mubr.bf16.mxu0 %v454
      %664 = vmatmul.mubr.bf16.gmra.mrb[0].mxu0 %v453
      %v665 = vpop.f32.mrb[0].mxu0
      %v666 = vadd.f32 %v349, %v665
      %v667 = vpop.f32.mrb[0].mxu0
      %v668 = vpop.f32.mrb[0].mxu0
      %v669 = vadd.f32 %v349, %v668
      %v670 = vpop.f32.mrb[0].mxu0
      %671 = vmatprep.mubr.bf16.mxu0 %v456
      %672 = vmatmul.mubr.bf16.gmra.mrb[0].mxu0 %v455
      %v673 = vpop.f32.mrb[0].mxu0
      %v674 = vadd.f32 %v349, %v673
      %v675 = vpop.f32.mrb[0].mxu0
      %v676 = vpop.f32.mrb[0].mxu0
      %v677 = vadd.f32 %v349, %v676
      %v678 = vpop.f32.mrb[0].mxu0
      %679 = vmatprep.mubr.bf16.mxu0 %v458
      %680 = vmatmul.mubr.bf16.gmra.mrb[0].mxu0 %v457
      %v681 = vpop.f32.mrb[0].mxu0
      %v682 = vadd.f32 %v349, %v681
      %v683 = vpop.f32.mrb[0].mxu0
      %v684 = vpop.f32.mrb[0].mxu0
      %v685 = vadd.f32 %v349, %v684
      %v686 = vpop.f32.mrb[0].mxu0
      %687 = vmatprep.mubr.bf16.mxu0 %v460
      %688 = vmatmul.mubr.bf16.gmra.mrb[0].mxu0 %v459
      %v689 = vpop.f32.mrb[0].mxu0
      %v690 = vadd.f32 %v349, %v689
      %v691 = vpop.f32.mrb[0].mxu0
      %v692 = vpop.f32.mrb[0].mxu0
      %v693 = vadd.f32 %v349, %v692
      %v694 = vpop.f32.mrb[0].mxu0
      %695 = vmatprep.mubr.bf16.mxu0 %v462
      %696 = vmatmul.mubr.bf16.gmra.mrb[0].mxu0 %v461
      %v697 = vpop.f32.mrb[0].mxu0
      %v698 = vadd.f32 %v349, %v697
      %v699 = vpop.f32.mrb[0].mxu0
      %v700 = vpop.f32.mrb[0].mxu0
      %v701 = vadd.f32 %v349, %v700
      %v702 = vpop.f32.mrb[0].mxu0
      %703 = vmatprep.mubr.bf16.mxu0 %v464
      %704 = vmatmul.mubr.bf16.gmra.mrb[0].mxu0 %v463
      %v705 = vpop.f32.mrb[0].mxu0
      %v706 = vadd.f32 %v349, %v705
      %v707 = vpop.f32.mrb[0].mxu0
      %v708 = vpop.f32.mrb[0].mxu0
      %v709 = vadd.f32 %v349, %v708
      %v710 = vpop.f32.mrb[0].mxu0
      %711 = vmatprep.mubr.bf16.mxu0 %v466
      %712 = vmatmul.mubr.bf16.gmra.mrb[0].mxu0 %v465
      %v713 = vpop.f32.mrb[0].mxu0
      %v714 = vadd.f32 %v349, %v713
      %v715 = vpop.f32.mrb[0].mxu0
      %v716 = vpop.f32.mrb[0].mxu0
      %v717 = vadd.f32 %v349, %v716
      %v718 = vpop.f32.mrb[0].mxu0
      %719 = vmatprep.mubr.bf16.mxu0 %v468
      %720 = vmatmul.mubr.bf16.gmra.mrb[0].mxu0 %v467
      %v721 = vpop.f32.mrb[0].mxu0
      %v722 = vadd.f32 %v349, %v721
      %v723 = vpop.f32.mrb[0].mxu0
      %v724 = vpop.f32.mrb[0].mxu0
      %v725 = vadd.f32 %v349, %v724
      %v726 = vpop.f32.mrb[0].mxu0
      %727 = vmatprep.mubr.bf16.mxu0 %v470
      %728 = vmatmul.mubr.bf16.gmra.mrb[0].mxu0 %v469
      %v729 = vpop.f32.mrb[0].mxu0
      %v730 = vadd.f32 %v349, %v729
      %v731 = vpop.f32.mrb[0].mxu0
      %v732 = vpop.f32.mrb[0].mxu0
      %v733 = vadd.f32 %v349, %v732
      %v734 = vpop.f32.mrb[0].mxu0
      %735 = vmatprep.mubr.bf16.mxu0 %v472
      %736 = vmatmul.mubr.bf16.gmra.mrb[0].mxu0 %v471
      %v737 = vpop.f32.mrb[0].mxu0
      %v738 = vadd.f32 %v349, %v737
      %v739 = vpop.f32.mrb[0].mxu0
      %v740 = vpop.f32.mrb[0].mxu0
      %v741 = vadd.f32 %v349, %v740
      %v742 = vpop.f32.mrb[0].mxu0
      %743 = vmatprep.mubr.bf16.mxu0 %v474
      %744 = vmatmul.mubr.bf16.gmra.mrb[0].mxu0 %v473
      %v745 = vpop.f32.mrb[0].mxu0
      %v746 = vadd.f32 %v349, %v745
      %v747 = vpop.f32.mrb[0].mxu0
      %v748 = vpop.f32.mrb[0].mxu0
      %v749 = vadd.f32 %v349, %v748
      %v750 = vpop.f32.mrb[0].mxu0
      %751 = vmatprep.mubr.bf16.mxu0 %v476
      %752 = vmatmul.mubr.bf16.gmra.mrb[0].mxu0 %v475
      %v753 = vpop.f32.mrb[0].mxu0
      %v754 = vadd.f32 %v349, %v753
      %v755 = vpop.f32.mrb[0].mxu0
      %v756 = vpop.f32.mrb[0].mxu0
      %v757 = vadd.f32 %v349, %v756
      %v758 = vpop.f32.mrb[0].mxu0
      %759 = vmatprep.mubr.bf16.mxu0 %v478
      %760 = vmatmul.mubr.bf16.gmra.mrb[0].mxu0 %v477
      %v761 = vpop.f32.mrb[0].mxu0
      %v762 = vadd.f32 %v349, %v761
      %v763 = vpop.f32.mrb[0].mxu0
      %v764 = vpop.f32.mrb[0].mxu0
      %v765 = vadd.f32 %v349, %v764
      %v766 = vpop.f32.mrb[0].mxu0
      %767 = vdwg.mxu0
      %v768 = vmax.f32 %v642, 0.0
      %v769 = vmax.f32 %v645, 0.0
      %v770 = vmax.f32 %v650, 0.0
      %v771 = vmax.f32 %v653, 0.0
      %v772 = vmax.f32 %v658, 0.0
      %v773 = vmax.f32 %v661, 0.0
      %v774 = vmax.f32 %v666, 0.0
      %v775 = vmax.f32 %v669, 0.0
      %v776 = vmax.f32 %v674, 0.0
      %v777 = vmax.f32 %v677, 0.0
      %v778 = vmax.f32 %v682, 0.0
      %v779 = vmax.f32 %v685, 0.0
      %v780 = vmax.f32 %v690, 0.0
      %v781 = vmax.f32 %v693, 0.0
      %v782 = vmax.f32 %v698, 0.0
      %v783 = vmax.f32 %v701, 0.0
      %v784 = vmax.f32 %v706, 0.0
      %v785 = vmax.f32 %v709, 0.0
      %v786 = vmax.f32 %v714, 0.0
      %v787 = vmax.f32 %v717, 0.0
      %v788 = vmax.f32 %v722, 0.0
      %v789 = vmax.f32 %v725, 0.0
      %v790 = vmax.f32 %v730, 0.0
      %v791 = vmax.f32 %v733, 0.0
      %v792 = vmax.f32 %v738, 0.0
      %v793 = vmax.f32 %v741, 0.0
      %v794 = vmax.f32 %v746, 0.0
      %v795 = vmax.f32 %v749, 0.0
      %v796 = vmax.f32 %v754, 0.0
      %v797 = vmax.f32 %v757, 0.0
      %v798 = vmax.f32 %v762, 0.0
      %v799 = vmax.f32 %v765, 0.0
      %v800 = vpack.c.bf16 %v769, %v768
      %v801 = vpack.c.bf16 %v771, %v770
      %v802 = vpack.c.bf16 %v773, %v772
      %v803 = vpack.c.bf16 %v775, %v774
      %v804 = vpack.c.bf16 %v777, %v776
      %v805 = vpack.c.bf16 %v779, %v778
      %v806 = vpack.c.bf16 %v781, %v780
      %v807 = vpack.c.bf16 %v783, %v782
      %v808 = vpack.c.bf16 %v785, %v784
      %v809 = vpack.c.bf16 %v787, %v786
      %v810 = vpack.c.bf16 %v789, %v788
      %v811 = vpack.c.bf16 %v791, %v790
      %v812 = vpack.c.bf16 %v793, %v792
      %v813 = vpack.c.bf16 %v795, %v794
      %v814 = vpack.c.bf16 %v797, %v796
      %v815 = vpack.c.bf16 %v799, %v798
      %v816 = vld [vmem:[%s3] sm:$0xf]
      %v817 = vld [vmem:[%s3 + $0x4] sm:$0xf]
      %v818 = vld [vmem:[%s3 + $0x8] sm:$0xf]
      %v819 = vld [vmem:[%s3 + $0xc] sm:$0xf]
      %v820 = vld [vmem:[%s3 + $0x10] sm:$0xf]
      %v821 = vld [vmem:[%s3 + $0x14] sm:$0xf]
      %v822 = vld [vmem:[%s3 + $0x18] sm:$0xf]
      %v823 = vld [vmem:[%s3 + $0x1c] sm:$0xf]
      %v824 = vld [vmem:[%s4] sm:$0x1]
      %v826 = vlaneseq
      %v827 = vshrl.u32 %v826, 7
      %v828 = vsub.s32 0, %v827
      %v829 = vrot.slane %v824, %v828
      %v839 = vunpack.c.l.b16 %v816
      %v840 = vunpack.c.l.b16 %v817
      %v841 = vunpack.c.l.b16 %v818
      %v842 = vunpack.c.l.b16 %v819
      %v843 = vunpack.c.l.b16 %v820
      %v844 = vunpack.c.l.b16 %v821
      %v845 = vunpack.c.l.b16 %v822
      %v846 = vunpack.c.l.b16 %v823
      %v847 = vpack.c.b16 %v840, %v839
      %v848 = vpack.c.b16 %v842, %v841
      %v849 = vpack.c.b16 %v844, %v843
      %v850 = vpack.c.b16 %v846, %v845
      %vm855 = vcmask 523264
      %v857 = vsel %vm855, %v800, 0
      %v860 = vsel %vm855, %v801, 0
      %v863 = vsel %vm855, %v802, 0
      %v866 = vsel %vm855, %v803, 0
      %v869 = vsel %vm855, %v804, 0
      %v872 = vsel %vm855, %v805, 0
      %v875 = vsel %vm855, %v806, 0
      %v878 = vsel %vm855, %v807, 0
      %v881 = vsel %vm855, %v808, 0
      %v884 = vsel %vm855, %v809, 0
      %v887 = vsel %vm855, %v810, 0
      %v890 = vsel %vm855, %v811, 0
      %v893 = vsel %vm855, %v812, 0
      %v896 = vsel %vm855, %v813, 0
      %v899 = vsel %vm855, %v814, 0
      %v902 = vsel %vm855, %v815, 0
      %904 = vmatprep.subr.bf16.mxu0 0
      %905 = vmatpush1.bf16.msra.mxu0 %v847
      %906 = vmatprep.subr.bf16.mxu0 0
      %907 = vmatpush1.bf16.msra.mxu0 %v848
      %908 = vmatprep.subr.bf16.mxu0 0
      %909 = vmatpush1.bf16.msra.mxu0 %v849
      %910 = vmatprep.subr.bf16.mxu0 0
      %911 = vmatpush1.bf16.msra.mxu0 %v850
      %912 = vmatprep.subr.bf16.mxu0 0
      %913 = vmatpush1.bf16.msra.mxu0 0
      %914 = vmatprep.subr.bf16.mxu0 0
      %915 = vmatpush1.bf16.msra.mxu0 0
      %916 = vmatprep.subr.bf16.mxu0 0
      %917 = vmatpush1.bf16.msra.mxu0 0
      %918 = vmatprep.subr.bf16.mxu0 0
      %919 = vmatpush1.bf16.msra.mxu0 0
      %920 = vmatprep.subr.bf16.mxu0 0
      %921 = vmatpush1.bf16.msra.mxu0 0
      %922 = vmatprep.subr.bf16.mxu0 0
      %923 = vmatpush1.bf16.msra.mxu0 0
      %924 = vmatprep.subr.bf16.mxu0 0
      %925 = vmatpush1.bf16.msra.mxu0 0
      %926 = vmatprep.subr.bf16.mxu0 0
      %927 = vmatpush1.bf16.msra.mxu0 0
      %928 = vmatprep.subr.bf16.mxu0 0
      %929 = vmatpush1.bf16.msra.mxu0 0
      %930 = vmatprep.subr.bf16.mxu0 0
      %931 = vmatpush1.bf16.msra.mxu0 0
      %932 = vmatprep.subr.bf16.mxu0 0
      %933 = vmatpush1.bf16.msra.mxu0 0
      %934 = vmatprep.subr.bf16.mxu0 0
      %935 = vmatpush1.bf16.msra.mxu0 0
      %936 = vmatprep.mubr.bf16.mxu0 0
      %937 = vmatmul.mubr.bf16.gmra.mrb[0].mxu0 %v857
      %v938 = vpop.f32.mrb[0].mxu0
      %v939 = vadd.f32 %v829, %v938
      %v940 = vpop.f32.mrb[0].mxu0
      %v941 = vpop.f32.mrb[0].mxu0
      %v942 = vadd.f32 %v829, %v941
      %v943 = vpop.f32.mrb[0].mxu0
      %944 = vmatprep.mubr.bf16.mxu0 0
      %945 = vmatmul.mubr.bf16.gmra.mrb[0].mxu0 %v860
      %v946 = vpop.f32.mrb[0].mxu0
      %v947 = vadd.f32 %v829, %v946
      %v948 = vpop.f32.mrb[0].mxu0
      %v949 = vpop.f32.mrb[0].mxu0
      %v950 = vadd.f32 %v829, %v949
      %v951 = vpop.f32.mrb[0].mxu0
      %952 = vmatprep.mubr.bf16.mxu0 0
      %953 = vmatmul.mubr.bf16.gmra.mrb[0].mxu0 %v863
      %v954 = vpop.f32.mrb[0].mxu0
      %v955 = vadd.f32 %v829, %v954
      %v956 = vpop.f32.mrb[0].mxu0
      %v957 = vpop.f32.mrb[0].mxu0
      %v958 = vadd.f32 %v829, %v957
      %v959 = vpop.f32.mrb[0].mxu0
      %960 = vmatprep.mubr.bf16.mxu0 0
      %961 = vmatmul.mubr.bf16.gmra.mrb[0].mxu0 %v866
      %v962 = vpop.f32.mrb[0].mxu0
      %v963 = vadd.f32 %v829, %v962
      %v964 = vpop.f32.mrb[0].mxu0
      %v965 = vpop.f32.mrb[0].mxu0
      %v966 = vadd.f32 %v829, %v965
      %v967 = vpop.f32.mrb[0].mxu0
      %968 = vmatprep.mubr.bf16.mxu0 0
      %969 = vmatmul.mubr.bf16.gmra.mrb[0].mxu0 %v869
      %v970 = vpop.f32.mrb[0].mxu0
      %v971 = vadd.f32 %v829, %v970
      %v972 = vpop.f32.mrb[0].mxu0
      %v973 = vpop.f32.mrb[0].mxu0
      %v974 = vadd.f32 %v829, %v973
      %v975 = vpop.f32.mrb[0].mxu0
      %976 = vmatprep.mubr.bf16.mxu0 0
      %977 = vmatmul.mubr.bf16.gmra.mrb[0].mxu0 %v872
      %v978 = vpop.f32.mrb[0].mxu0
      %v979 = vadd.f32 %v829, %v978
      %v980 = vpop.f32.mrb[0].mxu0
      %v981 = vpop.f32.mrb[0].mxu0
      %v982 = vadd.f32 %v829, %v981
      %v983 = vpop.f32.mrb[0].mxu0
      %984 = vmatprep.mubr.bf16.mxu0 0
      %985 = vmatmul.mubr.bf16.gmra.mrb[0].mxu0 %v875
      %v986 = vpop.f32.mrb[0].mxu0
      %v987 = vadd.f32 %v829, %v986
      %v988 = vpop.f32.mrb[0].mxu0
      %v989 = vpop.f32.mrb[0].mxu0
      %v990 = vadd.f32 %v829, %v989
      %v991 = vpop.f32.mrb[0].mxu0
      %992 = vmatprep.mubr.bf16.mxu0 0
      %993 = vmatmul.mubr.bf16.gmra.mrb[0].mxu0 %v878
      %v994 = vpop.f32.mrb[0].mxu0
      %v995 = vadd.f32 %v829, %v994
      %v996 = vpop.f32.mrb[0].mxu0
      %v997 = vpop.f32.mrb[0].mxu0
      %v998 = vadd.f32 %v829, %v997
      %v999 = vpop.f32.mrb[0].mxu0
      %1000 = vmatprep.mubr.bf16.mxu0 0
      %1001 = vmatmul.mubr.bf16.gmra.mrb[0].mxu0 %v881
      %v1002 = vpop.f32.mrb[0].mxu0
      %v1003 = vadd.f32 %v829, %v1002
      %v1004 = vpop.f32.mrb[0].mxu0
      %v1005 = vpop.f32.mrb[0].mxu0
      %v1006 = vadd.f32 %v829, %v1005
      %v1007 = vpop.f32.mrb[0].mxu0
      %1008 = vmatprep.mubr.bf16.mxu0 0
      %1009 = vmatmul.mubr.bf16.gmra.mrb[0].mxu0 %v884
      %v1010 = vpop.f32.mrb[0].mxu0
      %v1011 = vadd.f32 %v829, %v1010
      %v1012 = vpop.f32.mrb[0].mxu0
      %v1013 = vpop.f32.mrb[0].mxu0
      %v1014 = vadd.f32 %v829, %v1013
      %v1015 = vpop.f32.mrb[0].mxu0
      %1016 = vmatprep.mubr.bf16.mxu0 0
      %1017 = vmatmul.mubr.bf16.gmra.mrb[0].mxu0 %v887
      %v1018 = vpop.f32.mrb[0].mxu0
      %v1019 = vadd.f32 %v829, %v1018
      %v1020 = vpop.f32.mrb[0].mxu0
      %v1021 = vpop.f32.mrb[0].mxu0
      %v1022 = vadd.f32 %v829, %v1021
      %v1023 = vpop.f32.mrb[0].mxu0
      %1024 = vmatprep.mubr.bf16.mxu0 0
      %1025 = vmatmul.mubr.bf16.gmra.mrb[0].mxu0 %v890
      %v1026 = vpop.f32.mrb[0].mxu0
      %v1027 = vadd.f32 %v829, %v1026
      %v1028 = vpop.f32.mrb[0].mxu0
      %v1029 = vpop.f32.mrb[0].mxu0
      %v1030 = vadd.f32 %v829, %v1029
      %v1031 = vpop.f32.mrb[0].mxu0
      %1032 = vmatprep.mubr.bf16.mxu0 0
      %1033 = vmatmul.mubr.bf16.gmra.mrb[0].mxu0 %v893
      %v1034 = vpop.f32.mrb[0].mxu0
      %v1035 = vadd.f32 %v829, %v1034
      %v1036 = vpop.f32.mrb[0].mxu0
      %v1037 = vpop.f32.mrb[0].mxu0
      %v1038 = vadd.f32 %v829, %v1037
      %v1039 = vpop.f32.mrb[0].mxu0
      %1040 = vmatprep.mubr.bf16.mxu0 0
      %1041 = vmatmul.mubr.bf16.gmra.mrb[0].mxu0 %v896
      %v1042 = vpop.f32.mrb[0].mxu0
      %v1043 = vadd.f32 %v829, %v1042
      %v1044 = vpop.f32.mrb[0].mxu0
      %v1045 = vpop.f32.mrb[0].mxu0
      %v1046 = vadd.f32 %v829, %v1045
      %v1047 = vpop.f32.mrb[0].mxu0
      %1048 = vmatprep.mubr.bf16.mxu0 0
      %1049 = vmatmul.mubr.bf16.gmra.mrb[0].mxu0 %v899
      %v1050 = vpop.f32.mrb[0].mxu0
      %v1051 = vadd.f32 %v829, %v1050
      %v1052 = vpop.f32.mrb[0].mxu0
      %v1053 = vpop.f32.mrb[0].mxu0
      %v1054 = vadd.f32 %v829, %v1053
      %v1055 = vpop.f32.mrb[0].mxu0
      %1056 = vmatprep.mubr.bf16.mxu0 0
      %1057 = vmatmul.mubr.bf16.gmra.mrb[0].mxu0 %v902
      %v1058 = vpop.f32.mrb[0].mxu0
      %v1059 = vadd.f32 %v829, %v1058
      %v1060 = vpop.f32.mrb[0].mxu0
      %v1061 = vpop.f32.mrb[0].mxu0
      %v1062 = vadd.f32 %v829, %v1061
      %v1063 = vpop.f32.mrb[0].mxu0
      %1064 = vdwg.mxu0
      %v1065 = vmax.f32 %v939, 0.0
      %v1066 = vmax.f32 %v942, 0.0
      %v1067 = vmax.f32 %v947, 0.0
      %v1068 = vmax.f32 %v950, 0.0
      %v1069 = vmax.f32 %v955, 0.0
      %v1070 = vmax.f32 %v958, 0.0
      %v1071 = vmax.f32 %v963, 0.0
      %v1072 = vmax.f32 %v966, 0.0
      %v1073 = vmax.f32 %v971, 0.0
      %v1074 = vmax.f32 %v974, 0.0
      %v1075 = vmax.f32 %v979, 0.0
      %v1076 = vmax.f32 %v982, 0.0
      %v1077 = vmax.f32 %v987, 0.0
      %v1078 = vmax.f32 %v990, 0.0
      %v1079 = vmax.f32 %v995, 0.0
      %v1080 = vmax.f32 %v998, 0.0
      %v1081 = vmax.f32 %v1003, 0.0
      %v1082 = vmax.f32 %v1006, 0.0
      %v1083 = vmax.f32 %v1011, 0.0
      %v1084 = vmax.f32 %v1014, 0.0
      %v1085 = vmax.f32 %v1019, 0.0
      %v1086 = vmax.f32 %v1022, 0.0
      %v1087 = vmax.f32 %v1027, 0.0
      %v1088 = vmax.f32 %v1030, 0.0
      %v1089 = vmax.f32 %v1035, 0.0
      %v1090 = vmax.f32 %v1038, 0.0
      %v1091 = vmax.f32 %v1043, 0.0
      %v1092 = vmax.f32 %v1046, 0.0
      %v1093 = vmax.f32 %v1051, 0.0
      %v1094 = vmax.f32 %v1054, 0.0
      %v1095 = vmax.f32 %v1059, 0.0
      %v1096 = vmax.f32 %v1062, 0.0
      %v1097 = vlaneseq
      %v1098 = vshrl.u32 %v1097, 7
      %v1099 = vadd.s32 %v1098, 8
      %v1100 = vrot.slane %v1065, 6
      %v1101 = vrot.slane %v1067, 6
      %v1102 = vrot.slane %v1069, 6
      %v1103 = vrot.slane %v1071, 6
      %v1104 = vrot.slane %v1073, 6
      %v1105 = vrot.slane %v1075, 6
      %v1106 = vrot.slane %v1077, 6
      %v1107 = vrot.slane %v1079, 6
      %v1108 = vrot.slane %v1081, 6
      %v1109 = vrot.slane %v1083, 6
      %v1110 = vrot.slane %v1085, 6
      %v1111 = vrot.slane %v1087, 6
      %v1112 = vrot.slane %v1089, 6
      %v1113 = vrot.slane %v1091, 6
      %v1114 = vrot.slane %v1093, 6
      %v1115 = vrot.slane %v1095, 6
      %v1116 = vrot.slane %v1066, 6
      %v1117 = vrot.slane %v1068, 6
      %v1118 = vrot.slane %v1070, 6
      %v1119 = vrot.slane %v1072, 6
      %v1120 = vrot.slane %v1074, 6
      %v1121 = vrot.slane %v1076, 6
      %v1122 = vrot.slane %v1078, 6
      %v1123 = vrot.slane %v1080, 6
      %v1124 = vrot.slane %v1082, 6
      %v1125 = vrot.slane %v1084, 6
      %v1126 = vrot.slane %v1086, 6
      %v1127 = vrot.slane %v1088, 6
      %v1128 = vrot.slane %v1090, 6
      %v1129 = vrot.slane %v1092, 6
      %v1130 = vrot.slane %v1094, 6
      %v1131 = vrot.slane %v1096, 6
      %vm1132 = vcmp.lt.s32.totalorder %v1098, 2
      %v1133 = vsel %vm1132, %v1100, %v1116
      %v1134 = vsel %vm1132, %v1101, %v1117
      %v1135 = vsel %vm1132, %v1102, %v1118
      %v1136 = vsel %vm1132, %v1103, %v1119
      %v1137 = vsel %vm1132, %v1104, %v1120
      %v1138 = vsel %vm1132, %v1105, %v1121
      %v1139 = vsel %vm1132, %v1106, %v1122
      %v1140 = vsel %vm1132, %v1107, %v1123
      %v1141 = vsel %vm1132, %v1108, %v1124
      %v1142 = vsel %vm1132, %v1109, %v1125
      %v1143 = vsel %vm1132, %v1110, %v1126
      %v1144 = vsel %vm1132, %v1111, %v1127
      %v1145 = vsel %vm1132, %v1112, %v1128
      %v1146 = vsel %vm1132, %v1113, %v1129
      %v1147 = vsel %vm1132, %v1114, %v1130
      %v1148 = vsel %vm1132, %v1115, %v1131
      %v1149 = vsel %vm1132, %v1116, %v1100
      %v1150 = vsel %vm1132, %v1117, %v1101
      %v1151 = vsel %vm1132, %v1118, %v1102
      %v1152 = vsel %vm1132, %v1119, %v1103
      %v1153 = vsel %vm1132, %v1120, %v1104
      %v1154 = vsel %vm1132, %v1121, %v1105
      %v1155 = vsel %vm1132, %v1122, %v1106
      %v1156 = vsel %vm1132, %v1123, %v1107
      %v1157 = vsel %vm1132, %v1124, %v1108
      %v1158 = vsel %vm1132, %v1125, %v1109
      %v1159 = vsel %vm1132, %v1126, %v1110
      %v1160 = vsel %vm1132, %v1127, %v1111
      %v1161 = vsel %vm1132, %v1128, %v1112
      %v1162 = vsel %vm1132, %v1129, %v1113
      %v1163 = vsel %vm1132, %v1130, %v1114
      %v1164 = vsel %vm1132, %v1131, %v1115
      %vm1165 = vcmp.ge.s32.totalorder %v1098, 2
      %vm1166 = vcmp.ge.s32.totalorder %v1099, 2
      %vm1167 = vcmp.lt.s32.totalorder %v1098, 18
      %vm1168 = vcmp.lt.s32.totalorder %v1099, 18
      %vm1169 = vmand %vm1165, %vm1167
      %vm1170 = vmand %vm1166, %vm1168
      %v1171 = vsel %vm1169, %v1149, 0.0
      %v1172 = vsel %vm1170, %v1133, 0.0
      %v1173 = vsel %vm1169, %v1150, 0.0
      %v1174 = vsel %vm1170, %v1134, 0.0
      %v1175 = vsel %vm1169, %v1151, 0.0
      %v1176 = vsel %vm1170, %v1135, 0.0
      %v1177 = vsel %vm1169, %v1152, 0.0
      %v1178 = vsel %vm1170, %v1136, 0.0
      %v1179 = vsel %vm1169, %v1153, 0.0
      %v1180 = vsel %vm1170, %v1137, 0.0
      %v1181 = vsel %vm1169, %v1154, 0.0
      %v1182 = vsel %vm1170, %v1138, 0.0
      %v1183 = vsel %vm1169, %v1155, 0.0
      %v1184 = vsel %vm1170, %v1139, 0.0
      %v1185 = vsel %vm1169, %v1156, 0.0
      %v1186 = vsel %vm1170, %v1140, 0.0
      %v1187 = vsel %vm1169, %v1157, 0.0
      %v1188 = vsel %vm1170, %v1141, 0.0
      %v1189 = vsel %vm1169, %v1158, 0.0
      %v1190 = vsel %vm1170, %v1142, 0.0
      %v1191 = vsel %vm1169, %v1159, 0.0
      %v1192 = vsel %vm1170, %v1143, 0.0
      %v1193 = vsel %vm1169, %v1160, 0.0
      %v1194 = vsel %vm1170, %v1144, 0.0
      %v1195 = vsel %vm1169, %v1161, 0.0
      %v1196 = vsel %vm1170, %v1145, 0.0
      %v1197 = vsel %vm1169, %v1162, 0.0
      %v1198 = vsel %vm1170, %v1146, 0.0
      %v1199 = vsel %vm1169, %v1163, 0.0
      %v1200 = vsel %vm1170, %v1147, 0.0
      %v1201 = vsel %vm1169, %v1164, 0.0
      %v1202 = vsel %vm1170, %v1148, 0.0
      %v1203 = vpack.c.bf16 %v1172, %v1171
      %v1204 = vpack.c.bf16 %v1174, %v1173
      %v1205 = vpack.c.bf16 %v1176, %v1175
      %v1206 = vpack.c.bf16 %v1178, %v1177
      %v1207 = vpack.c.bf16 %v1180, %v1179
      %v1208 = vpack.c.bf16 %v1182, %v1181
      %v1209 = vpack.c.bf16 %v1184, %v1183
      %v1210 = vpack.c.bf16 %v1186, %v1185
      %v1211 = vpack.c.bf16 %v1188, %v1187
      %v1212 = vpack.c.bf16 %v1190, %v1189
      %v1213 = vpack.c.bf16 %v1192, %v1191
      %v1214 = vpack.c.bf16 %v1194, %v1193
      %v1215 = vpack.c.bf16 %v1196, %v1195
      %v1216 = vpack.c.bf16 %v1198, %v1197
      %v1217 = vpack.c.bf16 %v1200, %v1199
      %v1218 = vpack.c.bf16 %v1202, %v1201
      %s1219 = scalar_lea.vmem [#allocation2], 32
      %vm1220 = vcmask 261120
      %1221 = vst.msk [vmem:[%s1219] sm:$0xff] %vm1220, %v1203
      %1222 = vst.msk [vmem:[%s1219 + $0x10] sm:$0xff] %vm1220, %v1204
      %1223 = vst.msk [vmem:[%s1219 + $0x20] sm:$0xff] %vm1220, %v1205
      %1224 = vst.msk [vmem:[%s1219 + $0x30] sm:$0xff] %vm1220, %v1206
      %1225 = vst.msk [vmem:[%s1219 + $0x40] sm:$0xff] %vm1220, %v1207
      %1226 = vst.msk [vmem:[%s1219 + $0x50] sm:$0xff] %vm1220, %v1208
      %1227 = vst.msk [vmem:[%s1219 + $0x60] sm:$0xff] %vm1220, %v1209
      %1228 = vst.msk [vmem:[%s1219 + $0x70] sm:$0xff] %vm1220, %v1210
      %1229 = vst.msk [vmem:[%s1219 + $0x80] sm:$0xff] %vm1220, %v1211
      %1230 = vst.msk [vmem:[%s1219 + $0x90] sm:$0xff] %vm1220, %v1212
      %1231 = vst.msk [vmem:[%s1219 + $0xa0] sm:$0xff] %vm1220, %v1213
      %1232 = vst.msk [vmem:[%s1219 + $0xb0] sm:$0xff] %vm1220, %v1214
      %1233 = vst.msk [vmem:[%s1219 + $0xc0] sm:$0xff] %vm1220, %v1215
      %1234 = vst.msk [vmem:[%s1219 + $0xd0] sm:$0xff] %vm1220, %v1216
      %1235 = vst.msk [vmem:[%s1219 + $0xe0] sm:$0xff] %vm1220, %v1217
      %1236 = vst.msk [vmem:[%s1219 + $0xf0] sm:$0xff] %vm1220, %v1218
      %v1237 = vrot.slane %v1065, 7
      %v1238 = vrot.slane %v1067, 7
      %v1239 = vrot.slane %v1069, 7
      %v1240 = vrot.slane %v1071, 7
      %v1241 = vrot.slane %v1073, 7
      %v1242 = vrot.slane %v1075, 7
      %v1243 = vrot.slane %v1077, 7
      %v1244 = vrot.slane %v1079, 7
      %v1245 = vrot.slane %v1081, 7
      %v1246 = vrot.slane %v1083, 7
      %v1247 = vrot.slane %v1085, 7
      %v1248 = vrot.slane %v1087, 7
      %v1249 = vrot.slane %v1089, 7
      %v1250 = vrot.slane %v1091, 7
      %v1251 = vrot.slane %v1093, 7
      %v1252 = vrot.slane %v1095, 7
      %v1253 = vrot.slane %v1066, 7
      %v1254 = vrot.slane %v1068, 7
      %v1255 = vrot.slane %v1070, 7
      %v1256 = vrot.slane %v1072, 7
      %v1257 = vrot.slane %v1074, 7
      %v1258 = vrot.slane %v1076, 7
      %v1259 = vrot.slane %v1078, 7
      %v1260 = vrot.slane %v1080, 7
      %v1261 = vrot.slane %v1082, 7
      %v1262 = vrot.slane %v1084, 7
      %v1263 = vrot.slane %v1086, 7
      %v1264 = vrot.slane %v1088, 7
      %v1265 = vrot.slane %v1090, 7
      %v1266 = vrot.slane %v1092, 7
      %v1267 = vrot.slane %v1094, 7
      %v1268 = vrot.slane %v1096, 7
      %vm1269 = vcmp.lt.s32.totalorder %v1098, 1
      %v1270 = vsel %vm1269, %v1237, %v1253
      %v1271 = vsel %vm1269, %v1238, %v1254
      %v1272 = vsel %vm1269, %v1239, %v1255
      %v1273 = vsel %vm1269, %v1240, %v1256
      %v1274 = vsel %vm1269, %v1241, %v1257
      %v1275 = vsel %vm1269, %v1242, %v1258
      %v1276 = vsel %vm1269, %v1243, %v1259
      %v1277 = vsel %vm1269, %v1244, %v1260
      %v1278 = vsel %vm1269, %v1245, %v1261
      %v1279 = vsel %vm1269, %v1246, %v1262
      %v1280 = vsel %vm1269, %v1247, %v1263
      %v1281 = vsel %vm1269, %v1248, %v1264
      %v1282 = vsel %vm1269, %v1249, %v1265
      %v1283 = vsel %vm1269, %v1250, %v1266
      %v1284 = vsel %vm1269, %v1251, %v1267
      %v1285 = vsel %vm1269, %v1252, %v1268
      %v1286 = vsel %vm1269, %v1253, %v1237
      %v1287 = vsel %vm1269, %v1254, %v1238
      %v1288 = vsel %vm1269, %v1255, %v1239
      %v1289 = vsel %vm1269, %v1256, %v1240
      %v1290 = vsel %vm1269, %v1257, %v1241
      %v1291 = vsel %vm1269, %v1258, %v1242
      %v1292 = vsel %vm1269, %v1259, %v1243
      %v1293 = vsel %vm1269, %v1260, %v1244
      %v1294 = vsel %vm1269, %v1261, %v1245
      %v1295 = vsel %vm1269, %v1262, %v1246
      %v1296 = vsel %vm1269, %v1263, %v1247
      %v1297 = vsel %vm1269, %v1264, %v1248
      %v1298 = vsel %vm1269, %v1265, %v1249
      %v1299 = vsel %vm1269, %v1266, %v1250
      %v1300 = vsel %vm1269, %v1267, %v1251
      %v1301 = vsel %vm1269, %v1268, %v1252
      %vm1302 = vcmp.ge.s32.totalorder %v1098, 1
      %vm1303 = vcmp.ge.s32.totalorder %v1099, 1
      %vm1304 = vcmp.lt.s32.totalorder %v1098, 17
      %vm1305 = vcmp.lt.s32.totalorder %v1099, 17
      %vm1306 = vmand %vm1302, %vm1304
      %vm1307 = vmand %vm1303, %vm1305
      %v1308 = vsel %vm1306, %v1286, 0.0
      %v1309 = vsel %vm1307, %v1270, 0.0
      %v1310 = vsel %vm1306, %v1287, 0.0
      %v1311 = vsel %vm1307, %v1271, 0.0
      %v1312 = vsel %vm1306, %v1288, 0.0
      %v1313 = vsel %vm1307, %v1272, 0.0
      %v1314 = vsel %vm1306, %v1289, 0.0
      %v1315 = vsel %vm1307, %v1273, 0.0
      %v1316 = vsel %vm1306, %v1290, 0.0
      %v1317 = vsel %vm1307, %v1274, 0.0
      %v1318 = vsel %vm1306, %v1291, 0.0
      %v1319 = vsel %vm1307, %v1275, 0.0
      %v1320 = vsel %vm1306, %v1292, 0.0
      %v1321 = vsel %vm1307, %v1276, 0.0
      %v1322 = vsel %vm1306, %v1293, 0.0
      %v1323 = vsel %vm1307, %v1277, 0.0
      %v1324 = vsel %vm1306, %v1294, 0.0
      %v1325 = vsel %vm1307, %v1278, 0.0
      %v1326 = vsel %vm1306, %v1295, 0.0
      %v1327 = vsel %vm1307, %v1279, 0.0
      %v1328 = vsel %vm1306, %v1296, 0.0
      %v1329 = vsel %vm1307, %v1280, 0.0
      %v1330 = vsel %vm1306, %v1297, 0.0
      %v1331 = vsel %vm1307, %v1281, 0.0
      %v1332 = vsel %vm1306, %v1298, 0.0
      %v1333 = vsel %vm1307, %v1282, 0.0
      %v1334 = vsel %vm1306, %v1299, 0.0
      %v1335 = vsel %vm1307, %v1283, 0.0
      %v1336 = vsel %vm1306, %v1300, 0.0
      %v1337 = vsel %vm1307, %v1284, 0.0
      %v1338 = vsel %vm1306, %v1301, 0.0
      %v1339 = vsel %vm1307, %v1285, 0.0
      %v1340 = vpack.c.bf16 %v1309, %v1308
      %v1341 = vpack.c.bf16 %v1311, %v1310
      %v1342 = vpack.c.bf16 %v1313, %v1312
      %v1343 = vpack.c.bf16 %v1315, %v1314
      %v1344 = vpack.c.bf16 %v1317, %v1316
      %v1345 = vpack.c.bf16 %v1319, %v1318
      %v1346 = vpack.c.bf16 %v1321, %v1320
      %v1347 = vpack.c.bf16 %v1323, %v1322
      %v1348 = vpack.c.bf16 %v1325, %v1324
      %v1349 = vpack.c.bf16 %v1327, %v1326
      %v1350 = vpack.c.bf16 %v1329, %v1328
      %v1351 = vpack.c.bf16 %v1331, %v1330
      %v1352 = vpack.c.bf16 %v1333, %v1332
      %v1353 = vpack.c.bf16 %v1335, %v1334
      %v1354 = vpack.c.bf16 %v1337, %v1336
      %v1355 = vpack.c.bf16 %v1339, %v1338
      %1372 = vrot.lane.b32.xlu0 %v1340, 32
      %v1373 = vpop.permute.xlu0 %1372
      %1374 = vrot.lane.b32.xlu0 %v1341, 32
      %v1375 = vpop.permute.xlu0 %1374
      %1376 = vrot.lane.b32.xlu0 %v1342, 32
      %v1377 = vpop.permute.xlu0 %1376
      %1378 = vrot.lane.b32.xlu0 %v1343, 32
      %v1379 = vpop.permute.xlu0 %1378
      %1380 = vrot.lane.b32.xlu0 %v1344, 32
      %v1381 = vpop.permute.xlu0 %1380
      %1382 = vrot.lane.b32.xlu0 %v1345, 32
      %v1383 = vpop.permute.xlu0 %1382
      %1384 = vrot.lane.b32.xlu0 %v1346, 32
      %v1385 = vpop.permute.xlu0 %1384
      %1386 = vrot.lane.b32.xlu0 %v1347, 32
      %v1387 = vpop.permute.xlu0 %1386
      %1388 = vrot.lane.b32.xlu0 %v1348, 32
      %v1389 = vpop.permute.xlu0 %1388
      %1390 = vrot.lane.b32.xlu0 %v1349, 32
      %v1391 = vpop.permute.xlu0 %1390
      %1392 = vrot.lane.b32.xlu0 %v1350, 32
      %v1393 = vpop.permute.xlu0 %1392
      %1394 = vrot.lane.b32.xlu0 %v1351, 32
      %v1395 = vpop.permute.xlu0 %1394
      %1396 = vrot.lane.b32.xlu0 %v1352, 32
      %v1397 = vpop.permute.xlu0 %1396
      %1398 = vrot.lane.b32.xlu0 %v1353, 32
      %v1399 = vpop.permute.xlu0 %1398
      %1400 = vrot.lane.b32.xlu0 %v1354, 32
      %v1401 = vpop.permute.xlu0 %1400
      %1402 = vrot.lane.b32.xlu0 %v1355, 32
      %v1403 = vpop.permute.xlu0 %1402
      %vm1420 = vcmask 523520
      %1421 = vst.msk [vmem:[%s1219] sm:$0xff] %vm1420, %v1373
      %1422 = vst.msk [vmem:[%s1219 + $0x10] sm:$0xff] %vm1420, %v1375
      %1423 = vst.msk [vmem:[%s1219 + $0x20] sm:$0xff] %vm1420, %v1377
      %1424 = vst.msk [vmem:[%s1219 + $0x30] sm:$0xff] %vm1420, %v1379
      %1425 = vst.msk [vmem:[%s1219 + $0x40] sm:$0xff] %vm1420, %v1381
      %1426 = vst.msk [vmem:[%s1219 + $0x50] sm:$0xff] %vm1420, %v1383
      %1427 = vst.msk [vmem:[%s1219 + $0x60] sm:$0xff] %vm1420, %v1385
      %1428 = vst.msk [vmem:[%s1219 + $0x70] sm:$0xff] %vm1420, %v1387
      %1429 = vst.msk [vmem:[%s1219 + $0x80] sm:$0xff] %vm1420, %v1389
      %1430 = vst.msk [vmem:[%s1219 + $0x90] sm:$0xff] %vm1420, %v1391
      %1431 = vst.msk [vmem:[%s1219 + $0xa0] sm:$0xff] %vm1420, %v1393
      %1432 = vst.msk [vmem:[%s1219 + $0xb0] sm:$0xff] %vm1420, %v1395
      %1433 = vst.msk [vmem:[%s1219 + $0xc0] sm:$0xff] %vm1420, %v1397
      %1434 = vst.msk [vmem:[%s1219 + $0xd0] sm:$0xff] %vm1420, %v1399
      %1435 = vst.msk [vmem:[%s1219 + $0xe0] sm:$0xff] %vm1420, %v1401
      %1436 = vst.msk [vmem:[%s1219 + $0xf0] sm:$0xff] %vm1420, %v1403
      %v1437 = vpack.c.bf16 %v1066, %v1065
      %v1438 = vpack.c.bf16 %v1068, %v1067
      %v1439 = vpack.c.bf16 %v1070, %v1069
      %v1440 = vpack.c.bf16 %v1072, %v1071
      %v1441 = vpack.c.bf16 %v1074, %v1073
      %v1442 = vpack.c.bf16 %v1076, %v1075
      %v1443 = vpack.c.bf16 %v1078, %v1077
      %v1444 = vpack.c.bf16 %v1080, %v1079
      %v1445 = vpack.c.bf16 %v1082, %v1081
      %v1446 = vpack.c.bf16 %v1084, %v1083
      %v1447 = vpack.c.bf16 %v1086, %v1085
      %v1448 = vpack.c.bf16 %v1088, %v1087
      %v1449 = vpack.c.bf16 %v1090, %v1089
      %v1450 = vpack.c.bf16 %v1092, %v1091
      %v1451 = vpack.c.bf16 %v1094, %v1093
      %v1452 = vpack.c.bf16 %v1096, %v1095
      %1469 = vrot.lane.b32.xlu0 %v1437, 64
      %v1470 = vpop.permute.xlu0 %1469
      %1471 = vrot.lane.b32.xlu0 %v1438, 64
      %v1472 = vpop.permute.xlu0 %1471
      %1473 = vrot.lane.b32.xlu0 %v1439, 64
      %v1474 = vpop.permute.xlu0 %1473
      %1475 = vrot.lane.b32.xlu0 %v1440, 64
      %v1476 = vpop.permute.xlu0 %1475
      %1477 = vrot.lane.b32.xlu0 %v1441, 64
      %v1478 = vpop.permute.xlu0 %1477
      %1479 = vrot.lane.b32.xlu0 %v1442, 64
      %v1480 = vpop.permute.xlu0 %1479
      %1481 = vrot.lane.b32.xlu0 %v1443, 64
      %v1482 = vpop.permute.xlu0 %1481
      %1483 = vrot.lane.b32.xlu0 %v1444, 64
      %v1484 = vpop.permute.xlu0 %1483
      %1485 = vrot.lane.b32.xlu0 %v1445, 64
      %v1486 = vpop.permute.xlu0 %1485
      %1487 = vrot.lane.b32.xlu0 %v1446, 64
      %v1488 = vpop.permute.xlu0 %1487
      %1489 = vrot.lane.b32.xlu0 %v1447, 64
      %v1490 = vpop.permute.xlu0 %1489
      %1491 = vrot.lane.b32.xlu0 %v1448, 64
      %v1492 = vpop.permute.xlu0 %1491
      %1493 = vrot.lane.b32.xlu0 %v1449, 64
      %v1494 = vpop.permute.xlu0 %1493
      %1495 = vrot.lane.b32.xlu0 %v1450, 64
      %v1496 = vpop.permute.xlu0 %1495
      %1497 = vrot.lane.b32.xlu0 %v1451, 64
      %v1498 = vpop.permute.xlu0 %1497
      %1499 = vrot.lane.b32.xlu0 %v1452, 64
      %v1500 = vpop.permute.xlu0 %1499
      %vm1517 = vcmask 785920
      %1518 = vst.msk [vmem:[%s1219] sm:$0xff] %vm1517, %v1470
      %1519 = vst.msk [vmem:[%s1219 + $0x10] sm:$0xff] %vm1517, %v1472
      %1520 = vst.msk [vmem:[%s1219 + $0x20] sm:$0xff] %vm1517, %v1474
      %1521 = vst.msk [vmem:[%s1219 + $0x30] sm:$0xff] %vm1517, %v1476
      %1522 = vst.msk [vmem:[%s1219 + $0x40] sm:$0xff] %vm1517, %v1478
      %1523 = vst.msk [vmem:[%s1219 + $0x50] sm:$0xff] %vm1517, %v1480
      %1524 = vst.msk [vmem:[%s1219 + $0x60] sm:$0xff] %vm1517, %v1482
      %1525 = vst.msk [vmem:[%s1219 + $0x70] sm:$0xff] %vm1517, %v1484
      %1526 = vst.msk [vmem:[%s1219 + $0x80] sm:$0xff] %vm1517, %v1486
      %1527 = vst.msk [vmem:[%s1219 + $0x90] sm:$0xff] %vm1517, %v1488
      %1528 = vst.msk [vmem:[%s1219 + $0xa0] sm:$0xff] %vm1517, %v1490
      %1529 = vst.msk [vmem:[%s1219 + $0xb0] sm:$0xff] %vm1517, %v1492
      %1530 = vst.msk [vmem:[%s1219 + $0xc0] sm:$0xff] %vm1517, %v1494
      %1531 = vst.msk [vmem:[%s1219 + $0xd0] sm:$0xff] %vm1517, %v1496
      %1532 = vst.msk [vmem:[%s1219 + $0xe0] sm:$0xff] %vm1517, %v1498
      %1533 = vst.msk [vmem:[%s1219 + $0xf0] sm:$0xff] %vm1517, %v1500
      %v1534 = vrot.slane %v1065, 1
      %v1535 = vrot.slane %v1067, 1
      %v1536 = vrot.slane %v1069, 1
      %v1537 = vrot.slane %v1071, 1
      %v1538 = vrot.slane %v1073, 1
      %v1539 = vrot.slane %v1075, 1
      %v1540 = vrot.slane %v1077, 1
      %v1541 = vrot.slane %v1079, 1
      %v1542 = vrot.slane %v1081, 1
      %v1543 = vrot.slane %v1083, 1
      %v1544 = vrot.slane %v1085, 1
      %v1545 = vrot.slane %v1087, 1
      %v1546 = vrot.slane %v1089, 1
      %v1547 = vrot.slane %v1091, 1
      %v1548 = vrot.slane %v1093, 1
      %v1549 = vrot.slane %v1095, 1
      %v1550 = vrot.slane %v1066, 1
      %v1551 = vrot.slane %v1068, 1
      %v1552 = vrot.slane %v1070, 1
      %v1553 = vrot.slane %v1072, 1
      %v1554 = vrot.slane %v1074, 1
      %v1555 = vrot.slane %v1076, 1
      %v1556 = vrot.slane %v1078, 1
      %v1557 = vrot.slane %v1080, 1
      %v1558 = vrot.slane %v1082, 1
      %v1559 = vrot.slane %v1084, 1
      %v1560 = vrot.slane %v1086, 1
      %v1561 = vrot.slane %v1088, 1
      %v1562 = vrot.slane %v1090, 1
      %v1563 = vrot.slane %v1092, 1
      %v1564 = vrot.slane %v1094, 1
      %v1565 = vrot.slane %v1096, 1
      %vm1566 = vcmp.lt.s32.totalorder %v1098, 7
      %v1567 = vsel %vm1566, %v1534, %v1550
      %v1568 = vsel %vm1566, %v1535, %v1551
      %v1569 = vsel %vm1566, %v1536, %v1552
      %v1570 = vsel %vm1566, %v1537, %v1553
      %v1571 = vsel %vm1566, %v1538, %v1554
      %v1572 = vsel %vm1566, %v1539, %v1555
      %v1573 = vsel %vm1566, %v1540, %v1556
      %v1574 = vsel %vm1566, %v1541, %v1557
      %v1575 = vsel %vm1566, %v1542, %v1558
      %v1576 = vsel %vm1566, %v1543, %v1559
      %v1577 = vsel %vm1566, %v1544, %v1560
      %v1578 = vsel %vm1566, %v1545, %v1561
      %v1579 = vsel %vm1566, %v1546, %v1562
      %v1580 = vsel %vm1566, %v1547, %v1563
      %v1581 = vsel %vm1566, %v1548, %v1564
      %v1582 = vsel %vm1566, %v1549, %v1565
      %v1583 = vsel %vm1566, %v1550, %v1534
      %v1584 = vsel %vm1566, %v1551, %v1535
      %v1585 = vsel %vm1566, %v1552, %v1536
      %v1586 = vsel %vm1566, %v1553, %v1537
      %v1587 = vsel %vm1566, %v1554, %v1538
      %v1588 = vsel %vm1566, %v1555, %v1539
      %v1589 = vsel %vm1566, %v1556, %v1540
      %v1590 = vsel %vm1566, %v1557, %v1541
      %v1591 = vsel %vm1566, %v1558, %v1542
      %v1592 = vsel %vm1566, %v1559, %v1543
      %v1593 = vsel %vm1566, %v1560, %v1544
      %v1594 = vsel %vm1566, %v1561, %v1545
      %v1595 = vsel %vm1566, %v1562, %v1546
      %v1596 = vsel %vm1566, %v1563, %v1547
      %v1597 = vsel %vm1566, %v1564, %v1548
      %v1598 = vsel %vm1566, %v1565, %v1549
      %vm1599 = vcmp.ge.s32.totalorder %v1098, 4294967295
      %vm1600 = vcmp.ge.s32.totalorder %v1099, 4294967295
      %vm1601 = vcmp.lt.s32.totalorder %v1098, 15
      %vm1602 = vcmp.lt.s32.totalorder %v1099, 15
      %vm1603 = vmand %vm1599, %vm1601
      %vm1604 = vmand %vm1600, %vm1602
      %v1605 = vsel %vm1603, %v1567, 0.0
      %v1606 = vsel %vm1604, %v1583, 0.0
      %v1607 = vsel %vm1603, %v1568, 0.0
      %v1608 = vsel %vm1604, %v1584, 0.0
      %v1609 = vsel %vm1603, %v1569, 0.0
      %v1610 = vsel %vm1604, %v1585, 0.0
      %v1611 = vsel %vm1603, %v1570, 0.0
      %v1612 = vsel %vm1604, %v1586, 0.0
      %v1613 = vsel %vm1603, %v1571, 0.0
      %v1614 = vsel %vm1604, %v1587, 0.0
      %v1615 = vsel %vm1603, %v1572, 0.0
      %v1616 = vsel %vm1604, %v1588, 0.0
      %v1617 = vsel %vm1603, %v1573, 0.0
      %v1618 = vsel %vm1604, %v1589, 0.0
      %v1619 = vsel %vm1603, %v1574, 0.0
      %v1620 = vsel %vm1604, %v1590, 0.0
      %v1621 = vsel %vm1603, %v1575, 0.0
      %v1622 = vsel %vm1604, %v1591, 0.0
      %v1623 = vsel %vm1603, %v1576, 0.0
      %v1624 = vsel %vm1604, %v1592, 0.0
      %v1625 = vsel %vm1603, %v1577, 0.0
      %v1626 = vsel %vm1604, %v1593, 0.0
      %v1627 = vsel %vm1603, %v1578, 0.0
      %v1628 = vsel %vm1604, %v1594, 0.0
      %v1629 = vsel %vm1603, %v1579, 0.0
      %v1630 = vsel %vm1604, %v1595, 0.0
      %v1631 = vsel %vm1603, %v1580, 0.0
      %v1632 = vsel %vm1604, %v1596, 0.0
      %v1633 = vsel %vm1603, %v1581, 0.0
      %v1634 = vsel %vm1604, %v1597, 0.0
      %v1635 = vsel %vm1603, %v1582, 0.0
      %v1636 = vsel %vm1604, %v1598, 0.0
      %v1637 = vpack.c.bf16 %v1606, %v1605
      %v1638 = vpack.c.bf16 %v1608, %v1607
      %v1639 = vpack.c.bf16 %v1610, %v1609
      %v1640 = vpack.c.bf16 %v1612, %v1611
      %v1641 = vpack.c.bf16 %v1614, %v1613
      %v1642 = vpack.c.bf16 %v1616, %v1615
      %v1643 = vpack.c.bf16 %v1618, %v1617
      %v1644 = vpack.c.bf16 %v1620, %v1619
      %v1645 = vpack.c.bf16 %v1622, %v1621
      %v1646 = vpack.c.bf16 %v1624, %v1623
      %v1647 = vpack.c.bf16 %v1626, %v1625
      %v1648 = vpack.c.bf16 %v1628, %v1627
      %v1649 = vpack.c.bf16 %v1630, %v1629
      %v1650 = vpack.c.bf16 %v1632, %v1631
      %v1651 = vpack.c.bf16 %v1634, %v1633
      %v1652 = vpack.c.bf16 %v1636, %v1635
      %1669 = vrot.lane.b32.xlu0 %v1637, 96
      %v1670 = vpop.permute.xlu0 %1669
      %1671 = vrot.lane.b32.xlu0 %v1638, 96
      %v1672 = vpop.permute.xlu0 %1671
      %1673 = vrot.lane.b32.xlu0 %v1639, 96
      %v1674 = vpop.permute.xlu0 %1673
      %1675 = vrot.lane.b32.xlu0 %v1640, 96
      %v1676 = vpop.permute.xlu0 %1675
      %1677 = vrot.lane.b32.xlu0 %v1641, 96
      %v1678 = vpop.permute.xlu0 %1677
      %1679 = vrot.lane.b32.xlu0 %v1642, 96
      %v1680 = vpop.permute.xlu0 %1679
      %1681 = vrot.lane.b32.xlu0 %v1643, 96
      %v1682 = vpop.permute.xlu0 %1681
      %1683 = vrot.lane.b32.xlu0 %v1644, 96
      %v1684 = vpop.permute.xlu0 %1683
      %1685 = vrot.lane.b32.xlu0 %v1645, 96
      %v1686 = vpop.permute.xlu0 %1685
      %1687 = vrot.lane.b32.xlu0 %v1646, 96
      %v1688 = vpop.permute.xlu0 %1687
      %1689 = vrot.lane.b32.xlu0 %v1647, 96
      %v1690 = vpop.permute.xlu0 %1689
      %1691 = vrot.lane.b32.xlu0 %v1648, 96
      %v1692 = vpop.permute.xlu0 %1691
      %1693 = vrot.lane.b32.xlu0 %v1649, 96
      %v1694 = vpop.permute.xlu0 %1693
      %1695 = vrot.lane.b32.xlu0 %v1650, 96
      %v1696 = vpop.permute.xlu0 %1695
      %1697 = vrot.lane.b32.xlu0 %v1651, 96
      %v1698 = vpop.permute.xlu0 %1697
      %1699 = vrot.lane.b32.xlu0 %v1652, 96
      %v1700 = vpop.permute.xlu0 %1699
      %vm1717 = vcmask 1048320
      %1718 = vst.msk [vmem:[%s1219] sm:$0xff] %vm1717, %v1670
      %1719 = vst.msk [vmem:[%s1219 + $0x10] sm:$0xff] %vm1717, %v1672
      %1720 = vst.msk [vmem:[%s1219 + $0x20] sm:$0xff] %vm1717, %v1674
      %1721 = vst.msk [vmem:[%s1219 + $0x30] sm:$0xff] %vm1717, %v1676
      %1722 = vst.msk [vmem:[%s1219 + $0x40] sm:$0xff] %vm1717, %v1678
      %1723 = vst.msk [vmem:[%s1219 + $0x50] sm:$0xff] %vm1717, %v1680
      %1724 = vst.msk [vmem:[%s1219 + $0x60] sm:$0xff] %vm1717, %v1682
      %1725 = vst.msk [vmem:[%s1219 + $0x70] sm:$0xff] %vm1717, %v1684
      %1726 = vst.msk [vmem:[%s1219 + $0x80] sm:$0xff] %vm1717, %v1686
      %1727 = vst.msk [vmem:[%s1219 + $0x90] sm:$0xff] %vm1717, %v1688
      %1728 = vst.msk [vmem:[%s1219 + $0xa0] sm:$0xff] %vm1717, %v1690
      %1729 = vst.msk [vmem:[%s1219 + $0xb0] sm:$0xff] %vm1717, %v1692
      %1730 = vst.msk [vmem:[%s1219 + $0xc0] sm:$0xff] %vm1717, %v1694
      %1731 = vst.msk [vmem:[%s1219 + $0xd0] sm:$0xff] %vm1717, %v1696
      %1732 = vst.msk [vmem:[%s1219 + $0xe0] sm:$0xff] %vm1717, %v1698
      %1733 = vst.msk [vmem:[%s1219 + $0xf0] sm:$0xff] %vm1717, %v1700
      %v1734 = vrot.slane %v1065, 2
      %v1735 = vrot.slane %v1067, 2
      %v1736 = vrot.slane %v1069, 2
      %v1737 = vrot.slane %v1071, 2
      %v1738 = vrot.slane %v1073, 2
      %v1739 = vrot.slane %v1075, 2
      %v1740 = vrot.slane %v1077, 2
      %v1741 = vrot.slane %v1079, 2
      %v1742 = vrot.slane %v1081, 2
      %v1743 = vrot.slane %v1083, 2
      %v1744 = vrot.slane %v1085, 2
      %v1745 = vrot.slane %v1087, 2
      %v1746 = vrot.slane %v1089, 2
      %v1747 = vrot.slane %v1091, 2
      %v1748 = vrot.slane %v1093, 2
      %v1749 = vrot.slane %v1095, 2
      %v1750 = vrot.slane %v1066, 2
      %v1751 = vrot.slane %v1068, 2
      %v1752 = vrot.slane %v1070, 2
      %v1753 = vrot.slane %v1072, 2
      %v1754 = vrot.slane %v1074, 2
      %v1755 = vrot.slane %v1076, 2
      %v1756 = vrot.slane %v1078, 2
      %v1757 = vrot.slane %v1080, 2
      %v1758 = vrot.slane %v1082, 2
      %v1759 = vrot.slane %v1084, 2
      %v1760 = vrot.slane %v1086, 2
      %v1761 = vrot.slane %v1088, 2
      %v1762 = vrot.slane %v1090, 2
      %v1763 = vrot.slane %v1092, 2
      %v1764 = vrot.slane %v1094, 2
      %v1765 = vrot.slane %v1096, 2
      %vm1766 = vcmp.lt.s32.totalorder %v1098, 6
      %v1767 = vsel %vm1766, %v1734, %v1750
      %v1768 = vsel %vm1766, %v1735, %v1751
      %v1769 = vsel %vm1766, %v1736, %v1752
      %v1770 = vsel %vm1766, %v1737, %v1753
      %v1771 = vsel %vm1766, %v1738, %v1754
      %v1772 = vsel %vm1766, %v1739, %v1755
      %v1773 = vsel %vm1766, %v1740, %v1756
      %v1774 = vsel %vm1766, %v1741, %v1757
      %v1775 = vsel %vm1766, %v1742, %v1758
      %v1776 = vsel %vm1766, %v1743, %v1759
      %v1777 = vsel %vm1766, %v1744, %v1760
      %v1778 = vsel %vm1766, %v1745, %v1761
      %v1779 = vsel %vm1766, %v1746, %v1762
      %v1780 = vsel %vm1766, %v1747, %v1763
      %v1781 = vsel %vm1766, %v1748, %v1764
      %v1782 = vsel %vm1766, %v1749, %v1765
      %v1783 = vsel %vm1766, %v1750, %v1734
      %v1784 = vsel %vm1766, %v1751, %v1735
      %v1785 = vsel %vm1766, %v1752, %v1736
      %v1786 = vsel %vm1766, %v1753, %v1737
      %v1787 = vsel %vm1766, %v1754, %v1738
      %v1788 = vsel %vm1766, %v1755, %v1739
      %v1789 = vsel %vm1766, %v1756, %v1740
      %v1790 = vsel %vm1766, %v1757, %v1741
      %v1791 = vsel %vm1766, %v1758, %v1742
      %v1792 = vsel %vm1766, %v1759, %v1743
      %v1793 = vsel %vm1766, %v1760, %v1744
      %v1794 = vsel %vm1766, %v1761, %v1745
      %v1795 = vsel %vm1766, %v1762, %v1746
      %v1796 = vsel %vm1766, %v1763, %v1747
      %v1797 = vsel %vm1766, %v1764, %v1748
      %v1798 = vsel %vm1766, %v1765, %v1749
      %vm1799 = vcmp.ge.s32.totalorder %v1098, 4294967294
      %vm1800 = vcmp.ge.s32.totalorder %v1099, 4294967294
      %vm1801 = vcmp.lt.s32.totalorder %v1098, 14
      %vm1802 = vcmp.lt.s32.totalorder %v1099, 14
      %vm1803 = vmand %vm1799, %vm1801
      %vm1804 = vmand %vm1800, %vm1802
      %v1805 = vsel %vm1803, %v1767, 0.0
      %v1806 = vsel %vm1804, %v1783, 0.0
      %v1807 = vsel %vm1803, %v1768, 0.0
      %v1808 = vsel %vm1804, %v1784, 0.0
      %v1809 = vsel %vm1803, %v1769, 0.0
      %v1810 = vsel %vm1804, %v1785, 0.0
      %v1811 = vsel %vm1803, %v1770, 0.0
      %v1812 = vsel %vm1804, %v1786, 0.0
      %v1813 = vsel %vm1803, %v1771, 0.0
      %v1814 = vsel %vm1804, %v1787, 0.0
      %v1815 = vsel %vm1803, %v1772, 0.0
      %v1816 = vsel %vm1804, %v1788, 0.0
      %v1817 = vsel %vm1803, %v1773, 0.0
      %v1818 = vsel %vm1804, %v1789, 0.0
      %v1819 = vsel %vm1803, %v1774, 0.0
      %v1820 = vsel %vm1804, %v1790, 0.0
      %v1821 = vsel %vm1803, %v1775, 0.0
      %v1822 = vsel %vm1804, %v1791, 0.0
      %v1823 = vsel %vm1803, %v1776, 0.0
      %v1824 = vsel %vm1804, %v1792, 0.0
      %v1825 = vsel %vm1803, %v1777, 0.0
      %v1826 = vsel %vm1804, %v1793, 0.0
      %v1827 = vsel %vm1803, %v1778, 0.0
      %v1828 = vsel %vm1804, %v1794, 0.0
      %v1829 = vsel %vm1803, %v1779, 0.0
      %v1830 = vsel %vm1804, %v1795, 0.0
      %v1831 = vsel %vm1803, %v1780, 0.0
      %v1832 = vsel %vm1804, %v1796, 0.0
      %v1833 = vsel %vm1803, %v1781, 0.0
      %v1834 = vsel %vm1804, %v1797, 0.0
      %v1835 = vsel %vm1803, %v1782, 0.0
      %v1836 = vsel %vm1804, %v1798, 0.0
      %v1837 = vpack.c.bf16 %v1806, %v1805
      %v1838 = vpack.c.bf16 %v1808, %v1807
      %v1839 = vpack.c.bf16 %v1810, %v1809
      %v1840 = vpack.c.bf16 %v1812, %v1811
      %v1841 = vpack.c.bf16 %v1814, %v1813
      %v1842 = vpack.c.bf16 %v1816, %v1815
      %v1843 = vpack.c.bf16 %v1818, %v1817
      %v1844 = vpack.c.bf16 %v1820, %v1819
      %v1845 = vpack.c.bf16 %v1822, %v1821
      %v1846 = vpack.c.bf16 %v1824, %v1823
      %v1847 = vpack.c.bf16 %v1826, %v1825
      %v1848 = vpack.c.bf16 %v1828, %v1827
      %v1849 = vpack.c.bf16 %v1830, %v1829
      %v1850 = vpack.c.bf16 %v1832, %v1831
      %v1851 = vpack.c.bf16 %v1834, %v1833
      %v1852 = vpack.c.bf16 %v1836, %v1835
      %1853 = vst.msk [vmem:[%s1219 + $0x8] sm:$0xff] %vm1220, %v1837
      %1854 = vst.msk [vmem:[%s1219 + $0x18] sm:$0xff] %vm1220, %v1838
      %1855 = vst.msk [vmem:[%s1219 + $0x28] sm:$0xff] %vm1220, %v1839
      %1856 = vst.msk [vmem:[%s1219 + $0x38] sm:$0xff] %vm1220, %v1840
      %1857 = vst.msk [vmem:[%s1219 + $0x48] sm:$0xff] %vm1220, %v1841
      %1858 = vst.msk [vmem:[%s1219 + $0x58] sm:$0xff] %vm1220, %v1842
      %1859 = vst.msk [vmem:[%s1219 + $0x68] sm:$0xff] %vm1220, %v1843
      %1860 = vst.msk [vmem:[%s1219 + $0x78] sm:$0xff] %vm1220, %v1844
      %1861 = vst.msk [vmem:[%s1219 + $0x88] sm:$0xff] %vm1220, %v1845
      %1862 = vst.msk [vmem:[%s1219 + $0x98] sm:$0xff] %vm1220, %v1846
      %1863 = vst.msk [vmem:[%s1219 + $0xa8] sm:$0xff] %vm1220, %v1847
      %1864 = vst.msk [vmem:[%s1219 + $0xb8] sm:$0xff] %vm1220, %v1848
      %1865 = vst.msk [vmem:[%s1219 + $0xc8] sm:$0xff] %vm1220, %v1849
      %1866 = vst.msk [vmem:[%s1219 + $0xd8] sm:$0xff] %vm1220, %v1850
      %1867 = vst.msk [vmem:[%s1219 + $0xe8] sm:$0xff] %vm1220, %v1851
      %1868 = vst.msk [vmem:[%s1219 + $0xf8] sm:$0xff] %vm1220, %v1852
      %1869 = vst [vmem:[#allocation2] sm:$0xff] 0
      %1870 = vst.msk [vmem:[#allocation2 + $0x8] sm:$0xff] %vm1220, 0
      %1871 = vst [vmem:[#allocation2 + $0x10] sm:$0xff] 0
      %1872 = vst.msk [vmem:[#allocation2 + $0x18] sm:$0xff] %vm1220, 0
      %s1873 = scalar_lea.vmem [#allocation2], 288
      %1874 = vst [vmem:[%s1873] sm:$0xff] 0
      %1875 = vst.msk [vmem:[%s1873 + $0x8] sm:$0xff] %vm1220, 0
      %1876 = vst [vmem:[%s1873 + $0x10] sm:$0xff] 0
      %1877 = vst.msk [vmem:[%s1873 + $0x18] sm:$0xff] %vm1220, 0
      %v1878 = vld [vmem:[#allocation2] sm:$0xff]
      %v1879 = vld [vmem:[#allocation2 + $0x8] sm:$0xff]
      %v1880 = vld [vmem:[#allocation2 + $0x10] sm:$0xff]
      %v1881 = vld [vmem:[#allocation2 + $0x18] sm:$0xff]
      %v1882 = vld [vmem:[#allocation2 + $0x20] sm:$0xff]
      %v1883 = vld [vmem:[#allocation2 + $0x28] sm:$0xff]
      %v1884 = vld [vmem:[#allocation2 + $0x30] sm:$0xff]
      %v1885 = vld [vmem:[#allocation2 + $0x38] sm:$0xff]
      %v1886 = vld [vmem:[#allocation2 + $0x40] sm:$0xff]
      %v1887 = vld [vmem:[#allocation2 + $0x48] sm:$0xff]
      %v1888 = vld [vmem:[#allocation2 + $0x50] sm:$0xff]
      %v1889 = vld [vmem:[#allocation2 + $0x58] sm:$0xff]
      %v1890 = vld [vmem:[#allocation2 + $0x60] sm:$0xff]
      %v1891 = vld [vmem:[#allocation2 + $0x68] sm:$0xff]
      %v1892 = vld [vmem:[#allocation2 + $0x70] sm:$0xff]
      %v1893 = vld [vmem:[#allocation2 + $0x78] sm:$0xff]
      %v1894 = vld [vmem:[#allocation2 + $0x80] sm:$0xff]
      %v1895 = vld [vmem:[#allocation2 + $0x88] sm:$0xff]
      %v1896 = vld [vmem:[#allocation2 + $0x90] sm:$0xff]
      %v1897 = vld [vmem:[#allocation2 + $0x98] sm:$0xff]
      %v1898 = vld [vmem:[#allocation2 + $0xa0] sm:$0xff]
      %v1899 = vld [vmem:[#allocation2 + $0xa8] sm:$0xff]
      %v1900 = vld [vmem:[#allocation2 + $0xb0] sm:$0xff]
      %v1901 = vld [vmem:[#allocation2 + $0xb8] sm:$0xff]
      %v1902 = vld [vmem:[#allocation2 + $0xc0] sm:$0xff]
      %v1903 = vld [vmem:[#allocation2 + $0xc8] sm:$0xff]
      %v1904 = vld [vmem:[#allocation2 + $0xd0] sm:$0xff]
      %v1905 = vld [vmem:[#allocation2 + $0xd8] sm:$0xff]
      %v1906 = vld [vmem:[#allocation2 + $0xe0] sm:$0xff]
      %v1907 = vld [vmem:[#allocation2 + $0xe8] sm:$0xff]
      %v1908 = vld [vmem:[#allocation2 + $0xf0] sm:$0xff]
      %v1909 = vld [vmem:[#allocation2 + $0xf8] sm:$0xff]
      %v1910 = vld [vmem:[%s5] sm:$0xf]
      %v1911 = vld [vmem:[%s5 + $0x4] sm:$0xf]
      %v1912 = vld [vmem:[%s5 + $0x8] sm:$0xf]
      %v1913 = vld [vmem:[%s5 + $0xc] sm:$0xf]
      %v1914 = vld [vmem:[%s5 + $0x10] sm:$0xf]
      %v1915 = vld [vmem:[%s5 + $0x14] sm:$0xf]
      %v1916 = vld [vmem:[%s5 + $0x18] sm:$0xf]
      %v1917 = vld [vmem:[%s5 + $0x1c] sm:$0xf]
      %v1918 = vld [vmem:[%s5 + $0x20] sm:$0xf]
      %v1919 = vld [vmem:[%s5 + $0x24] sm:$0xf]
      %v1920 = vld [vmem:[%s5 + $0x28] sm:$0xf]
      %v1921 = vld [vmem:[%s5 + $0x2c] sm:$0xf]
      %v1922 = vld [vmem:[%s5 + $0x30] sm:$0xf]
      %v1923 = vld [vmem:[%s5 + $0x34] sm:$0xf]
      %v1924 = vld [vmem:[%s5 + $0x38] sm:$0xf]
      %v1925 = vld [vmem:[%s5 + $0x3c] sm:$0xf]
      %v1926 = vld [vmem:[%s5 + $0x40] sm:$0xf]
      %v1927 = vld [vmem:[%s5 + $0x44] sm:$0xf]
      %v1928 = vld [vmem:[%s5 + $0x48] sm:$0xf]
      %v1929 = vld [vmem:[%s5 + $0x4c] sm:$0xf]
      %s1930 = scalar_lea.vmem [#allocation2], 16
      %v1931 = vld [vmem:[%s1930] sm:$0xff]
      %v1932 = vld [vmem:[%s1930 + $0x8] sm:$0xff]
      %v1933 = vld [vmem:[%s1930 + $0x10] sm:$0xff]
      %v1934 = vld [vmem:[%s1930 + $0x18] sm:$0xff]
      %v1935 = vld [vmem:[%s1930 + $0x20] sm:$0xff]
      %v1936 = vld [vmem:[%s1930 + $0x28] sm:$0xff]
      %v1937 = vld [vmem:[%s1930 + $0x30] sm:$0xff]
      %v1938 = vld [vmem:[%s1930 + $0x38] sm:$0xff]
      %v1939 = vld [vmem:[%s1930 + $0x40] sm:$0xff]
      %v1940 = vld [vmem:[%s1930 + $0x48] sm:$0xff]
      %v1941 = vld [vmem:[%s1930 + $0x50] sm:$0xff]
      %v1942 = vld [vmem:[%s1930 + $0x58] sm:$0xff]
      %v1943 = vld [vmem:[%s1930 + $0x60] sm:$0xff]
      %v1944 = vld [vmem:[%s1930 + $0x68] sm:$0xff]
      %v1945 = vld [vmem:[%s1930 + $0x70] sm:$0xff]
      %v1946 = vld [vmem:[%s1930 + $0x78] sm:$0xff]
      %v1947 = vld [vmem:[%s1930 + $0x80] sm:$0xff]
      %v1948 = vld [vmem:[%s1930 + $0x88] sm:$0xff]
      %v1949 = vld [vmem:[%s1930 + $0x90] sm:$0xff]
      %v1950 = vld [vmem:[%s1930 + $0x98] sm:$0xff]
      %v1951 = vld [vmem:[%s1930 + $0xa0] sm:$0xff]
      %v1952 = vld [vmem:[%s1930 + $0xa8] sm:$0xff]
      %v1953 = vld [vmem:[%s1930 + $0xb0] sm:$0xff]
      %v1954 = vld [vmem:[%s1930 + $0xb8] sm:$0xff]
      %v1955 = vld [vmem:[%s1930 + $0xc0] sm:$0xff]
      %v1956 = vld [vmem:[%s1930 + $0xc8] sm:$0xff]
      %v1957 = vld [vmem:[%s1930 + $0xd0] sm:$0xff]
      %v1958 = vld [vmem:[%s1930 + $0xd8] sm:$0xff]
      %v1959 = vld [vmem:[%s1930 + $0xe0] sm:$0xff]
      %v1960 = vld [vmem:[%s1930 + $0xe8] sm:$0xff]
      %v1961 = vld [vmem:[%s1930 + $0xf0] sm:$0xff]
      %v1962 = vld [vmem:[%s1930 + $0xf8] sm:$0xff]
      %s1963 = scalar_lea.vmem %s5, 80
      %v1964 = vld [vmem:[%s1963] sm:$0xf]
      %v1965 = vld [vmem:[%s1963 + $0x4] sm:$0xf]
      %v1966 = vld [vmem:[%s1963 + $0x8] sm:$0xf]
      %v1967 = vld [vmem:[%s1963 + $0xc] sm:$0xf]
      %v1968 = vld [vmem:[%s1963 + $0x10] sm:$0xf]
      %v1969 = vld [vmem:[%s1963 + $0x14] sm:$0xf]
      %v1970 = vld [vmem:[%s1963 + $0x18] sm:$0xf]
      %v1971 = vld [vmem:[%s1963 + $0x1c] sm:$0xf]
      %v1972 = vld [vmem:[%s1963 + $0x20] sm:$0xf]
      %v1973 = vld [vmem:[%s1963 + $0x24] sm:$0xf]
      %v1974 = vld [vmem:[%s1963 + $0x28] sm:$0xf]
      %v1975 = vld [vmem:[%s1963 + $0x2c] sm:$0xf]
      %v1976 = vld [vmem:[%s1963 + $0x30] sm:$0xf]
      %v1977 = vld [vmem:[%s1963 + $0x34] sm:$0xf]
      %v1978 = vld [vmem:[%s1963 + $0x38] sm:$0xf]
      %v1979 = vld [vmem:[%s1963 + $0x3c] sm:$0xf]
      %v1980 = vld [vmem:[%s1963 + $0x40] sm:$0xf]
      %v1981 = vld [vmem:[%s1963 + $0x44] sm:$0xf]
      %v1982 = vld [vmem:[%s1963 + $0x48] sm:$0xf]
      %v1983 = vld [vmem:[%s1963 + $0x4c] sm:$0xf]
      %v2004 = vunpack.c.l.b16 %v1964
      %v2005 = vunpack.c.l.b16 %v1965
      %v2006 = vunpack.c.l.b16 %v1966
      %v2007 = vunpack.c.l.b16 %v1967
      %v2008 = vunpack.c.l.b16 %v1968
      %v2009 = vunpack.c.l.b16 %v1969
      %v2010 = vunpack.c.l.b16 %v1970
      %v2011 = vunpack.c.l.b16 %v1971
      %v2012 = vunpack.c.l.b16 %v1972
      %v2013 = vunpack.c.l.b16 %v1973
      %v2014 = vunpack.c.l.b16 %v1974
      %v2015 = vunpack.c.l.b16 %v1975
      %v2016 = vunpack.c.l.b16 %v1976
      %v2017 = vunpack.c.l.b16 %v1977
      %v2018 = vunpack.c.l.b16 %v1978
      %v2019 = vunpack.c.l.b16 %v1979
      %v2020 = vunpack.c.l.b16 %v1980
      %v2021 = vunpack.c.l.b16 %v1981
      %v2022 = vunpack.c.l.b16 %v1982
      %v2023 = vunpack.c.l.b16 %v1983
      %v2024 = vpack.c.b16 %v2005, %v2004
      %v2025 = vpack.c.b16 %v2007, %v2006
      %v2026 = vpack.c.b16 %v2009, %v2008
      %v2027 = vpack.c.b16 %v2011, %v2010
      %v2028 = vpack.c.b16 %v2013, %v2012
      %v2029 = vpack.c.b16 %v2015, %v2014
      %v2030 = vpack.c.b16 %v2017, %v2016
      %v2031 = vpack.c.b16 %v2019, %v2018
      %v2032 = vpack.c.b16 %v2021, %v2020
      %v2033 = vpack.c.b16 %v2023, %v2022
      %v2045 = vsel %vm1220, %v1932, 0
      %v2048 = vsel %vm1220, %v1934, 0
      %v2051 = vsel %vm1220, %v1936, 0
      %v2054 = vsel %vm1220, %v1938, 0
      %v2057 = vsel %vm1220, %v1940, 0
      %v2060 = vsel %vm1220, %v1942, 0
      %v2063 = vsel %vm1220, %v1944, 0
      %v2066 = vsel %vm1220, %v1946, 0
      %v2069 = vsel %vm1220, %v1948, 0
      %v2072 = vsel %vm1220, %v1950, 0
      %v2075 = vsel %vm1220, %v1952, 0
      %v2078 = vsel %vm1220, %v1954, 0
      %v2081 = vsel %vm1220, %v1956, 0
      %v2084 = vsel %vm1220, %v1958, 0
      %v2087 = vsel %vm1220, %v1960, 0
      %v2090 = vsel %vm1220, %v1962, 0
      %2092 = vmatprep.subr.bf16.mxu0 0
      %2093 = vmatpush1.bf16.msra.mxu0 %v2024
      %2094 = vmatprep.subr.bf16.mxu0 0
      %2095 = vmatpush1.bf16.msra.mxu0 %v2025
      %2096 = vmatprep.subr.bf16.mxu0 0
      %2097 = vmatpush1.bf16.msra.mxu0 %v2026
      %2098 = vmatprep.subr.bf16.mxu0 0
      %2099 = vmatpush1.bf16.msra.mxu0 %v2027
      %2100 = vmatprep.subr.bf16.mxu0 0
      %2101 = vmatpush1.bf16.msra.mxu0 %v2028
      %2102 = vmatprep.subr.bf16.mxu0 0
      %2103 = vmatpush1.bf16.msra.mxu0 %v2029
      %2104 = vmatprep.subr.bf16.mxu0 0
      %2105 = vmatpush1.bf16.msra.mxu0 %v2030
      %2106 = vmatprep.subr.bf16.mxu0 0
      %2107 = vmatpush1.bf16.msra.mxu0 %v2031
      %2108 = vmatprep.subr.bf16.mxu0 0
      %2109 = vmatpush1.bf16.msra.mxu0 %v2032
      %2110 = vmatprep.subr.bf16.mxu0 0
      %2111 = vmatpush1.bf16.msra.mxu0 %v2033
      %2112 = vmatprep.subr.bf16.mxu0 0
      %2113 = vmatpush1.bf16.msra.mxu0 0
      %2114 = vmatprep.subr.bf16.mxu0 0
      %2115 = vmatpush1.bf16.msra.mxu0 0
      %2116 = vmatprep.subr.bf16.mxu0 0
      %2117 = vmatpush1.bf16.msra.mxu0 0
      %2118 = vmatprep.subr.bf16.mxu0 0
      %2119 = vmatpush1.bf16.msra.mxu0 0
      %2120 = vmatprep.subr.bf16.mxu0 0
      %2121 = vmatpush1.bf16.msra.mxu0 0
      %2122 = vmatprep.subr.bf16.mxu0 0
      %2123 = vmatpush1.bf16.msra.mxu0 0
      %2124 = vmatprep.mubr.bf16.mxu0 %v2045
      %2125 = vmatmul.mubr.bf16.gmra.mrb[0].mxu0 %v1931
      %v2126 = vpop.f32.mrb[0].mxu0
      %v2127 = vadd.f32 0.0, %v2126
      %v2128 = vpop.f32.mrb[0].mxu0
      %v2129 = vpop.f32.mrb[0].mxu0
      %v2130 = vadd.f32 0.0, %v2129
      %v2131 = vpop.f32.mrb[0].mxu0
      %2132 = vmatprep.mubr.bf16.mxu0 %v2048
      %2133 = vmatmul.mubr.bf16.gmra.mrb[0].mxu0 %v1933
      %v2134 = vpop.f32.mrb[0].mxu0
      %v2135 = vadd.f32 0.0, %v2134
      %v2136 = vpop.f32.mrb[0].mxu0
      %v2137 = vpop.f32.mrb[0].mxu0
      %v2138 = vadd.f32 0.0, %v2137
      %v2139 = vpop.f32.mrb[0].mxu0
      %2140 = vmatprep.mubr.bf16.mxu0 %v2051
      %2141 = vmatmul.mubr.bf16.gmra.mrb[0].mxu0 %v1935
      %v2142 = vpop.f32.mrb[0].mxu0
      %v2143 = vadd.f32 0.0, %v2142
      %v2144 = vpop.f32.mrb[0].mxu0
      %v2145 = vpop.f32.mrb[0].mxu0
      %v2146 = vadd.f32 0.0, %v2145
      %v2147 = vpop.f32.mrb[0].mxu0
      %2148 = vmatprep.mubr.bf16.mxu0 %v2054
      %2149 = vmatmul.mubr.bf16.gmra.mrb[0].mxu0 %v1937
      %v2150 = vpop.f32.mrb[0].mxu0
      %v2151 = vadd.f32 0.0, %v2150
      %v2152 = vpop.f32.mrb[0].mxu0
      %v2153 = vpop.f32.mrb[0].mxu0
      %v2154 = vadd.f32 0.0, %v2153
      %v2155 = vpop.f32.mrb[0].mxu0
      %2156 = vmatprep.mubr.bf16.mxu0 %v2057
      %2157 = vmatmul.mubr.bf16.gmra.mrb[0].mxu0 %v1939
      %v2158 = vpop.f32.mrb[0].mxu0
      %v2159 = vadd.f32 0.0, %v2158
      %v2160 = vpop.f32.mrb[0].mxu0
      %v2161 = vpop.f32.mrb[0].mxu0
      %v2162 = vadd.f32 0.0, %v2161
      %v2163 = vpop.f32.mrb[0].mxu0
      %2164 = vmatprep.mubr.bf16.mxu0 %v2060
      %2165 = vmatmul.mubr.bf16.gmra.mrb[0].mxu0 %v1941
      %v2166 = vpop.f32.mrb[0].mxu0
      %v2167 = vadd.f32 0.0, %v2166
      %v2168 = vpop.f32.mrb[0].mxu0
      %v2169 = vpop.f32.mrb[0].mxu0
      %v2170 = vadd.f32 0.0, %v2169
      %v2171 = vpop.f32.mrb[0].mxu0
      %2172 = vmatprep.mubr.bf16.mxu0 %v2063
      %2173 = vmatmul.mubr.bf16.gmra.mrb[0].mxu0 %v1943
      %v2174 = vpop.f32.mrb[0].mxu0
      %v2175 = vadd.f32 0.0, %v2174
      %v2176 = vpop.f32.mrb[0].mxu0
      %v2177 = vpop.f32.mrb[0].mxu0
      %v2178 = vadd.f32 0.0, %v2177
      %v2179 = vpop.f32.mrb[0].mxu0
      %2180 = vmatprep.mubr.bf16.mxu0 %v2066
      %2181 = vmatmul.mubr.bf16.gmra.mrb[0].mxu0 %v1945
      %v2182 = vpop.f32.mrb[0].mxu0
      %v2183 = vadd.f32 0.0, %v2182
      %v2184 = vpop.f32.mrb[0].mxu0
      %v2185 = vpop.f32.mrb[0].mxu0
      %v2186 = vadd.f32 0.0, %v2185
      %v2187 = vpop.f32.mrb[0].mxu0
      %2188 = vmatprep.mubr.bf16.mxu0 %v2069
      %2189 = vmatmul.mubr.bf16.gmra.mrb[0].mxu0 %v1947
      %v2190 = vpop.f32.mrb[0].mxu0
      %v2191 = vadd.f32 0.0, %v2190
      %v2192 = vpop.f32.mrb[0].mxu0
      %v2193 = vpop.f32.mrb[0].mxu0
      %v2194 = vadd.f32 0.0, %v2193
      %v2195 = vpop.f32.mrb[0].mxu0
      %2196 = vmatprep.mubr.bf16.mxu0 %v2072
      %2197 = vmatmul.mubr.bf16.gmra.mrb[0].mxu0 %v1949
      %v2198 = vpop.f32.mrb[0].mxu0
      %v2199 = vadd.f32 0.0, %v2198
      %v2200 = vpop.f32.mrb[0].mxu0
      %v2201 = vpop.f32.mrb[0].mxu0
      %v2202 = vadd.f32 0.0, %v2201
      %v2203 = vpop.f32.mrb[0].mxu0
      %2204 = vmatprep.mubr.bf16.mxu0 %v2075
      %2205 = vmatmul.mubr.bf16.gmra.mrb[0].mxu0 %v1951
      %v2206 = vpop.f32.mrb[0].mxu0
      %v2207 = vadd.f32 0.0, %v2206
      %v2208 = vpop.f32.mrb[0].mxu0
      %v2209 = vpop.f32.mrb[0].mxu0
      %v2210 = vadd.f32 0.0, %v2209
      %v2211 = vpop.f32.mrb[0].mxu0
      %2212 = vmatprep.mubr.bf16.mxu0 %v2078
      %2213 = vmatmul.mubr.bf16.gmra.mrb[0].mxu0 %v1953
      %v2214 = vpop.f32.mrb[0].mxu0
      %v2215 = vadd.f32 0.0, %v2214
      %v2216 = vpop.f32.mrb[0].mxu0
      %v2217 = vpop.f32.mrb[0].mxu0
      %v2218 = vadd.f32 0.0, %v2217
      %v2219 = vpop.f32.mrb[0].mxu0
      %2220 = vmatprep.mubr.bf16.mxu0 %v2081
      %2221 = vmatmul.mubr.bf16.gmra.mrb[0].mxu0 %v1955
      %v2222 = vpop.f32.mrb[0].mxu0
      %v2223 = vadd.f32 0.0, %v2222
      %v2224 = vpop.f32.mrb[0].mxu0
      %v2225 = vpop.f32.mrb[0].mxu0
      %v2226 = vadd.f32 0.0, %v2225
      %v2227 = vpop.f32.mrb[0].mxu0
      %2228 = vmatprep.mubr.bf16.mxu0 %v2084
      %2229 = vmatmul.mubr.bf16.gmra.mrb[0].mxu0 %v1957
      %v2230 = vpop.f32.mrb[0].mxu0
      %v2231 = vadd.f32 0.0, %v2230
      %v2232 = vpop.f32.mrb[0].mxu0
      %v2233 = vpop.f32.mrb[0].mxu0
      %v2234 = vadd.f32 0.0, %v2233
      %v2235 = vpop.f32.mrb[0].mxu0
      %2236 = vmatprep.mubr.bf16.mxu0 %v2087
      %2237 = vmatmul.mubr.bf16.gmra.mrb[0].mxu0 %v1959
      %v2238 = vpop.f32.mrb[0].mxu0
      %v2239 = vadd.f32 0.0, %v2238
      %v2240 = vpop.f32.mrb[0].mxu0
      %v2241 = vpop.f32.mrb[0].mxu0
      %v2242 = vadd.f32 0.0, %v2241
      %v2243 = vpop.f32.mrb[0].mxu0
      %2244 = vmatprep.mubr.bf16.mxu0 %v2090
      %2245 = vmatmul.mubr.bf16.gmra.mrb[0].mxu0 %v1961
      %v2246 = vpop.f32.mrb[0].mxu0
      %v2247 = vadd.f32 0.0, %v2246
      %v2248 = vpop.f32.mrb[0].mxu0
      %v2249 = vpop.f32.mrb[0].mxu0
      %v2250 = vadd.f32 0.0, %v2249
      %v2251 = vpop.f32.mrb[0].mxu0
      %2252 = vdwg.mxu0
      %v2273 = vunpack.c.l.b16 %v1910
      %v2274 = vunpack.c.l.b16 %v1911
      %v2275 = vunpack.c.l.b16 %v1912
      %v2276 = vunpack.c.l.b16 %v1913
      %v2277 = vunpack.c.l.b16 %v1914
      %v2278 = vunpack.c.l.b16 %v1915
      %v2279 = vunpack.c.l.b16 %v1916
      %v2280 = vunpack.c.l.b16 %v1917
      %v2281 = vunpack.c.l.b16 %v1918
      %v2282 = vunpack.c.l.b16 %v1919
      %v2283 = vunpack.c.l.b16 %v1920
      %v2284 = vunpack.c.l.b16 %v1921
      %v2285 = vunpack.c.l.b16 %v1922
      %v2286 = vunpack.c.l.b16 %v1923
      %v2287 = vunpack.c.l.b16 %v1924
      %v2288 = vunpack.c.l.b16 %v1925
      %v2289 = vunpack.c.l.b16 %v1926
      %v2290 = vunpack.c.l.b16 %v1927
      %v2291 = vunpack.c.l.b16 %v1928
      %v2292 = vunpack.c.l.b16 %v1929
      %v2293 = vpack.c.b16 %v2274, %v2273
      %v2294 = vpack.c.b16 %v2276, %v2275
      %v2295 = vpack.c.b16 %v2278, %v2277
      %v2296 = vpack.c.b16 %v2280, %v2279
      %v2297 = vpack.c.b16 %v2282, %v2281
      %v2298 = vpack.c.b16 %v2284, %v2283
      %v2299 = vpack.c.b16 %v2286, %v2285
      %v2300 = vpack.c.b16 %v2288, %v2287
      %v2301 = vpack.c.b16 %v2290, %v2289
      %v2302 = vpack.c.b16 %v2292, %v2291
      %v2314 = vsel %vm1220, %v1879, 0
      %v2317 = vsel %vm1220, %v1881, 0
      %v2320 = vsel %vm1220, %v1883, 0
      %v2323 = vsel %vm1220, %v1885, 0
      %v2326 = vsel %vm1220, %v1887, 0
      %v2329 = vsel %vm1220, %v1889, 0
      %v2332 = vsel %vm1220, %v1891, 0
      %v2335 = vsel %vm1220, %v1893, 0
      %v2338 = vsel %vm1220, %v1895, 0
      %v2341 = vsel %vm1220, %v1897, 0
      %v2344 = vsel %vm1220, %v1899, 0
      %v2347 = vsel %vm1220, %v1901, 0
      %v2350 = vsel %vm1220, %v1903, 0
      %v2353 = vsel %vm1220, %v1905, 0
      %v2356 = vsel %vm1220, %v1907, 0
      %v2359 = vsel %vm1220, %v1909, 0
      %2361 = vmatprep.subr.bf16.mxu0 0
      %2362 = vmatpush1.bf16.msra.mxu0 %v2293
      %2363 = vmatprep.subr.bf16.mxu0 0
      %2364 = vmatpush1.bf16.msra.mxu0 %v2294
      %2365 = vmatprep.subr.bf16.mxu0 0
      %2366 = vmatpush1.bf16.msra.mxu0 %v2295
      %2367 = vmatprep.subr.bf16.mxu0 0
      %2368 = vmatpush1.bf16.msra.mxu0 %v2296
      %2369 = vmatprep.subr.bf16.mxu0 0
      %2370 = vmatpush1.bf16.msra.mxu0 %v2297
      %2371 = vmatprep.subr.bf16.mxu0 0
      %2372 = vmatpush1.bf16.msra.mxu0 %v2298
      %2373 = vmatprep.subr.bf16.mxu0 0
      %2374 = vmatpush1.bf16.msra.mxu0 %v2299
      %2375 = vmatprep.subr.bf16.mxu0 0
      %2376 = vmatpush1.bf16.msra.mxu0 %v2300
      %2377 = vmatprep.subr.bf16.mxu0 0
      %2378 = vmatpush1.bf16.msra.mxu0 %v2301
      %2379 = vmatprep.subr.bf16.mxu0 0
      %2380 = vmatpush1.bf16.msra.mxu0 %v2302
      %2381 = vmatprep.subr.bf16.mxu0 0
      %2382 = vmatpush1.bf16.msra.mxu0 0
      %2383 = vmatprep.subr.bf16.mxu0 0
      %2384 = vmatpush1.bf16.msra.mxu0 0
      %2385 = vmatprep.subr.bf16.mxu0 0
      %2386 = vmatpush1.bf16.msra.mxu0 0
      %2387 = vmatprep.subr.bf16.mxu0 0
      %2388 = vmatpush1.bf16.msra.mxu0 0
      %2389 = vmatprep.subr.bf16.mxu0 0
      %2390 = vmatpush1.bf16.msra.mxu0 0
      %2391 = vmatprep.subr.bf16.mxu0 0
      %2392 = vmatpush1.bf16.msra.mxu0 0
      %2393 = vmatprep.mubr.bf16.mxu0 %v2314
      %2394 = vmatmul.mubr.bf16.gmra.mrb[0].mxu0 %v1878
      %v2395 = vpop.f32.mrb[0].mxu0
      %v2396 = vadd.f32 %v2127, %v2395
      %v2397 = vpop.f32.mrb[0].mxu0
      %v2398 = vpop.f32.mrb[0].mxu0
      %v2399 = vadd.f32 %v2130, %v2398
      %v2400 = vpop.f32.mrb[0].mxu0
      %2401 = vmatprep.mubr.bf16.mxu0 %v2317
      %2402 = vmatmul.mubr.bf16.gmra.mrb[0].mxu0 %v1880
      %v2403 = vpop.f32.mrb[0].mxu0
      %v2404 = vadd.f32 %v2135, %v2403
      %v2405 = vpop.f32.mrb[0].mxu0
      %v2406 = vpop.f32.mrb[0].mxu0
      %v2407 = vadd.f32 %v2138, %v2406
      %v2408 = vpop.f32.mrb[0].mxu0
      %2409 = vmatprep.mubr.bf16.mxu0 %v2320
      %2410 = vmatmul.mubr.bf16.gmra.mrb[0].mxu0 %v1882
      %v2411 = vpop.f32.mrb[0].mxu0
      %v2412 = vadd.f32 %v2143, %v2411
      %v2413 = vpop.f32.mrb[0].mxu0
      %v2414 = vpop.f32.mrb[0].mxu0
      %v2415 = vadd.f32 %v2146, %v2414
      %v2416 = vpop.f32.mrb[0].mxu0
      %2417 = vmatprep.mubr.bf16.mxu0 %v2323
      %2418 = vmatmul.mubr.bf16.gmra.mrb[0].mxu0 %v1884
      %v2419 = vpop.f32.mrb[0].mxu0
      %v2420 = vadd.f32 %v2151, %v2419
      %v2421 = vpop.f32.mrb[0].mxu0
      %v2422 = vpop.f32.mrb[0].mxu0
      %v2423 = vadd.f32 %v2154, %v2422
      %v2424 = vpop.f32.mrb[0].mxu0
      %2425 = vmatprep.mubr.bf16.mxu0 %v2326
      %2426 = vmatmul.mubr.bf16.gmra.mrb[0].mxu0 %v1886
      %v2427 = vpop.f32.mrb[0].mxu0
      %v2428 = vadd.f32 %v2159, %v2427
      %v2429 = vpop.f32.mrb[0].mxu0
      %v2430 = vpop.f32.mrb[0].mxu0
      %v2431 = vadd.f32 %v2162, %v2430
      %v2432 = vpop.f32.mrb[0].mxu0
      %2433 = vmatprep.mubr.bf16.mxu0 %v2329
      %2434 = vmatmul.mubr.bf16.gmra.mrb[0].mxu0 %v1888
      %v2435 = vpop.f32.mrb[0].mxu0
      %v2436 = vadd.f32 %v2167, %v2435
      %v2437 = vpop.f32.mrb[0].mxu0
      %v2438 = vpop.f32.mrb[0].mxu0
      %v2439 = vadd.f32 %v2170, %v2438
      %v2440 = vpop.f32.mrb[0].mxu0
      %2441 = vmatprep.mubr.bf16.mxu0 %v2332
      %2442 = vmatmul.mubr.bf16.gmra.mrb[0].mxu0 %v1890
      %v2443 = vpop.f32.mrb[0].mxu0
      %v2444 = vadd.f32 %v2175, %v2443
      %v2445 = vpop.f32.mrb[0].mxu0
      %v2446 = vpop.f32.mrb[0].mxu0
      %v2447 = vadd.f32 %v2178, %v2446
      %v2448 = vpop.f32.mrb[0].mxu0
      %2449 = vmatprep.mubr.bf16.mxu0 %v2335
      %2450 = vmatmul.mubr.bf16.gmra.mrb[0].mxu0 %v1892
      %v2451 = vpop.f32.mrb[0].mxu0
      %v2452 = vadd.f32 %v2183, %v2451
      %v2453 = vpop.f32.mrb[0].mxu0
      %v2454 = vpop.f32.mrb[0].mxu0
      %v2455 = vadd.f32 %v2186, %v2454
      %v2456 = vpop.f32.mrb[0].mxu0
      %2457 = vmatprep.mubr.bf16.mxu0 %v2338
      %2458 = vmatmul.mubr.bf16.gmra.mrb[0].mxu0 %v1894
      %v2459 = vpop.f32.mrb[0].mxu0
      %v2460 = vadd.f32 %v2191, %v2459
      %v2461 = vpop.f32.mrb[0].mxu0
      %v2462 = vpop.f32.mrb[0].mxu0
      %v2463 = vadd.f32 %v2194, %v2462
      %v2464 = vpop.f32.mrb[0].mxu0
      %2465 = vmatprep.mubr.bf16.mxu0 %v2341
      %2466 = vmatmul.mubr.bf16.gmra.mrb[0].mxu0 %v1896
      %v2467 = vpop.f32.mrb[0].mxu0
      %v2468 = vadd.f32 %v2199, %v2467
      %v2469 = vpop.f32.mrb[0].mxu0
      %v2470 = vpop.f32.mrb[0].mxu0
      %v2471 = vadd.f32 %v2202, %v2470
      %v2472 = vpop.f32.mrb[0].mxu0
      %2473 = vmatprep.mubr.bf16.mxu0 %v2344
      %2474 = vmatmul.mubr.bf16.gmra.mrb[0].mxu0 %v1898
      %v2475 = vpop.f32.mrb[0].mxu0
      %v2476 = vadd.f32 %v2207, %v2475
      %v2477 = vpop.f32.mrb[0].mxu0
      %v2478 = vpop.f32.mrb[0].mxu0
      %v2479 = vadd.f32 %v2210, %v2478
      %v2480 = vpop.f32.mrb[0].mxu0
      %2481 = vmatprep.mubr.bf16.mxu0 %v2347
      %2482 = vmatmul.mubr.bf16.gmra.mrb[0].mxu0 %v1900
      %v2483 = vpop.f32.mrb[0].mxu0
      %v2484 = vadd.f32 %v2215, %v2483
      %v2485 = vpop.f32.mrb[0].mxu0
      %v2486 = vpop.f32.mrb[0].mxu0
      %v2487 = vadd.f32 %v2218, %v2486
      %v2488 = vpop.f32.mrb[0].mxu0
      %2489 = vmatprep.mubr.bf16.mxu0 %v2350
      %2490 = vmatmul.mubr.bf16.gmra.mrb[0].mxu0 %v1902
      %v2491 = vpop.f32.mrb[0].mxu0
      %v2492 = vadd.f32 %v2223, %v2491
      %v2493 = vpop.f32.mrb[0].mxu0
      %v2494 = vpop.f32.mrb[0].mxu0
      %v2495 = vadd.f32 %v2226, %v2494
      %v2496 = vpop.f32.mrb[0].mxu0
      %2497 = vmatprep.mubr.bf16.mxu0 %v2353
      %2498 = vmatmul.mubr.bf16.gmra.mrb[0].mxu0 %v1904
      %v2499 = vpop.f32.mrb[0].mxu0
      %v2500 = vadd.f32 %v2231, %v2499
      %v2501 = vpop.f32.mrb[0].mxu0
      %v2502 = vpop.f32.mrb[0].mxu0
      %v2503 = vadd.f32 %v2234, %v2502
      %v2504 = vpop.f32.mrb[0].mxu0
      %2505 = vmatprep.mubr.bf16.mxu0 %v2356
      %2506 = vmatmul.mubr.bf16.gmra.mrb[0].mxu0 %v1906
      %v2507 = vpop.f32.mrb[0].mxu0
      %v2508 = vadd.f32 %v2239, %v2507
      %v2509 = vpop.f32.mrb[0].mxu0
      %v2510 = vpop.f32.mrb[0].mxu0
      %v2511 = vadd.f32 %v2242, %v2510
      %v2512 = vpop.f32.mrb[0].mxu0
      %2513 = vmatprep.mubr.bf16.mxu0 %v2359
      %2514 = vmatmul.mubr.bf16.gmra.mrb[0].mxu0 %v1908
      %v2515 = vpop.f32.mrb[0].mxu0
      %v2516 = vadd.f32 %v2247, %v2515
      %v2517 = vpop.f32.mrb[0].mxu0
      %v2518 = vpop.f32.mrb[0].mxu0
      %v2519 = vadd.f32 %v2250, %v2518
      %v2520 = vpop.f32.mrb[0].mxu0
      %2521 = vdwg.mxu0
      %v2522 = vld [vmem:[%s1219] sm:$0xff]
      %v2523 = vld [vmem:[%s1219 + $0x8] sm:$0xff]
      %v2524 = vld [vmem:[%s1219 + $0x10] sm:$0xff]
      %v2525 = vld [vmem:[%s1219 + $0x18] sm:$0xff]
      %v2526 = vld [vmem:[%s1219 + $0x20] sm:$0xff]
      %v2527 = vld [vmem:[%s1219 + $0x28] sm:$0xff]
      %v2528 = vld [vmem:[%s1219 + $0x30] sm:$0xff]
      %v2529 = vld [vmem:[%s1219 + $0x38] sm:$0xff]
      %v2530 = vld [vmem:[%s1219 + $0x40] sm:$0xff]
      %v2531 = vld [vmem:[%s1219 + $0x48] sm:$0xff]
      %v2532 = vld [vmem:[%s1219 + $0x50] sm:$0xff]
      %v2533 = vld [vmem:[%s1219 + $0x58] sm:$0xff]
      %v2534 = vld [vmem:[%s1219 + $0x60] sm:$0xff]
      %v2535 = vld [vmem:[%s1219 + $0x68] sm:$0xff]
      %v2536 = vld [vmem:[%s1219 + $0x70] sm:$0xff]
      %v2537 = vld [vmem:[%s1219 + $0x78] sm:$0xff]
      %v2538 = vld [vmem:[%s1219 + $0x80] sm:$0xff]
      %v2539 = vld [vmem:[%s1219 + $0x88] sm:$0xff]
      %v2540 = vld [vmem:[%s1219 + $0x90] sm:$0xff]
      %v2541 = vld [vmem:[%s1219 + $0x98] sm:$0xff]
      %v2542 = vld [vmem:[%s1219 + $0xa0] sm:$0xff]
      %v2543 = vld [vmem:[%s1219 + $0xa8] sm:$0xff]
      %v2544 = vld [vmem:[%s1219 + $0xb0] sm:$0xff]
      %v2545 = vld [vmem:[%s1219 + $0xb8] sm:$0xff]
      %v2546 = vld [vmem:[%s1219 + $0xc0] sm:$0xff]
      %v2547 = vld [vmem:[%s1219 + $0xc8] sm:$0xff]
      %v2548 = vld [vmem:[%s1219 + $0xd0] sm:$0xff]
      %v2549 = vld [vmem:[%s1219 + $0xd8] sm:$0xff]
      %v2550 = vld [vmem:[%s1219 + $0xe0] sm:$0xff]
      %v2551 = vld [vmem:[%s1219 + $0xe8] sm:$0xff]
      %v2552 = vld [vmem:[%s1219 + $0xf0] sm:$0xff]
      %v2553 = vld [vmem:[%s1219 + $0xf8] sm:$0xff]
      %s2554 = scalar_lea.vmem %s5, 160
      %v2555 = vld [vmem:[%s2554] sm:$0xf]
      %v2556 = vld [vmem:[%s2554 + $0x4] sm:$0xf]
      %v2557 = vld [vmem:[%s2554 + $0x8] sm:$0xf]
      %v2558 = vld [vmem:[%s2554 + $0xc] sm:$0xf]
      %v2559 = vld [vmem:[%s2554 + $0x10] sm:$0xf]
      %v2560 = vld [vmem:[%s2554 + $0x14] sm:$0xf]
      %v2561 = vld [vmem:[%s2554 + $0x18] sm:$0xf]
      %v2562 = vld [vmem:[%s2554 + $0x1c] sm:$0xf]
      %v2563 = vld [vmem:[%s2554 + $0x20] sm:$0xf]
      %v2564 = vld [vmem:[%s2554 + $0x24] sm:$0xf]
      %v2565 = vld [vmem:[%s2554 + $0x28] sm:$0xf]
      %v2566 = vld [vmem:[%s2554 + $0x2c] sm:$0xf]
      %v2567 = vld [vmem:[%s2554 + $0x30] sm:$0xf]
      %v2568 = vld [vmem:[%s2554 + $0x34] sm:$0xf]
      %v2569 = vld [vmem:[%s2554 + $0x38] sm:$0xf]
      %v2570 = vld [vmem:[%s2554 + $0x3c] sm:$0xf]
      %v2571 = vld [vmem:[%s2554 + $0x40] sm:$0xf]
      %v2572 = vld [vmem:[%s2554 + $0x44] sm:$0xf]
      %v2573 = vld [vmem:[%s2554 + $0x48] sm:$0xf]
      %v2574 = vld [vmem:[%s2554 + $0x4c] sm:$0xf]
      %v2595 = vunpack.c.l.b16 %v2555
      %v2596 = vunpack.c.l.b16 %v2556
      %v2597 = vunpack.c.l.b16 %v2557
      %v2598 = vunpack.c.l.b16 %v2558
      %v2599 = vunpack.c.l.b16 %v2559
      %v2600 = vunpack.c.l.b16 %v2560
      %v2601 = vunpack.c.l.b16 %v2561
      %v2602 = vunpack.c.l.b16 %v2562
      %v2603 = vunpack.c.l.b16 %v2563
      %v2604 = vunpack.c.l.b16 %v2564
      %v2605 = vunpack.c.l.b16 %v2565
      %v2606 = vunpack.c.l.b16 %v2566
      %v2607 = vunpack.c.l.b16 %v2567
      %v2608 = vunpack.c.l.b16 %v2568
      %v2609 = vunpack.c.l.b16 %v2569
      %v2610 = vunpack.c.l.b16 %v2570
      %v2611 = vunpack.c.l.b16 %v2571
      %v2612 = vunpack.c.l.b16 %v2572
      %v2613 = vunpack.c.l.b16 %v2573
      %v2614 = vunpack.c.l.b16 %v2574
      %v2615 = vpack.c.b16 %v2596, %v2595
      %v2616 = vpack.c.b16 %v2598, %v2597
      %v2617 = vpack.c.b16 %v2600, %v2599
      %v2618 = vpack.c.b16 %v2602, %v2601
      %v2619 = vpack.c.b16 %v2604, %v2603
      %v2620 = vpack.c.b16 %v2606, %v2605
      %v2621 = vpack.c.b16 %v2608, %v2607
      %v2622 = vpack.c.b16 %v2610, %v2609
      %v2623 = vpack.c.b16 %v2612, %v2611
      %v2624 = vpack.c.b16 %v2614, %v2613
      %v2636 = vsel %vm1220, %v2523, 0
      %v2639 = vsel %vm1220, %v2525, 0
      %v2642 = vsel %vm1220, %v2527, 0
      %v2645 = vsel %vm1220, %v2529, 0
      %v2648 = vsel %vm1220, %v2531, 0
      %v2651 = vsel %vm1220, %v2533, 0
      %v2654 = vsel %vm1220, %v2535, 0
      %v2657 = vsel %vm1220, %v2537, 0
      %v2660 = vsel %vm1220, %v2539, 0
      %v2663 = vsel %vm1220, %v2541, 0
      %v2666 = vsel %vm1220, %v2543, 0
      %v2669 = vsel %vm1220, %v2545, 0
      %v2672 = vsel %vm1220, %v2547, 0
      %v2675 = vsel %vm1220, %v2549, 0
      %v2678 = vsel %vm1220, %v2551, 0
      %v2681 = vsel %vm1220, %v2553, 0
      %2683 = vmatprep.subr.bf16.mxu0 0
      %2684 = vmatpush1.bf16.msra.mxu0 %v2615
      %2685 = vmatprep.subr.bf16.mxu0 0
      %2686 = vmatpush1.bf16.msra.mxu0 %v2616
      %2687 = vmatprep.subr.bf16.mxu0 0
      %2688 = vmatpush1.bf16.msra.mxu0 %v2617
      %2689 = vmatprep.subr.bf16.mxu0 0
      %2690 = vmatpush1.bf16.msra.mxu0 %v2618
      %2691 = vmatprep.subr.bf16.mxu0 0
      %2692 = vmatpush1.bf16.msra.mxu0 %v2619
      %2693 = vmatprep.subr.bf16.mxu0 0
      %2694 = vmatpush1.bf16.msra.mxu0 %v2620
      %2695 = vmatprep.subr.bf16.mxu0 0
      %2696 = vmatpush1.bf16.msra.mxu0 %v2621
      %2697 = vmatprep.subr.bf16.mxu0 0
      %2698 = vmatpush1.bf16.msra.mxu0 %v2622
      %2699 = vmatprep.subr.bf16.mxu0 0
      %2700 = vmatpush1.bf16.msra.mxu0 %v2623
      %2701 = vmatprep.subr.bf16.mxu0 0
      %2702 = vmatpush1.bf16.msra.mxu0 %v2624
      %2703 = vmatprep.subr.bf16.mxu0 0
      %2704 = vmatpush1.bf16.msra.mxu0 0
      %2705 = vmatprep.subr.bf16.mxu0 0
      %2706 = vmatpush1.bf16.msra.mxu0 0
      %2707 = vmatprep.subr.bf16.mxu0 0
      %2708 = vmatpush1.bf16.msra.mxu0 0
      %2709 = vmatprep.subr.bf16.mxu0 0
      %2710 = vmatpush1.bf16.msra.mxu0 0
      %2711 = vmatprep.subr.bf16.mxu0 0
      %2712 = vmatpush1.bf16.msra.mxu0 0
      %2713 = vmatprep.subr.bf16.mxu0 0
      %2714 = vmatpush1.bf16.msra.mxu0 0
      %2715 = vmatprep.mubr.bf16.mxu0 %v2636
      %2716 = vmatmul.mubr.bf16.gmra.mrb[0].mxu0 %v2522
      %v2717 = vpop.f32.mrb[0].mxu0
      %v2718 = vadd.f32 0.0, %v2717
      %v2719 = vpop.f32.mrb[0].mxu0
      %v2720 = vpop.f32.mrb[0].mxu0
      %v2721 = vadd.f32 0.0, %v2720
      %v2722 = vpop.f32.mrb[0].mxu0
      %2723 = vmatprep.mubr.bf16.mxu0 %v2639
      %2724 = vmatmul.mubr.bf16.gmra.mrb[0].mxu0 %v2524
      %v2725 = vpop.f32.mrb[0].mxu0
      %v2726 = vadd.f32 0.0, %v2725
      %v2727 = vpop.f32.mrb[0].mxu0
      %v2728 = vpop.f32.mrb[0].mxu0
      %v2729 = vadd.f32 0.0, %v2728
      %v2730 = vpop.f32.mrb[0].mxu0
      %2731 = vmatprep.mubr.bf16.mxu0 %v2642
      %2732 = vmatmul.mubr.bf16.gmra.mrb[0].mxu0 %v2526
      %v2733 = vpop.f32.mrb[0].mxu0
      %v2734 = vadd.f32 0.0, %v2733
      %v2735 = vpop.f32.mrb[0].mxu0
      %v2736 = vpop.f32.mrb[0].mxu0
      %v2737 = vadd.f32 0.0, %v2736
      %v2738 = vpop.f32.mrb[0].mxu0
      %2739 = vmatprep.mubr.bf16.mxu0 %v2645
      %2740 = vmatmul.mubr.bf16.gmra.mrb[0].mxu0 %v2528
      %v2741 = vpop.f32.mrb[0].mxu0
      %v2742 = vadd.f32 0.0, %v2741
      %v2743 = vpop.f32.mrb[0].mxu0
      %v2744 = vpop.f32.mrb[0].mxu0
      %v2745 = vadd.f32 0.0, %v2744
      %v2746 = vpop.f32.mrb[0].mxu0
      %2747 = vmatprep.mubr.bf16.mxu0 %v2648
      %2748 = vmatmul.mubr.bf16.gmra.mrb[0].mxu0 %v2530
      %v2749 = vpop.f32.mrb[0].mxu0
      %v2750 = vadd.f32 0.0, %v2749
      %v2751 = vpop.f32.mrb[0].mxu0
      %v2752 = vpop.f32.mrb[0].mxu0
      %v2753 = vadd.f32 0.0, %v2752
      %v2754 = vpop.f32.mrb[0].mxu0
      %2755 = vmatprep.mubr.bf16.mxu0 %v2651
      %2756 = vmatmul.mubr.bf16.gmra.mrb[0].mxu0 %v2532
      %v2757 = vpop.f32.mrb[0].mxu0
      %v2758 = vadd.f32 0.0, %v2757
      %v2759 = vpop.f32.mrb[0].mxu0
      %v2760 = vpop.f32.mrb[0].mxu0
      %v2761 = vadd.f32 0.0, %v2760
      %v2762 = vpop.f32.mrb[0].mxu0
      %2763 = vmatprep.mubr.bf16.mxu0 %v2654
      %2764 = vmatmul.mubr.bf16.gmra.mrb[0].mxu0 %v2534
      %v2765 = vpop.f32.mrb[0].mxu0
      %v2766 = vadd.f32 0.0, %v2765
      %v2767 = vpop.f32.mrb[0].mxu0
      %v2768 = vpop.f32.mrb[0].mxu0
      %v2769 = vadd.f32 0.0, %v2768
      %v2770 = vpop.f32.mrb[0].mxu0
      %2771 = vmatprep.mubr.bf16.mxu0 %v2657
      %2772 = vmatmul.mubr.bf16.gmra.mrb[0].mxu0 %v2536
      %v2773 = vpop.f32.mrb[0].mxu0
      %v2774 = vadd.f32 0.0, %v2773
      %v2775 = vpop.f32.mrb[0].mxu0
      %v2776 = vpop.f32.mrb[0].mxu0
      %v2777 = vadd.f32 0.0, %v2776
      %v2778 = vpop.f32.mrb[0].mxu0
      %2779 = vmatprep.mubr.bf16.mxu0 %v2660
      %2780 = vmatmul.mubr.bf16.gmra.mrb[0].mxu0 %v2538
      %v2781 = vpop.f32.mrb[0].mxu0
      %v2782 = vadd.f32 0.0, %v2781
      %v2783 = vpop.f32.mrb[0].mxu0
      %v2784 = vpop.f32.mrb[0].mxu0
      %v2785 = vadd.f32 0.0, %v2784
      %v2786 = vpop.f32.mrb[0].mxu0
      %2787 = vmatprep.mubr.bf16.mxu0 %v2663
      %2788 = vmatmul.mubr.bf16.gmra.mrb[0].mxu0 %v2540
      %v2789 = vpop.f32.mrb[0].mxu0
      %v2790 = vadd.f32 0.0, %v2789
      %v2791 = vpop.f32.mrb[0].mxu0
      %v2792 = vpop.f32.mrb[0].mxu0
      %v2793 = vadd.f32 0.0, %v2792
      %v2794 = vpop.f32.mrb[0].mxu0
      %2795 = vmatprep.mubr.bf16.mxu0 %v2666
      %2796 = vmatmul.mubr.bf16.gmra.mrb[0].mxu0 %v2542
      %v2797 = vpop.f32.mrb[0].mxu0
      %v2798 = vadd.f32 0.0, %v2797
      %v2799 = vpop.f32.mrb[0].mxu0
      %v2800 = vpop.f32.mrb[0].mxu0
      %v2801 = vadd.f32 0.0, %v2800
      %v2802 = vpop.f32.mrb[0].mxu0
      %2803 = vmatprep.mubr.bf16.mxu0 %v2669
      %2804 = vmatmul.mubr.bf16.gmra.mrb[0].mxu0 %v2544
      %v2805 = vpop.f32.mrb[0].mxu0
      %v2806 = vadd.f32 0.0, %v2805
      %v2807 = vpop.f32.mrb[0].mxu0
      %v2808 = vpop.f32.mrb[0].mxu0
      %v2809 = vadd.f32 0.0, %v2808
      %v2810 = vpop.f32.mrb[0].mxu0
      %2811 = vmatprep.mubr.bf16.mxu0 %v2672
      %2812 = vmatmul.mubr.bf16.gmra.mrb[0].mxu0 %v2546
      %v2813 = vpop.f32.mrb[0].mxu0
      %v2814 = vadd.f32 0.0, %v2813
      %v2815 = vpop.f32.mrb[0].mxu0
      %v2816 = vpop.f32.mrb[0].mxu0
      %v2817 = vadd.f32 0.0, %v2816
      %v2818 = vpop.f32.mrb[0].mxu0
      %2819 = vmatprep.mubr.bf16.mxu0 %v2675
      %2820 = vmatmul.mubr.bf16.gmra.mrb[0].mxu0 %v2548
      %v2821 = vpop.f32.mrb[0].mxu0
      %v2822 = vadd.f32 0.0, %v2821
      %v2823 = vpop.f32.mrb[0].mxu0
      %v2824 = vpop.f32.mrb[0].mxu0
      %v2825 = vadd.f32 0.0, %v2824
      %v2826 = vpop.f32.mrb[0].mxu0
      %2827 = vmatprep.mubr.bf16.mxu0 %v2678
      %2828 = vmatmul.mubr.bf16.gmra.mrb[0].mxu0 %v2550
      %v2829 = vpop.f32.mrb[0].mxu0
      %v2830 = vadd.f32 0.0, %v2829
      %v2831 = vpop.f32.mrb[0].mxu0
      %v2832 = vpop.f32.mrb[0].mxu0
      %v2833 = vadd.f32 0.0, %v2832
      %v2834 = vpop.f32.mrb[0].mxu0
      %2835 = vmatprep.mubr.bf16.mxu0 %v2681
      %2836 = vmatmul.mubr.bf16.gmra.mrb[0].mxu0 %v2552
      %v2837 = vpop.f32.mrb[0].mxu0
      %v2838 = vadd.f32 0.0, %v2837
      %v2839 = vpop.f32.mrb[0].mxu0
      %v2840 = vpop.f32.mrb[0].mxu0
      %v2841 = vadd.f32 0.0, %v2840
      %v2842 = vpop.f32.mrb[0].mxu0
      %2843 = vdwg.mxu0
      %v2844 = vadd.f32 %v2396, %v2718
      %v2845 = vadd.f32 %v2399, %v2721
      %v2846 = vadd.f32 %v2404, %v2726
      %v2847 = vadd.f32 %v2407, %v2729
      %v2848 = vadd.f32 %v2412, %v2734
      %v2849 = vadd.f32 %v2415, %v2737
      %v2850 = vadd.f32 %v2420, %v2742
      %v2851 = vadd.f32 %v2423, %v2745
      %v2852 = vadd.f32 %v2428, %v2750
      %v2853 = vadd.f32 %v2431, %v2753
      %v2854 = vadd.f32 %v2436, %v2758
      %v2855 = vadd.f32 %v2439, %v2761
      %v2856 = vadd.f32 %v2444, %v2766
      %v2857 = vadd.f32 %v2447, %v2769
      %v2858 = vadd.f32 %v2452, %v2774
      %v2859 = vadd.f32 %v2455, %v2777
      %v2860 = vadd.f32 %v2460, %v2782
      %v2861 = vadd.f32 %v2463, %v2785
      %v2862 = vadd.f32 %v2468, %v2790
      %v2863 = vadd.f32 %v2471, %v2793
      %v2864 = vadd.f32 %v2476, %v2798
      %v2865 = vadd.f32 %v2479, %v2801
      %v2866 = vadd.f32 %v2484, %v2806
      %v2867 = vadd.f32 %v2487, %v2809
      %v2868 = vadd.f32 %v2492, %v2814
      %v2869 = vadd.f32 %v2495, %v2817
      %v2870 = vadd.f32 %v2500, %v2822
      %v2871 = vadd.f32 %v2503, %v2825
      %v2872 = vadd.f32 %v2508, %v2830
      %v2873 = vadd.f32 %v2511, %v2833
      %v2874 = vadd.f32 %v2516, %v2838
      %v2875 = vadd.f32 %v2519, %v2841
      %s2876 = scalar_lea.vmem [#allocation2], 48
      %v2877 = vld [vmem:[%s2876] sm:$0xff]
      %v2878 = vld [vmem:[%s2876 + $0x8] sm:$0xff]
      %v2879 = vld [vmem:[%s2876 + $0x10] sm:$0xff]
      %v2880 = vld [vmem:[%s2876 + $0x18] sm:$0xff]
      %v2881 = vld [vmem:[%s2876 + $0x20] sm:$0xff]
      %v2882 = vld [vmem:[%s2876 + $0x28] sm:$0xff]
      %v2883 = vld [vmem:[%s2876 + $0x30] sm:$0xff]
      %v2884 = vld [vmem:[%s2876 + $0x38] sm:$0xff]
      %v2885 = vld [vmem:[%s2876 + $0x40] sm:$0xff]
      %v2886 = vld [vmem:[%s2876 + $0x48] sm:$0xff]
      %v2887 = vld [vmem:[%s2876 + $0x50] sm:$0xff]
      %v2888 = vld [vmem:[%s2876 + $0x58] sm:$0xff]
      %v2889 = vld [vmem:[%s2876 + $0x60] sm:$0xff]
      %v2890 = vld [vmem:[%s2876 + $0x68] sm:$0xff]
      %v2891 = vld [vmem:[%s2876 + $0x70] sm:$0xff]
      %v2892 = vld [vmem:[%s2876 + $0x78] sm:$0xff]
      %v2893 = vld [vmem:[%s2876 + $0x80] sm:$0xff]
      %v2894 = vld [vmem:[%s2876 + $0x88] sm:$0xff]
      %v2895 = vld [vmem:[%s2876 + $0x90] sm:$0xff]
      %v2896 = vld [vmem:[%s2876 + $0x98] sm:$0xff]
      %v2897 = vld [vmem:[%s2876 + $0xa0] sm:$0xff]
      %v2898 = vld [vmem:[%s2876 + $0xa8] sm:$0xff]
      %v2899 = vld [vmem:[%s2876 + $0xb0] sm:$0xff]
      %v2900 = vld [vmem:[%s2876 + $0xb8] sm:$0xff]
      %v2901 = vld [vmem:[%s2876 + $0xc0] sm:$0xff]
      %v2902 = vld [vmem:[%s2876 + $0xc8] sm:$0xff]
      %v2903 = vld [vmem:[%s2876 + $0xd0] sm:$0xff]
      %v2904 = vld [vmem:[%s2876 + $0xd8] sm:$0xff]
      %v2905 = vld [vmem:[%s2876 + $0xe0] sm:$0xff]
      %v2906 = vld [vmem:[%s2876 + $0xe8] sm:$0xff]
      %v2907 = vld [vmem:[%s2876 + $0xf0] sm:$0xff]
      %v2908 = vld [vmem:[%s2876 + $0xf8] sm:$0xff]
      %s2909 = scalar_lea.vmem %s5, 240
      %v2910 = vld [vmem:[%s2909] sm:$0xf]
      %v2911 = vld [vmem:[%s2909 + $0x4] sm:$0xf]
      %v2912 = vld [vmem:[%s2909 + $0x8] sm:$0xf]
      %v2913 = vld [vmem:[%s2909 + $0xc] sm:$0xf]
      %v2914 = vld [vmem:[%s2909 + $0x10] sm:$0xf]
      %v2915 = vld [vmem:[%s2909 + $0x14] sm:$0xf]
      %v2916 = vld [vmem:[%s2909 + $0x18] sm:$0xf]
      %v2917 = vld [vmem:[%s2909 + $0x1c] sm:$0xf]
      %v2918 = vld [vmem:[%s2909 + $0x20] sm:$0xf]
      %v2919 = vld [vmem:[%s2909 + $0x24] sm:$0xf]
      %v2920 = vld [vmem:[%s2909 + $0x28] sm:$0xf]
      %v2921 = vld [vmem:[%s2909 + $0x2c] sm:$0xf]
      %v2922 = vld [vmem:[%s2909 + $0x30] sm:$0xf]
      %v2923 = vld [vmem:[%s2909 + $0x34] sm:$0xf]
      %v2924 = vld [vmem:[%s2909 + $0x38] sm:$0xf]
      %v2925 = vld [vmem:[%s2909 + $0x3c] sm:$0xf]
      %v2926 = vld [vmem:[%s2909 + $0x40] sm:$0xf]
      %v2927 = vld [vmem:[%s2909 + $0x44] sm:$0xf]
      %v2928 = vld [vmem:[%s2909 + $0x48] sm:$0xf]
      %v2929 = vld [vmem:[%s2909 + $0x4c] sm:$0xf]
      %v2950 = vunpack.c.l.b16 %v2910
      %v2951 = vunpack.c.l.b16 %v2911
      %v2952 = vunpack.c.l.b16 %v2912
      %v2953 = vunpack.c.l.b16 %v2913
      %v2954 = vunpack.c.l.b16 %v2914
      %v2955 = vunpack.c.l.b16 %v2915
      %v2956 = vunpack.c.l.b16 %v2916
      %v2957 = vunpack.c.l.b16 %v2917
      %v2958 = vunpack.c.l.b16 %v2918
      %v2959 = vunpack.c.l.b16 %v2919
      %v2960 = vunpack.c.l.b16 %v2920
      %v2961 = vunpack.c.l.b16 %v2921
      %v2962 = vunpack.c.l.b16 %v2922
      %v2963 = vunpack.c.l.b16 %v2923
      %v2964 = vunpack.c.l.b16 %v2924
      %v2965 = vunpack.c.l.b16 %v2925
      %v2966 = vunpack.c.l.b16 %v2926
      %v2967 = vunpack.c.l.b16 %v2927
      %v2968 = vunpack.c.l.b16 %v2928
      %v2969 = vunpack.c.l.b16 %v2929
      %v2970 = vpack.c.b16 %v2951, %v2950
      %v2971 = vpack.c.b16 %v2953, %v2952
      %v2972 = vpack.c.b16 %v2955, %v2954
      %v2973 = vpack.c.b16 %v2957, %v2956
      %v2974 = vpack.c.b16 %v2959, %v2958
      %v2975 = vpack.c.b16 %v2961, %v2960
      %v2976 = vpack.c.b16 %v2963, %v2962
      %v2977 = vpack.c.b16 %v2965, %v2964
      %v2978 = vpack.c.b16 %v2967, %v2966
      %v2979 = vpack.c.b16 %v2969, %v2968
      %v2991 = vsel %vm1220, %v2878, 0
      %v2994 = vsel %vm1220, %v2880, 0
      %v2997 = vsel %vm1220, %v2882, 0
      %v3000 = vsel %vm1220, %v2884, 0
      %v3003 = vsel %vm1220, %v2886, 0
      %v3006 = vsel %vm1220, %v2888, 0
      %v3009 = vsel %vm1220, %v2890, 0
      %v3012 = vsel %vm1220, %v2892, 0
      %v3015 = vsel %vm1220, %v2894, 0
      %v3018 = vsel %vm1220, %v2896, 0
      %v3021 = vsel %vm1220, %v2898, 0
      %v3024 = vsel %vm1220, %v2900, 0
      %v3027 = vsel %vm1220, %v2902, 0
      %v3030 = vsel %vm1220, %v2904, 0
      %v3033 = vsel %vm1220, %v2906, 0
      %v3036 = vsel %vm1220, %v2908, 0
      %3038 = vmatprep.subr.bf16.mxu0 0
      %3039 = vmatpush1.bf16.msra.mxu0 %v2970
      %3040 = vmatprep.subr.bf16.mxu0 0
      %3041 = vmatpush1.bf16.msra.mxu0 %v2971
      %3042 = vmatprep.subr.bf16.mxu0 0
      %3043 = vmatpush1.bf16.msra.mxu0 %v2972
      %3044 = vmatprep.subr.bf16.mxu0 0
      %3045 = vmatpush1.bf16.msra.mxu0 %v2973
      %3046 = vmatprep.subr.bf16.mxu0 0
      %3047 = vmatpush1.bf16.msra.mxu0 %v2974
      %3048 = vmatprep.subr.bf16.mxu0 0
      %3049 = vmatpush1.bf16.msra.mxu0 %v2975
      %3050 = vmatprep.subr.bf16.mxu0 0
      %3051 = vmatpush1.bf16.msra.mxu0 %v2976
      %3052 = vmatprep.subr.bf16.mxu0 0
      %3053 = vmatpush1.bf16.msra.mxu0 %v2977
      %3054 = vmatprep.subr.bf16.mxu0 0
      %3055 = vmatpush1.bf16.msra.mxu0 %v2978
      %3056 = vmatprep.subr.bf16.mxu0 0
      %3057 = vmatpush1.bf16.msra.mxu0 %v2979
      %3058 = vmatprep.subr.bf16.mxu0 0
      %3059 = vmatpush1.bf16.msra.mxu0 0
      %3060 = vmatprep.subr.bf16.mxu0 0
      %3061 = vmatpush1.bf16.msra.mxu0 0
      %3062 = vmatprep.subr.bf16.mxu0 0
      %3063 = vmatpush1.bf16.msra.mxu0 0
      %3064 = vmatprep.subr.bf16.mxu0 0
      %3065 = vmatpush1.bf16.msra.mxu0 0
      %3066 = vmatprep.subr.bf16.mxu0 0
      %3067 = vmatpush1.bf16.msra.mxu0 0
      %3068 = vmatprep.subr.bf16.mxu0 0
      %3069 = vmatpush1.bf16.msra.mxu0 0
      %3070 = vmatprep.mubr.bf16.mxu0 %v2991
      %3071 = vmatmul.mubr.bf16.gmra.mrb[0].mxu0 %v2877
      %v3072 = vpop.f32.mrb[0].mxu0
      %v3073 = vadd.f32 0.0, %v3072
      %v3074 = vpop.f32.mrb[0].mxu0
      %v3075 = vpop.f32.mrb[0].mxu0
      %v3076 = vadd.f32 0.0, %v3075
      %v3077 = vpop.f32.mrb[0].mxu0
      %3078 = vmatprep.mubr.bf16.mxu0 %v2994
      %3079 = vmatmul.mubr.bf16.gmra.mrb[0].mxu0 %v2879
      %v3080 = vpop.f32.mrb[0].mxu0
      %v3081 = vadd.f32 0.0, %v3080
      %v3082 = vpop.f32.mrb[0].mxu0
      %v3083 = vpop.f32.mrb[0].mxu0
      %v3084 = vadd.f32 0.0, %v3083
      %v3085 = vpop.f32.mrb[0].mxu0
      %3086 = vmatprep.mubr.bf16.mxu0 %v2997
      %3087 = vmatmul.mubr.bf16.gmra.mrb[0].mxu0 %v2881
      %v3088 = vpop.f32.mrb[0].mxu0
      %v3089 = vadd.f32 0.0, %v3088
      %v3090 = vpop.f32.mrb[0].mxu0
      %v3091 = vpop.f32.mrb[0].mxu0
      %v3092 = vadd.f32 0.0, %v3091
      %v3093 = vpop.f32.mrb[0].mxu0
      %3094 = vmatprep.mubr.bf16.mxu0 %v3000
      %3095 = vmatmul.mubr.bf16.gmra.mrb[0].mxu0 %v2883
      %v3096 = vpop.f32.mrb[0].mxu0
      %v3097 = vadd.f32 0.0, %v3096
      %v3098 = vpop.f32.mrb[0].mxu0
      %v3099 = vpop.f32.mrb[0].mxu0
      %v3100 = vadd.f32 0.0, %v3099
      %v3101 = vpop.f32.mrb[0].mxu0
      %3102 = vmatprep.mubr.bf16.mxu0 %v3003
      %3103 = vmatmul.mubr.bf16.gmra.mrb[0].mxu0 %v2885
      %v3104 = vpop.f32.mrb[0].mxu0
      %v3105 = vadd.f32 0.0, %v3104
      %v3106 = vpop.f32.mrb[0].mxu0
      %v3107 = vpop.f32.mrb[0].mxu0
      %v3108 = vadd.f32 0.0, %v3107
      %v3109 = vpop.f32.mrb[0].mxu0
      %3110 = vmatprep.mubr.bf16.mxu0 %v3006
      %3111 = vmatmul.mubr.bf16.gmra.mrb[0].mxu0 %v2887
      %v3112 = vpop.f32.mrb[0].mxu0
      %v3113 = vadd.f32 0.0, %v3112
      %v3114 = vpop.f32.mrb[0].mxu0
      %v3115 = vpop.f32.mrb[0].mxu0
      %v3116 = vadd.f32 0.0, %v3115
      %v3117 = vpop.f32.mrb[0].mxu0
      %3118 = vmatprep.mubr.bf16.mxu0 %v3009
      %3119 = vmatmul.mubr.bf16.gmra.mrb[0].mxu0 %v2889
      %v3120 = vpop.f32.mrb[0].mxu0
      %v3121 = vadd.f32 0.0, %v3120
      %v3122 = vpop.f32.mrb[0].mxu0
      %v3123 = vpop.f32.mrb[0].mxu0
      %v3124 = vadd.f32 0.0, %v3123
      %v3125 = vpop.f32.mrb[0].mxu0
      %3126 = vmatprep.mubr.bf16.mxu0 %v3012
      %3127 = vmatmul.mubr.bf16.gmra.mrb[0].mxu0 %v2891
      %v3128 = vpop.f32.mrb[0].mxu0
      %v3129 = vadd.f32 0.0, %v3128
      %v3130 = vpop.f32.mrb[0].mxu0
      %v3131 = vpop.f32.mrb[0].mxu0
      %v3132 = vadd.f32 0.0, %v3131
      %v3133 = vpop.f32.mrb[0].mxu0
      %3134 = vmatprep.mubr.bf16.mxu0 %v3015
      %3135 = vmatmul.mubr.bf16.gmra.mrb[0].mxu0 %v2893
      %v3136 = vpop.f32.mrb[0].mxu0
      %v3137 = vadd.f32 0.0, %v3136
      %v3138 = vpop.f32.mrb[0].mxu0
      %v3139 = vpop.f32.mrb[0].mxu0
      %v3140 = vadd.f32 0.0, %v3139
      %v3141 = vpop.f32.mrb[0].mxu0
      %3142 = vmatprep.mubr.bf16.mxu0 %v3018
      %3143 = vmatmul.mubr.bf16.gmra.mrb[0].mxu0 %v2895
      %v3144 = vpop.f32.mrb[0].mxu0
      %v3145 = vadd.f32 0.0, %v3144
      %v3146 = vpop.f32.mrb[0].mxu0
      %v3147 = vpop.f32.mrb[0].mxu0
      %v3148 = vadd.f32 0.0, %v3147
      %v3149 = vpop.f32.mrb[0].mxu0
      %3150 = vmatprep.mubr.bf16.mxu0 %v3021
      %3151 = vmatmul.mubr.bf16.gmra.mrb[0].mxu0 %v2897
      %v3152 = vpop.f32.mrb[0].mxu0
      %v3153 = vadd.f32 0.0, %v3152
      %v3154 = vpop.f32.mrb[0].mxu0
      %v3155 = vpop.f32.mrb[0].mxu0
      %v3156 = vadd.f32 0.0, %v3155
      %v3157 = vpop.f32.mrb[0].mxu0
      %3158 = vmatprep.mubr.bf16.mxu0 %v3024
      %3159 = vmatmul.mubr.bf16.gmra.mrb[0].mxu0 %v2899
      %v3160 = vpop.f32.mrb[0].mxu0
      %v3161 = vadd.f32 0.0, %v3160
      %v3162 = vpop.f32.mrb[0].mxu0
      %v3163 = vpop.f32.mrb[0].mxu0
      %v3164 = vadd.f32 0.0, %v3163
      %v3165 = vpop.f32.mrb[0].mxu0
      %3166 = vmatprep.mubr.bf16.mxu0 %v3027
      %3167 = vmatmul.mubr.bf16.gmra.mrb[0].mxu0 %v2901
      %v3168 = vpop.f32.mrb[0].mxu0
      %v3169 = vadd.f32 0.0, %v3168
      %v3170 = vpop.f32.mrb[0].mxu0
      %v3171 = vpop.f32.mrb[0].mxu0
      %v3172 = vadd.f32 0.0, %v3171
      %v3173 = vpop.f32.mrb[0].mxu0
      %3174 = vmatprep.mubr.bf16.mxu0 %v3030
      %3175 = vmatmul.mubr.bf16.gmra.mrb[0].mxu0 %v2903
      %v3176 = vpop.f32.mrb[0].mxu0
      %v3177 = vadd.f32 0.0, %v3176
      %v3178 = vpop.f32.mrb[0].mxu0
      %v3179 = vpop.f32.mrb[0].mxu0
      %v3180 = vadd.f32 0.0, %v3179
      %v3181 = vpop.f32.mrb[0].mxu0
      %3182 = vmatprep.mubr.bf16.mxu0 %v3033
      %3183 = vmatmul.mubr.bf16.gmra.mrb[0].mxu0 %v2905
      %v3184 = vpop.f32.mrb[0].mxu0
      %v3185 = vadd.f32 0.0, %v3184
      %v3186 = vpop.f32.mrb[0].mxu0
      %v3187 = vpop.f32.mrb[0].mxu0
      %v3188 = vadd.f32 0.0, %v3187
      %v3189 = vpop.f32.mrb[0].mxu0
      %3190 = vmatprep.mubr.bf16.mxu0 %v3036
      %3191 = vmatmul.mubr.bf16.gmra.mrb[0].mxu0 %v2907
      %v3192 = vpop.f32.mrb[0].mxu0
      %v3193 = vadd.f32 0.0, %v3192
      %v3194 = vpop.f32.mrb[0].mxu0
      %v3195 = vpop.f32.mrb[0].mxu0
      %v3196 = vadd.f32 0.0, %v3195
      %v3197 = vpop.f32.mrb[0].mxu0
      %3198 = vdwg.mxu0
      %v3199 = vadd.f32 %v2844, %v3073
      %v3200 = vadd.f32 %v2845, %v3076
      %v3201 = vadd.f32 %v2846, %v3081
      %v3202 = vadd.f32 %v2847, %v3084
      %v3203 = vadd.f32 %v2848, %v3089
      %v3204 = vadd.f32 %v2849, %v3092
      %v3205 = vadd.f32 %v2850, %v3097
      %v3206 = vadd.f32 %v2851, %v3100
      %v3207 = vadd.f32 %v2852, %v3105
      %v3208 = vadd.f32 %v2853, %v3108
      %v3209 = vadd.f32 %v2854, %v3113
      %v3210 = vadd.f32 %v2855, %v3116
      %v3211 = vadd.f32 %v2856, %v3121
      %v3212 = vadd.f32 %v2857, %v3124
      %v3213 = vadd.f32 %v2858, %v3129
      %v3214 = vadd.f32 %v2859, %v3132
      %v3215 = vadd.f32 %v2860, %v3137
      %v3216 = vadd.f32 %v2861, %v3140
      %v3217 = vadd.f32 %v2862, %v3145
      %v3218 = vadd.f32 %v2863, %v3148
      %v3219 = vadd.f32 %v2864, %v3153
      %v3220 = vadd.f32 %v2865, %v3156
      %v3221 = vadd.f32 %v2866, %v3161
      %v3222 = vadd.f32 %v2867, %v3164
      %v3223 = vadd.f32 %v2868, %v3169
      %v3224 = vadd.f32 %v2869, %v3172
      %v3225 = vadd.f32 %v2870, %v3177
      %v3226 = vadd.f32 %v2871, %v3180
      %v3227 = vadd.f32 %v2872, %v3185
      %v3228 = vadd.f32 %v2873, %v3188
      %v3229 = vadd.f32 %v2874, %v3193
      %v3230 = vadd.f32 %v2875, %v3196
      %s3231 = scalar_lea.vmem [#allocation2], 64
      %v3232 = vld [vmem:[%s3231] sm:$0xff]
      %v3233 = vld [vmem:[%s3231 + $0x8] sm:$0xff]
      %v3234 = vld [vmem:[%s3231 + $0x10] sm:$0xff]
      %v3235 = vld [vmem:[%s3231 + $0x18] sm:$0xff]
      %v3236 = vld [vmem:[%s3231 + $0x20] sm:$0xff]
      %v3237 = vld [vmem:[%s3231 + $0x28] sm:$0xff]
      %v3238 = vld [vmem:[%s3231 + $0x30] sm:$0xff]
      %v3239 = vld [vmem:[%s3231 + $0x38] sm:$0xff]
      %v3240 = vld [vmem:[%s3231 + $0x40] sm:$0xff]
      %v3241 = vld [vmem:[%s3231 + $0x48] sm:$0xff]
      %v3242 = vld [vmem:[%s3231 + $0x50] sm:$0xff]
      %v3243 = vld [vmem:[%s3231 + $0x58] sm:$0xff]
      %v3244 = vld [vmem:[%s3231 + $0x60] sm:$0xff]
      %v3245 = vld [vmem:[%s3231 + $0x68] sm:$0xff]
      %v3246 = vld [vmem:[%s3231 + $0x70] sm:$0xff]
      %v3247 = vld [vmem:[%s3231 + $0x78] sm:$0xff]
      %v3248 = vld [vmem:[%s3231 + $0x80] sm:$0xff]
      %v3249 = vld [vmem:[%s3231 + $0x88] sm:$0xff]
      %v3250 = vld [vmem:[%s3231 + $0x90] sm:$0xff]
      %v3251 = vld [vmem:[%s3231 + $0x98] sm:$0xff]
      %v3252 = vld [vmem:[%s3231 + $0xa0] sm:$0xff]
      %v3253 = vld [vmem:[%s3231 + $0xa8] sm:$0xff]
      %v3254 = vld [vmem:[%s3231 + $0xb0] sm:$0xff]
      %v3255 = vld [vmem:[%s3231 + $0xb8] sm:$0xff]
      %v3256 = vld [vmem:[%s3231 + $0xc0] sm:$0xff]
      %v3257 = vld [vmem:[%s3231 + $0xc8] sm:$0xff]
      %v3258 = vld [vmem:[%s3231 + $0xd0] sm:$0xff]
      %v3259 = vld [vmem:[%s3231 + $0xd8] sm:$0xff]
      %v3260 = vld [vmem:[%s3231 + $0xe0] sm:$0xff]
      %v3261 = vld [vmem:[%s3231 + $0xe8] sm:$0xff]
      %v3262 = vld [vmem:[%s3231 + $0xf0] sm:$0xff]
      %v3263 = vld [vmem:[%s3231 + $0xf8] sm:$0xff]
      %s3264 = scalar_lea.vmem %s5, 320
      %v3265 = vld [vmem:[%s3264] sm:$0xf]
      %v3266 = vld [vmem:[%s3264 + $0x4] sm:$0xf]
      %v3267 = vld [vmem:[%s3264 + $0x8] sm:$0xf]
      %v3268 = vld [vmem:[%s3264 + $0xc] sm:$0xf]
      %v3269 = vld [vmem:[%s3264 + $0x10] sm:$0xf]
      %v3270 = vld [vmem:[%s3264 + $0x14] sm:$0xf]
      %v3271 = vld [vmem:[%s3264 + $0x18] sm:$0xf]
      %v3272 = vld [vmem:[%s3264 + $0x1c] sm:$0xf]
      %v3273 = vld [vmem:[%s3264 + $0x20] sm:$0xf]
      %v3274 = vld [vmem:[%s3264 + $0x24] sm:$0xf]
      %v3275 = vld [vmem:[%s3264 + $0x28] sm:$0xf]
      %v3276 = vld [vmem:[%s3264 + $0x2c] sm:$0xf]
      %v3277 = vld [vmem:[%s3264 + $0x30] sm:$0xf]
      %v3278 = vld [vmem:[%s3264 + $0x34] sm:$0xf]
      %v3279 = vld [vmem:[%s3264 + $0x38] sm:$0xf]
      %v3280 = vld [vmem:[%s3264 + $0x3c] sm:$0xf]
      %v3281 = vld [vmem:[%s3264 + $0x40] sm:$0xf]
      %v3282 = vld [vmem:[%s3264 + $0x44] sm:$0xf]
      %v3283 = vld [vmem:[%s3264 + $0x48] sm:$0xf]
      %v3284 = vld [vmem:[%s3264 + $0x4c] sm:$0xf]
      %v3305 = vunpack.c.l.b16 %v3265
      %v3306 = vunpack.c.l.b16 %v3266
      %v3307 = vunpack.c.l.b16 %v3267
      %v3308 = vunpack.c.l.b16 %v3268
      %v3309 = vunpack.c.l.b16 %v3269
      %v3310 = vunpack.c.l.b16 %v3270
      %v3311 = vunpack.c.l.b16 %v3271
      %v3312 = vunpack.c.l.b16 %v3272
      %v3313 = vunpack.c.l.b16 %v3273
      %v3314 = vunpack.c.l.b16 %v3274
      %v3315 = vunpack.c.l.b16 %v3275
      %v3316 = vunpack.c.l.b16 %v3276
      %v3317 = vunpack.c.l.b16 %v3277
      %v3318 = vunpack.c.l.b16 %v3278
      %v3319 = vunpack.c.l.b16 %v3279
      %v3320 = vunpack.c.l.b16 %v3280
      %v3321 = vunpack.c.l.b16 %v3281
      %v3322 = vunpack.c.l.b16 %v3282
      %v3323 = vunpack.c.l.b16 %v3283
      %v3324 = vunpack.c.l.b16 %v3284
      %v3325 = vpack.c.b16 %v3306, %v3305
      %v3326 = vpack.c.b16 %v3308, %v3307
      %v3327 = vpack.c.b16 %v3310, %v3309
      %v3328 = vpack.c.b16 %v3312, %v3311
      %v3329 = vpack.c.b16 %v3314, %v3313
      %v3330 = vpack.c.b16 %v3316, %v3315
      %v3331 = vpack.c.b16 %v3318, %v3317
      %v3332 = vpack.c.b16 %v3320, %v3319
      %v3333 = vpack.c.b16 %v3322, %v3321
      %v3334 = vpack.c.b16 %v3324, %v3323
      %v3346 = vsel %vm1220, %v3233, 0
      %v3349 = vsel %vm1220, %v3235, 0
      %v3352 = vsel %vm1220, %v3237, 0
      %v3355 = vsel %vm1220, %v3239, 0
      %v3358 = vsel %vm1220, %v3241, 0
      %v3361 = vsel %vm1220, %v3243, 0
      %v3364 = vsel %vm1220, %v3245, 0
      %v3367 = vsel %vm1220, %v3247, 0
      %v3370 = vsel %vm1220, %v3249, 0
      %v3373 = vsel %vm1220, %v3251, 0
      %v3376 = vsel %vm1220, %v3253, 0
      %v3379 = vsel %vm1220, %v3255, 0
      %v3382 = vsel %vm1220, %v3257, 0
      %v3385 = vsel %vm1220, %v3259, 0
      %v3388 = vsel %vm1220, %v3261, 0
      %v3391 = vsel %vm1220, %v3263, 0
      %3393 = vmatprep.subr.bf16.mxu0 0
      %3394 = vmatpush1.bf16.msra.mxu0 %v3325
      %3395 = vmatprep.subr.bf16.mxu0 0
      %3396 = vmatpush1.bf16.msra.mxu0 %v3326
      %3397 = vmatprep.subr.bf16.mxu0 0
      %3398 = vmatpush1.bf16.msra.mxu0 %v3327
      %3399 = vmatprep.subr.bf16.mxu0 0
      %3400 = vmatpush1.bf16.msra.mxu0 %v3328
      %3401 = vmatprep.subr.bf16.mxu0 0
      %3402 = vmatpush1.bf16.msra.mxu0 %v3329
      %3403 = vmatprep.subr.bf16.mxu0 0
      %3404 = vmatpush1.bf16.msra.mxu0 %v3330
      %3405 = vmatprep.subr.bf16.mxu0 0
      %3406 = vmatpush1.bf16.msra.mxu0 %v3331
      %3407 = vmatprep.subr.bf16.mxu0 0
      %3408 = vmatpush1.bf16.msra.mxu0 %v3332
      %3409 = vmatprep.subr.bf16.mxu0 0
      %3410 = vmatpush1.bf16.msra.mxu0 %v3333
      %3411 = vmatprep.subr.bf16.mxu0 0
      %3412 = vmatpush1.bf16.msra.mxu0 %v3334
      %3413 = vmatprep.subr.bf16.mxu0 0
      %3414 = vmatpush1.bf16.msra.mxu0 0
      %3415 = vmatprep.subr.bf16.mxu0 0
      %3416 = vmatpush1.bf16.msra.mxu0 0
      %3417 = vmatprep.subr.bf16.mxu0 0
      %3418 = vmatpush1.bf16.msra.mxu0 0
      %3419 = vmatprep.subr.bf16.mxu0 0
      %3420 = vmatpush1.bf16.msra.mxu0 0
      %3421 = vmatprep.subr.bf16.mxu0 0
      %3422 = vmatpush1.bf16.msra.mxu0 0
      %3423 = vmatprep.subr.bf16.mxu0 0
      %3424 = vmatpush1.bf16.msra.mxu0 0
      %3425 = vmatprep.mubr.bf16.mxu0 %v3346
      %3426 = vmatmul.mubr.bf16.gmra.mrb[0].mxu0 %v3232
      %v3427 = vpop.f32.mrb[0].mxu0
      %v3428 = vadd.f32 0.0, %v3427
      %v3429 = vpop.f32.mrb[0].mxu0
      %v3430 = vpop.f32.mrb[0].mxu0
      %v3431 = vadd.f32 0.0, %v3430
      %v3432 = vpop.f32.mrb[0].mxu0
      %3433 = vmatprep.mubr.bf16.mxu0 %v3349
      %3434 = vmatmul.mubr.bf16.gmra.mrb[0].mxu0 %v3234
      %v3435 = vpop.f32.mrb[0].mxu0
      %v3436 = vadd.f32 0.0, %v3435
      %v3437 = vpop.f32.mrb[0].mxu0
      %v3438 = vpop.f32.mrb[0].mxu0
      %v3439 = vadd.f32 0.0, %v3438
      %v3440 = vpop.f32.mrb[0].mxu0
      %3441 = vmatprep.mubr.bf16.mxu0 %v3352
      %3442 = vmatmul.mubr.bf16.gmra.mrb[0].mxu0 %v3236
      %v3443 = vpop.f32.mrb[0].mxu0
      %v3444 = vadd.f32 0.0, %v3443
      %v3445 = vpop.f32.mrb[0].mxu0
      %v3446 = vpop.f32.mrb[0].mxu0
      %v3447 = vadd.f32 0.0, %v3446
      %v3448 = vpop.f32.mrb[0].mxu0
      %3449 = vmatprep.mubr.bf16.mxu0 %v3355
      %3450 = vmatmul.mubr.bf16.gmra.mrb[0].mxu0 %v3238
      %v3451 = vpop.f32.mrb[0].mxu0
      %v3452 = vadd.f32 0.0, %v3451
      %v3453 = vpop.f32.mrb[0].mxu0
      %v3454 = vpop.f32.mrb[0].mxu0
      %v3455 = vadd.f32 0.0, %v3454
      %v3456 = vpop.f32.mrb[0].mxu0
      %3457 = vmatprep.mubr.bf16.mxu0 %v3358
      %3458 = vmatmul.mubr.bf16.gmra.mrb[0].mxu0 %v3240
      %v3459 = vpop.f32.mrb[0].mxu0
      %v3460 = vadd.f32 0.0, %v3459
      %v3461 = vpop.f32.mrb[0].mxu0
      %v3462 = vpop.f32.mrb[0].mxu0
      %v3463 = vadd.f32 0.0, %v3462
      %v3464 = vpop.f32.mrb[0].mxu0
      %3465 = vmatprep.mubr.bf16.mxu0 %v3361
      %3466 = vmatmul.mubr.bf16.gmra.mrb[0].mxu0 %v3242
      %v3467 = vpop.f32.mrb[0].mxu0
      %v3468 = vadd.f32 0.0, %v3467
      %v3469 = vpop.f32.mrb[0].mxu0
      %v3470 = vpop.f32.mrb[0].mxu0
      %v3471 = vadd.f32 0.0, %v3470
      %v3472 = vpop.f32.mrb[0].mxu0
      %3473 = vmatprep.mubr.bf16.mxu0 %v3364
      %3474 = vmatmul.mubr.bf16.gmra.mrb[0].mxu0 %v3244
      %v3475 = vpop.f32.mrb[0].mxu0
      %v3476 = vadd.f32 0.0, %v3475
      %v3477 = vpop.f32.mrb[0].mxu0
      %v3478 = vpop.f32.mrb[0].mxu0
      %v3479 = vadd.f32 0.0, %v3478
      %v3480 = vpop.f32.mrb[0].mxu0
      %3481 = vmatprep.mubr.bf16.mxu0 %v3367
      %3482 = vmatmul.mubr.bf16.gmra.mrb[0].mxu0 %v3246
      %v3483 = vpop.f32.mrb[0].mxu0
      %v3484 = vadd.f32 0.0, %v3483
      %v3485 = vpop.f32.mrb[0].mxu0
      %v3486 = vpop.f32.mrb[0].mxu0
      %v3487 = vadd.f32 0.0, %v3486
      %v3488 = vpop.f32.mrb[0].mxu0
      %3489 = vmatprep.mubr.bf16.mxu0 %v3370
      %3490 = vmatmul.mubr.bf16.gmra.mrb[0].mxu0 %v3248
      %v3491 = vpop.f32.mrb[0].mxu0
      %v3492 = vadd.f32 0.0, %v3491
      %v3493 = vpop.f32.mrb[0].mxu0
      %v3494 = vpop.f32.mrb[0].mxu0
      %v3495 = vadd.f32 0.0, %v3494
      %v3496 = vpop.f32.mrb[0].mxu0
      %3497 = vmatprep.mubr.bf16.mxu0 %v3373
      %3498 = vmatmul.mubr.bf16.gmra.mrb[0].mxu0 %v3250
      %v3499 = vpop.f32.mrb[0].mxu0
      %v3500 = vadd.f32 0.0, %v3499
      %v3501 = vpop.f32.mrb[0].mxu0
      %v3502 = vpop.f32.mrb[0].mxu0
      %v3503 = vadd.f32 0.0, %v3502
      %v3504 = vpop.f32.mrb[0].mxu0
      %3505 = vmatprep.mubr.bf16.mxu0 %v3376
      %3506 = vmatmul.mubr.bf16.gmra.mrb[0].mxu0 %v3252
      %v3507 = vpop.f32.mrb[0].mxu0
      %v3508 = vadd.f32 0.0, %v3507
      %v3509 = vpop.f32.mrb[0].mxu0
      %v3510 = vpop.f32.mrb[0].mxu0
      %v3511 = vadd.f32 0.0, %v3510
      %v3512 = vpop.f32.mrb[0].mxu0
      %3513 = vmatprep.mubr.bf16.mxu0 %v3379
      %3514 = vmatmul.mubr.bf16.gmra.mrb[0].mxu0 %v3254
      %v3515 = vpop.f32.mrb[0].mxu0
      %v3516 = vadd.f32 0.0, %v3515
      %v3517 = vpop.f32.mrb[0].mxu0
      %v3518 = vpop.f32.mrb[0].mxu0
      %v3519 = vadd.f32 0.0, %v3518
      %v3520 = vpop.f32.mrb[0].mxu0
      %3521 = vmatprep.mubr.bf16.mxu0 %v3382
      %3522 = vmatmul.mubr.bf16.gmra.mrb[0].mxu0 %v3256
      %v3523 = vpop.f32.mrb[0].mxu0
      %v3524 = vadd.f32 0.0, %v3523
      %v3525 = vpop.f32.mrb[0].mxu0
      %v3526 = vpop.f32.mrb[0].mxu0
      %v3527 = vadd.f32 0.0, %v3526
      %v3528 = vpop.f32.mrb[0].mxu0
      %3529 = vmatprep.mubr.bf16.mxu0 %v3385
      %3530 = vmatmul.mubr.bf16.gmra.mrb[0].mxu0 %v3258
      %v3531 = vpop.f32.mrb[0].mxu0
      %v3532 = vadd.f32 0.0, %v3531
      %v3533 = vpop.f32.mrb[0].mxu0
      %v3534 = vpop.f32.mrb[0].mxu0
      %v3535 = vadd.f32 0.0, %v3534
      %v3536 = vpop.f32.mrb[0].mxu0
      %3537 = vmatprep.mubr.bf16.mxu0 %v3388
      %3538 = vmatmul.mubr.bf16.gmra.mrb[0].mxu0 %v3260
      %v3539 = vpop.f32.mrb[0].mxu0
      %v3540 = vadd.f32 0.0, %v3539
      %v3541 = vpop.f32.mrb[0].mxu0
      %v3542 = vpop.f32.mrb[0].mxu0
      %v3543 = vadd.f32 0.0, %v3542
      %v3544 = vpop.f32.mrb[0].mxu0
      %3545 = vmatprep.mubr.bf16.mxu0 %v3391
      %3546 = vmatmul.mubr.bf16.gmra.mrb[0].mxu0 %v3262
      %v3547 = vpop.f32.mrb[0].mxu0
      %v3548 = vadd.f32 0.0, %v3547
      %v3549 = vpop.f32.mrb[0].mxu0
      %v3550 = vpop.f32.mrb[0].mxu0
      %v3551 = vadd.f32 0.0, %v3550
      %v3552 = vpop.f32.mrb[0].mxu0
      %3553 = vdwg.mxu0
      %v3554 = vadd.f32 %v3199, %v3428
      %v3555 = vadd.f32 %v3200, %v3431
      %v3556 = vadd.f32 %v3201, %v3436
      %v3557 = vadd.f32 %v3202, %v3439
      %v3558 = vadd.f32 %v3203, %v3444
      %v3559 = vadd.f32 %v3204, %v3447
      %v3560 = vadd.f32 %v3205, %v3452
      %v3561 = vadd.f32 %v3206, %v3455
      %v3562 = vadd.f32 %v3207, %v3460
      %v3563 = vadd.f32 %v3208, %v3463
      %v3564 = vadd.f32 %v3209, %v3468
      %v3565 = vadd.f32 %v3210, %v3471
      %v3566 = vadd.f32 %v3211, %v3476
      %v3567 = vadd.f32 %v3212, %v3479
      %v3568 = vadd.f32 %v3213, %v3484
      %v3569 = vadd.f32 %v3214, %v3487
      %v3570 = vadd.f32 %v3215, %v3492
      %v3571 = vadd.f32 %v3216, %v3495
      %v3572 = vadd.f32 %v3217, %v3500
      %v3573 = vadd.f32 %v3218, %v3503
      %v3574 = vadd.f32 %v3219, %v3508
      %v3575 = vadd.f32 %v3220, %v3511
      %v3576 = vadd.f32 %v3221, %v3516
      %v3577 = vadd.f32 %v3222, %v3519
      %v3578 = vadd.f32 %v3223, %v3524
      %v3579 = vadd.f32 %v3224, %v3527
      %v3580 = vadd.f32 %v3225, %v3532
      %v3581 = vadd.f32 %v3226, %v3535
      %v3582 = vadd.f32 %v3227, %v3540
      %v3583 = vadd.f32 %v3228, %v3543
      %v3584 = vadd.f32 %v3229, %v3548
      %v3585 = vadd.f32 %v3230, %v3551
      %v3586 = vld [vmem:[%s6] sm:$0x1]
      %v3588 = vlaneseq
      %v3589 = vshrl.u32 %v3588, 7
      %v3590 = vsub.s32 0, %v3589
      %v3591 = vrot.slane %v3586, %v3590
      %v3593 = vadd.f32 %v3554, %v3591
      %v3594 = vadd.f32 %v3555, %v3591
      %v3595 = vadd.f32 %v3556, %v3591
      %v3596 = vadd.f32 %v3557, %v3591
      %v3597 = vadd.f32 %v3558, %v3591
      %v3598 = vadd.f32 %v3559, %v3591
      %v3599 = vadd.f32 %v3560, %v3591
      %v3600 = vadd.f32 %v3561, %v3591
      %v3601 = vadd.f32 %v3562, %v3591
      %v3602 = vadd.f32 %v3563, %v3591
      %v3603 = vadd.f32 %v3564, %v3591
      %v3604 = vadd.f32 %v3565, %v3591
      %v3605 = vadd.f32 %v3566, %v3591
      %v3606 = vadd.f32 %v3567, %v3591
      %v3607 = vadd.f32 %v3568, %v3591
      %v3608 = vadd.f32 %v3569, %v3591
      %v3609 = vadd.f32 %v3570, %v3591
      %v3610 = vadd.f32 %v3571, %v3591
      %v3611 = vadd.f32 %v3572, %v3591
      %v3612 = vadd.f32 %v3573, %v3591
      %v3613 = vadd.f32 %v3574, %v3591
      %v3614 = vadd.f32 %v3575, %v3591
      %v3615 = vadd.f32 %v3576, %v3591
      %v3616 = vadd.f32 %v3577, %v3591
      %v3617 = vadd.f32 %v3578, %v3591
      %v3618 = vadd.f32 %v3579, %v3591
      %v3619 = vadd.f32 %v3580, %v3591
      %v3620 = vadd.f32 %v3581, %v3591
      %v3621 = vadd.f32 %v3582, %v3591
      %v3622 = vadd.f32 %v3583, %v3591
      %v3623 = vadd.f32 %v3584, %v3591
      %v3624 = vadd.f32 %v3585, %v3591
      %v3625 = vmax.f32 %v3593, 0.0
      %v3626 = vmax.f32 %v3594, 0.0
      %v3627 = vmax.f32 %v3595, 0.0
      %v3628 = vmax.f32 %v3596, 0.0
      %v3629 = vmax.f32 %v3597, 0.0
      %v3630 = vmax.f32 %v3598, 0.0
      %v3631 = vmax.f32 %v3599, 0.0
      %v3632 = vmax.f32 %v3600, 0.0
      %v3633 = vmax.f32 %v3601, 0.0
      %v3634 = vmax.f32 %v3602, 0.0
      %v3635 = vmax.f32 %v3603, 0.0
      %v3636 = vmax.f32 %v3604, 0.0
      %v3637 = vmax.f32 %v3605, 0.0
      %v3638 = vmax.f32 %v3606, 0.0
      %v3639 = vmax.f32 %v3607, 0.0
      %v3640 = vmax.f32 %v3608, 0.0
      %v3641 = vmax.f32 %v3609, 0.0
      %v3642 = vmax.f32 %v3610, 0.0
      %v3643 = vmax.f32 %v3611, 0.0
      %v3644 = vmax.f32 %v3612, 0.0
      %v3645 = vmax.f32 %v3613, 0.0
      %v3646 = vmax.f32 %v3614, 0.0
      %v3647 = vmax.f32 %v3615, 0.0
      %v3648 = vmax.f32 %v3616, 0.0
      %v3649 = vmax.f32 %v3617, 0.0
      %v3650 = vmax.f32 %v3618, 0.0
      %v3651 = vmax.f32 %v3619, 0.0
      %v3652 = vmax.f32 %v3620, 0.0
      %v3653 = vmax.f32 %v3621, 0.0
      %v3654 = vmax.f32 %v3622, 0.0
      %v3655 = vmax.f32 %v3623, 0.0
      %v3656 = vmax.f32 %v3624, 0.0
      %v3657 = vmax.f32 %v3625, 1e-12
      %v3658 = vmax.f32 %v3626, 1e-12
      %v3659 = vmax.f32 %v3627, 1e-12
      %v3660 = vmax.f32 %v3628, 1e-12
      %v3661 = vmax.f32 %v3629, 1e-12
      %v3662 = vmax.f32 %v3630, 1e-12
      %v3663 = vmax.f32 %v3631, 1e-12
      %v3664 = vmax.f32 %v3632, 1e-12
      %v3665 = vmax.f32 %v3633, 1e-12
      %v3666 = vmax.f32 %v3634, 1e-12
      %v3667 = vmax.f32 %v3635, 1e-12
      %v3668 = vmax.f32 %v3636, 1e-12
      %v3669 = vmax.f32 %v3637, 1e-12
      %v3670 = vmax.f32 %v3638, 1e-12
      %v3671 = vmax.f32 %v3639, 1e-12
      %v3672 = vmax.f32 %v3640, 1e-12
      %v3673 = vmax.f32 %v3641, 1e-12
      %v3674 = vmax.f32 %v3642, 1e-12
      %v3675 = vmax.f32 %v3643, 1e-12
      %v3676 = vmax.f32 %v3644, 1e-12
      %v3677 = vmax.f32 %v3645, 1e-12
      %v3678 = vmax.f32 %v3646, 1e-12
      %v3679 = vmax.f32 %v3647, 1e-12
      %v3680 = vmax.f32 %v3648, 1e-12
      %v3681 = vmax.f32 %v3649, 1e-12
      %v3682 = vmax.f32 %v3650, 1e-12
      %v3683 = vmax.f32 %v3651, 1e-12
      %v3684 = vmax.f32 %v3652, 1e-12
      %v3685 = vmax.f32 %v3653, 1e-12
      %v3686 = vmax.f32 %v3654, 1e-12
      %v3687 = vmax.f32 %v3655, 1e-12
      %v3688 = vmax.f32 %v3656, 1e-12
      %v3689 = vmin.f32 %v3657, 1.0
      %v3690 = vmin.f32 %v3658, 1.0
      %v3691 = vmin.f32 %v3659, 1.0
      %v3692 = vmin.f32 %v3660, 1.0
      %v3693 = vmin.f32 %v3661, 1.0
      %v3694 = vmin.f32 %v3662, 1.0
      %v3695 = vmin.f32 %v3663, 1.0
      %v3696 = vmin.f32 %v3664, 1.0
      %v3697 = vmin.f32 %v3665, 1.0
      %v3698 = vmin.f32 %v3666, 1.0
      %v3699 = vmin.f32 %v3667, 1.0
      %v3700 = vmin.f32 %v3668, 1.0
      %v3701 = vmin.f32 %v3669, 1.0
      %v3702 = vmin.f32 %v3670, 1.0
      %v3703 = vmin.f32 %v3671, 1.0
      %v3704 = vmin.f32 %v3672, 1.0
      %v3705 = vmin.f32 %v3673, 1.0
      %v3706 = vmin.f32 %v3674, 1.0
      %v3707 = vmin.f32 %v3675, 1.0
      %v3708 = vmin.f32 %v3676, 1.0
      %v3709 = vmin.f32 %v3677, 1.0
      %v3710 = vmin.f32 %v3678, 1.0
      %v3711 = vmin.f32 %v3679, 1.0
      %v3712 = vmin.f32 %v3680, 1.0
      %v3713 = vmin.f32 %v3681, 1.0
      %v3714 = vmin.f32 %v3682, 1.0
      %v3715 = vmin.f32 %v3683, 1.0
      %v3716 = vmin.f32 %v3684, 1.0
      %v3717 = vmin.f32 %v3685, 1.0
      %v3718 = vmin.f32 %v3686, 1.0
      %v3719 = vmin.f32 %v3687, 1.0
      %v3720 = vmin.f32 %v3688, 1.0
      %3721 = vxpose.xlu0.b32.start [1/16] %v3689, 128
      %3722 = vxpose.xlu0.b32.cont [2/16] %v3690, 128
      %3723 = vxpose.xlu0.b32.cont [3/16] %v3691, 128
      %3724 = vxpose.xlu0.b32.cont [4/16] %v3692, 128
      %3725 = vxpose.xlu0.b32.cont [5/16] %v3693, 128
      %3726 = vxpose.xlu0.b32.cont [6/16] %v3694, 128
      %3727 = vxpose.xlu0.b32.cont [7/16] %v3695, 128
      %3728 = vxpose.xlu0.b32.cont [8/16] %v3696, 128
      %3729 = vxpose.xlu0.b32.cont [9/16] %v3697, 128
      %3730 = vxpose.xlu0.b32.cont [10/16] %v3698, 128
      %3731 = vxpose.xlu0.b32.cont [11/16] %v3699, 128
      %3732 = vxpose.xlu0.b32.cont [12/16] %v3700, 128
      %3733 = vxpose.xlu0.b32.cont [13/16] %v3701, 128
      %3734 = vxpose.xlu0.b32.cont [14/16] %v3702, 128
      %3735 = vxpose.xlu0.b32.cont [15/16] %v3703, 128
      %3736 = vxpose.xlu0.b32.end [16/16] %v3704, 128
      %v3737 = vpop.trf.xlu0
      %v3738 = vpop.trf.xlu0
      %v3739 = vpop.trf.xlu0
      %v3740 = vpop.trf.xlu0
      %v3741 = vpop.trf.xlu0
      %v3742 = vpop.trf.xlu0
      %v3743 = vpop.trf.xlu0
      %v3744 = vpop.trf.xlu0
      %v3745 = vpop.trf.xlu0
      %v3746 = vpop.trf.xlu0
      %v3747 = vpop.trf.xlu0
      %v3748 = vpop.trf.xlu0
      %v3749 = vpop.trf.xlu0
      %v3750 = vpop.trf.xlu0
      %v3751 = vpop.trf.xlu0
      %v3752 = vpop.trf.xlu0
      %3753 = vxpose.xlu0.b32.start [1/16] %v3705, 128
      %3754 = vxpose.xlu0.b32.cont [2/16] %v3706, 128
      %3755 = vxpose.xlu0.b32.cont [3/16] %v3707, 128
      %3756 = vxpose.xlu0.b32.cont [4/16] %v3708, 128
      %3757 = vxpose.xlu0.b32.cont [5/16] %v3709, 128
      %3758 = vxpose.xlu0.b32.cont [6/16] %v3710, 128
      %3759 = vxpose.xlu0.b32.cont [7/16] %v3711, 128
      %3760 = vxpose.xlu0.b32.cont [8/16] %v3712, 128
      %3761 = vxpose.xlu0.b32.cont [9/16] %v3713, 128
      %3762 = vxpose.xlu0.b32.cont [10/16] %v3714, 128
      %3763 = vxpose.xlu0.b32.cont [11/16] %v3715, 128
      %3764 = vxpose.xlu0.b32.cont [12/16] %v3716, 128
      %3765 = vxpose.xlu0.b32.cont [13/16] %v3717, 128
      %3766 = vxpose.xlu0.b32.cont [14/16] %v3718, 128
      %3767 = vxpose.xlu0.b32.cont [15/16] %v3719, 128
      %3768 = vxpose.xlu0.b32.end [16/16] %v3720, 128
      %v3769 = vpop.trf.xlu0
      %v3770 = vpop.trf.xlu0
      %v3771 = vpop.trf.xlu0
      %v3772 = vpop.trf.xlu0
      %v3773 = vpop.trf.xlu0
      %v3774 = vpop.trf.xlu0
      %v3775 = vpop.trf.xlu0
      %v3776 = vpop.trf.xlu0
      %v3777 = vpop.trf.xlu0
      %v3778 = vpop.trf.xlu0
      %v3779 = vpop.trf.xlu0
      %v3780 = vpop.trf.xlu0
      %v3781 = vpop.trf.xlu0
      %v3782 = vpop.trf.xlu0
      %v3783 = vpop.trf.xlu0
      %v3784 = vpop.trf.xlu0
      %v3787 = vcombine.low %v3737, %v3769
      %3789 = vst [vmem:[%s278] sm:$0x77] %v3787
      %p3790 = scmp.lt.s32.totalorder %s18, 1
      %s3791 = scalar_select %p3790, %s18, 1
      %s3792 = smul.addr %s3791, 2
      %s3793 = smul.addr %s3792, 4
      %s3794 = scalar_lea.vmem %s7, %s3793
      // Predicated region
      $region49: #{model_forward.1} parent=47 // pred_check
        %p3795 = pneg %p188
      $region50: #{model_forward.1} parent=47 // pred_check_branch
        %3797 = sbr.rel (%p3795) target = $region52
      $region51: #{model_forward.1} parent=47 // pred_region
        _
      $region52: #{model_forward.1} parent=47 // pred_fallthru
        _
    $region48: #{model_forward.1} parent=5 // pred_fallthru
      _
    %p3798 = scmp.le.s32.totalorder 2, %s13
    // Predicated region
    $region53: #{model_forward.1} parent=5 // pred_check
      %p3799 = pneg %p3798
    $region54: #{model_forward.1} parent=5 // pred_check_branch
      %3801 = sbr.rel (%p3799) target = $region56
    $region55: #{model_forward.1} parent=5 // pred_region
      %s3802 = ssub.s32 %s13, 2
      // Predicated region
      $region57: #{model_forward.1} parent=55 // pred_check
        %p3803 = pneg %p194
      $region58: #{model_forward.1} parent=55 // pred_check_branch
        %3805 = sbr.rel (%p3803) target = $region60
      $region59: #{model_forward.1} parent=55 // pred_region
        %p3806 = scmp.lt.s32.totalorder %s19, 1
        %s3807 = scalar_select %p3806, %s19, 1
        %s3808 = smul.addr %s3807, 2
        %s3809 = smul.addr %s3808, 4
        %s3810 = scalar_lea.vmem %s7, %s3809
      $region60: #{model_forward.1} parent=55 // pred_fallthru
        _
    $region56: #{model_forward.1} parent=5 // pred_fallthru
      _
  $region6: #{model_forward.1} parent=0 // loop_footer
    %s17 = sadd.s32 1, %s13
  $region7: #{model_forward.1} parent=0 // loop_footer_branch
    %12 = sbr.rel target = $region3
  $region8: #{model_forward.1} parent=0 // loop_exit
    _

</llo_original>
